<compile_context>
chip_gen: v7x
topology: tpu7x:2x2x1
jax: 0.10.0
libtpu: 0.0.40
codegen_flags: <defaults>
</compile_context>

<pallas_src>
import functools
import math

import jax
import jax.numpy as jnp
from jax.experimental import pallas as pl
from jax.experimental.pallas import tpu as pltpu

EPS = 1e-6      # epsilon used inside RGBuvHistBlock (HistoGAN reference impl)
SIGMA = 0.02    # inverse-quadratic kernel bandwidth (RGBuvHistBlock default)
H_BINS = 128    # histogram bins h (HistLoss default h=128)
INSZ = 256      # max spatial size before resizing (HistLoss default insz=256)
TILE_N = 2048   # pixel-axis tile; multiple of 256, sized for v7x's 64 MiB VMEM


def _round_up(x, m):
    return ((x + m - 1) // m) * m


# --------------------------------------------------------------------------
# Kernel 1: per-image RGB-uv histogram, pixel axis tiled as a reduction axis.
# --------------------------------------------------------------------------
def _hist_kernel(row_ref, col_ref, hist_ref, den_ref, acc_ref, *,
                 h, eps, bin_start, bin_step):
    """Accumulate the three (h, h) RGB-uv histograms for one image.

    row_ref : (1, 4, T)  rows = [u_R, u_G, u_B, iy]  (u pre-scaled by 1/sigma)
    col_ref : (1, T, 3)  cols = [v_R, v_G, v_B]      (v pre-scaled by 1/sigma)
    hist_ref: (1, 3, h, h) raw (un-normalized) histogram, written at last k step
    den_ref : (1, 1, 1)    sum(hist) + eps, written at last k step
    acc_ref : (3, h, h) f32 scratch accumulator (persists across k steps)
    """
    k = pl.program_id(1)

    @pl.when(k == 0)
    def _init():
        acc_ref[...] = jnp.zeros_like(acc_ref)

    # Pre-scaled bin centers, built in both orientations with iota (no transposes).
    bins_col = (jax.lax.broadcasted_iota(jnp.int32, (h, 1), 0).astype(jnp.float32)
                * bin_step + bin_start)                        # (h, 1)
    bins_row = (jax.lax.broadcasted_iota(jnp.int32, (1, h), 1).astype(jnp.float32)
                * bin_step + bin_start)                        # (1, h)

    iy = row_ref[0, 3:4, :]                                    # (1, T) lane-dense

    for c in range(3):                                         # unrolled (static)
        u = row_ref[0, c:c + 1, :]                             # (1, T)
        tu = u - bins_col                                      # (h, T)
        a = iy * pl.reciprocal(1.0 + tu * tu, approx=True)     # (h, T)

        v = col_ref[0, :, c:c + 1]                             # (T, 1)
        tv = v - bins_row                                      # (T, h)
        kv = pl.reciprocal(1.0 + tv * tv, approx=True)         # (T, h)

        # Canonical (h, T) @ (T, h) -> (h, h); bf16 MXU inputs, f32 accumulation.
        acc_ref[c] += jax.lax.dot_general(
            a.astype(jnp.bfloat16), kv.astype(jnp.bfloat16),
            (((1,), (0,)), ((), ())),
            preferred_element_type=jnp.float32)

    @pl.when(k == pl.num_programs(1) - 1)
    def _finalize():
        hist_ref[0] = acc_ref[...]
        den_ref[...] = jnp.sum(acc_ref[...]).reshape(1, 1, 1) + eps


def _rgb_uv_hist_raw(x, *, h=H_BINS, sigma=SIGMA, eps=EPS, tile_n=TILE_N):
    """Raw RGB-uv histograms + per-image normalizer.

    x: (B, C>=3, H, W) -> (hist (B, 3, h, h), denom (B, 1, 1)); hist / denom equals
    RGBuvHistBlock(x).
    """
    B, C, Hs, Ws = x.shape
    assert Hs <= INSZ and Ws <= INSZ
    # TODO(synk): bilinear down-resize branch (spatial > insz) not implemented.
    n = Hs * Ws
    inv_sigma = 1.0 / sigma

    # Lane-dense per-pixel features (XLA fuses this into a single pass over x).
    xc = jnp.clip(x[:, :3].reshape(B, 3, n).astype(jnp.float32), 0.0, 1.0)
    iy = jnp.sqrt(jnp.sum(xc * xc, axis=1, keepdims=True) + eps)        # (B, 1, n)
    lx = jnp.log(xc + eps)                                              # (B, 3, n)
    lr, lg, lb = lx[:, 0], lx[:, 1], lx[:, 2]
    u = jnp.stack([lr - lg, lg - lr, lb - lr], axis=1) * inv_sigma      # (B, 3, n)
    v = jnp.stack([lr - lb, lg - lb, lb - lg], axis=1) * inv_sigma      # (B, 3, n)
    row_feat = jnp.concatenate([u, iy], axis=1)                         # (B, 4, n)
    col_feat = jnp.transpose(v, (0, 2, 1))                              # (B, n, 3)

    # Pixel-axis tiling; pad with u=v=iy=0 pixels (iy=0 => zero contribution).
    tile = min(max(256, _round_up(tile_n, 256)), _round_up(n, 256))
    n_pad = _round_up(n, tile)
    if n_pad != n:
        row_feat = jnp.pad(row_feat, ((0, 0), (0, 0), (0, n_pad - n)))
        col_feat = jnp.pad(col_feat, ((0, 0), (0, n_pad - n), (0, 0)))
    grid = (B, n_pad // tile)

    bin_step = (6.0 / (h - 1)) * inv_sigma
    bin_start = -3.0 * inv_sigma

    hists, denom = pl.pallas_call(
        functools.partial(_hist_kernel, h=h, eps=eps,
                          bin_start=bin_start, bin_step=bin_step),
        out_shape=(jax.ShapeDtypeStruct((B, 3, h, h), jnp.float32),
                   jax.ShapeDtypeStruct((B, 1, 1), jnp.float32)),
        grid_spec=pltpu.PrefetchScalarGridSpec(
            num_scalar_prefetch=0,
            grid=grid,
            in_specs=[
                pl.BlockSpec((1, 4, tile), lambda b, k: (b, 0, k)),
                pl.BlockSpec((1, tile, 3), lambda b, k: (b, k, 0)),
            ],
            out_specs=[
                pl.BlockSpec((1, 3, h, h), lambda b, k: (b, 0, 0, 0)),
                pl.BlockSpec((1, 1, 1), lambda b, k: (b, 0, 0)),
            ],
            scratch_shapes=[pltpu.VMEM((3, h, h), jnp.float32)],
        ),
        compiler_params=pltpu.CompilerParams(
            dimension_semantics=("parallel", "arbitrary"),
            vmem_limit_bytes=48 * 1024 * 1024,
        ),
    )(row_feat, col_feat)
    return hists, denom


def rgb_uv_hist(x, *, h=H_BINS, sigma=SIGMA, eps=EPS, tile_n=TILE_N):
    """RGBuvHistBlock forward: normalized (B, 3, h, h) histograms."""
    hists, denom = _rgb_uv_hist_raw(x, h=h, sigma=sigma, eps=eps, tile_n=tile_n)
    return hists / denom[:, :, :, None]


# --------------------------------------------------------------------------
# Kernel 2: fused normalization + Hellinger distance, reduced over batch grid.
# --------------------------------------------------------------------------
def _loss_kernel(p_ref, pd_ref, t_ref, td_ref, out_ref, *, scale):
    b = pl.program_id(0)
    p = p_ref[0]                              # (3, h, h) raw histogram
    t = t_ref[0]
    inv_pd = jax.lax.rsqrt(pd_ref[0])         # (1, 1) = 1/sqrt(sum(p)+eps)
    inv_td = jax.lax.rsqrt(td_ref[0])
    d = jnp.sqrt(t) * inv_td - jnp.sqrt(p) * inv_pd    # sqrt of normalized hists
    part = jnp.sum(d * d)

    @pl.when(b == 0)
    def _init():
        out_ref[...] = jnp.zeros_like(out_ref)

    out_ref[...] = out_ref[...] + part

    @pl.when(b == pl.num_programs(0) - 1)
    def _finalize():
        out_ref[...] = jnp.sqrt(out_ref[...]) * scale


def hist_loss(pred, target, *, h=H_BINS, sigma=SIGMA, eps=EPS, tile_n=TILE_N):
    p_hist, p_den = _rgb_uv_hist_raw(pred, h=h, sigma=sigma, eps=eps, tile_n=tile_n)
    t_hist, t_den = _rgb_uv_hist_raw(target, h=h, sigma=sigma, eps=eps, tile_n=tile_n)
    B = p_hist.shape[0]
    scale = 1.0 / (math.sqrt(2.0) * B)        # 1/sqrt(2) * sqrt(sum) / batch

    out = pl.pallas_call(
        functools.partial(_loss_kernel, scale=scale),
        out_shape=jax.ShapeDtypeStruct((1, 1), jnp.float32),
        grid_spec=pltpu.PrefetchScalarGridSpec(
            num_scalar_prefetch=0,
            grid=(B,),
            in_specs=[
                pl.BlockSpec((1, 3, h, h), lambda b: (b, 0, 0, 0)),
                pl.BlockSpec((1, 1, 1), lambda b: (b, 0, 0)),
                pl.BlockSpec((1, 3, h, h), lambda b: (b, 0, 0, 0)),
                pl.BlockSpec((1, 1, 1), lambda b: (b, 0, 0)),
            ],
            out_specs=pl.BlockSpec((1, 1), lambda b: (0, 0)),
        ),
        compiler_params=pltpu.CompilerParams(
            dimension_semantics=("arbitrary",)),
    )(p_hist, p_den, t_hist, t_den)
    return out[0, 0]


# --------------------------------------------------------------------------
# Pure-JAX reference (mirrors the PyTorch code) for correctness checking.
# --------------------------------------------------------------------------
def hist_loss_reference(pred, target, *, h=H_BINS, sigma=SIGMA, eps=EPS):
    def block(x):
        x = jnp.clip(x.astype(jnp.float32), 0.0, 1.0)
        B = x.shape[0]
        I = jnp.transpose(x.reshape(B, 3, -1), (0, 2, 1))  # (B, N, 3)
        iy = jnp.sqrt(jnp.sum(I * I, axis=-1, keepdims=True) + eps)
        logI = jnp.log(I + eps)
        bins = jnp.linspace(-3.0, 3.0, h, dtype=jnp.float32)
        chans = []
        for c in range(3):
            o1, o2 = [j for j in range(3) if j != c]
            u = logI[:, :, c] - logI[:, :, o1]
            v = logI[:, :, c] - logI[:, :, o2]
            ku = 1.0 / (1.0 + (jnp.abs(u[:, :, None] - bins) ** 2) / sigma ** 2)
            kv = 1.0 / (1.0 + (jnp.abs(v[:, :, None] - bins) ** 2) / sigma ** 2)
            a = iy * ku
            chans.append(jnp.einsum('bnh,bnk->bhk', a, kv,
                                    precision=jax.lax.Precision.HIGHEST))
        hists = jnp.stack(chans, axis=1)
        denom = jnp.sum(hists, axis=(1, 2, 3), keepdims=True) + eps
        return hists / denom

    ph = block(pred)
    th = block(target)
    return (1.0 / math.sqrt(2.0)) * jnp.sqrt(
        jnp.sum((jnp.sqrt(th) - jnp.sqrt(ph)) ** 2)) / ph.shape[0]


if __name__ == "__main__":
    key = jax.random.PRNGKey(0)
    k1, k2 = jax.random.split(key)
    pred = jax.random.uniform(k1, (2, 3, 16, 16), dtype=jnp.float32)
    target = jax.random.uniform(k2, (2, 3, 16, 16), dtype=jnp.float32)

    loss = jax.jit(hist_loss)(pred, target)
    loss = jax.block_until_ready(loss)

    ref = hist_loss_reference(pred, target)
    # bf16 MXU inputs + approx EUP reciprocals trade ~<1% accuracy for speed.
    assert jnp.allclose(loss, ref, rtol=3e-2, atol=1e-4), (float(loss), float(ref))
    print("KERNEL_OK")
</pallas_src>

<mosaic_0001>
module attributes {stable_mosaic.version = 11 : i64} {
  func.func @_hist_kernel(%arg0: i32, %arg1: i32, %arg2: memref<1x4x256xf32, #tpu.memory_space<vmem>>, %arg3: memref<1x256x3xf32, #tpu.memory_space<vmem>>, %arg4: memref<1x3x128x128xf32, #tpu.memory_space<vmem>>, %arg5: memref<1x1x1xf32, #tpu.memory_space<vmem>>, %arg6: memref<3x128x128xf32, #tpu.memory_space<vmem>>) attributes {dimension_semantics = [#tpu.dimension_semantics<parallel>, #tpu.dimension_semantics<arbitrary>], iteration_bounds = array<i64: 2, 1>, scalar_prefetch = 0 : i64, scratch_operands = 1 : i64, tpu.core_type = #tpu.core_type<tc>, window_params = [{transform_indices = @transform_0, window_bounds = array<i64: 1, 4, 256>}, {transform_indices = @transform_1, window_bounds = array<i64: 1, 256, 3>}, {transform_indices = @transform_2, window_bounds = array<i64: 1, 3, 128, 128>}, {transform_indices = @transform_3, window_bounds = array<i64: 1, 1, 1>}]} {
    %c0_i32 = arith.constant 0 : i32
    %0 = arith.cmpi eq, %arg1, %c0_i32 : i32
    %1 = arith.extui %0 : i1 to i32
    %c0_i32_0 = arith.constant 0 : i32
    %2 = arith.cmpi ne, %1, %c0_i32_0 : i32
    scf.if %2 {
      %cst_50 = arith.constant 0.000000e+00 : f32
      %107 = vector.broadcast %cst_50 : f32 to vector<3x128x128xf32>
      %c0_51 = arith.constant 0 : index
      %c0_52 = arith.constant 0 : index
      %c0_53 = arith.constant 0 : index
      %108 = vector.load %arg6[%c0_51, %c0_52, %c0_53] : memref<3x128x128xf32, #tpu.memory_space<vmem>>, vector<3x128x128xf32>
      tpu.vector_store %arg6[%c0_51, %c0_52, %c0_53], %107 {strides = array<i32>} : memref<3x128x128xf32, #tpu.memory_space<vmem>>, vector<3x128x128xf32>,
    } else {
    }
    %3 = tpu.iota {dimensions = array<i32: 0>} : vector<128x1xi32>
    %4 = arith.sitofp %3 : vector<128x1xi32> to vector<128x1xf32>
    %cst = arith.constant 2.36220479 : f32
    %5 = vector.broadcast %cst : f32 to vector<128x1xf32>
    %6 = arith.mulf %4, %5 : vector<128x1xf32>
    %cst_1 = arith.constant -1.500000e+02 : f32
    %7 = vector.broadcast %cst_1 : f32 to vector<128x1xf32>
    %8 = arith.addf %6, %7 : vector<128x1xf32>
    %9 = tpu.iota {dimensions = array<i32: 1>} : vector<1x128xi32>
    %10 = arith.sitofp %9 : vector<1x128xi32> to vector<1x128xf32>
    %cst_2 = arith.constant 2.36220479 : f32
    %11 = vector.broadcast %cst_2 : f32 to vector<1x128xf32>
    %12 = arith.mulf %10, %11 : vector<1x128xf32>
    %cst_3 = arith.constant -1.500000e+02 : f32
    %13 = vector.broadcast %cst_3 : f32 to vector<1x128xf32>
    %14 = arith.addf %12, %13 : vector<1x128xf32>
    %c0 = arith.constant 0 : index
    %c3 = arith.constant 3 : index
    %c0_4 = arith.constant 0 : index
    %15 = vector.load %arg2[%c0, %c3, %c0_4] : memref<1x4x256xf32, #tpu.memory_space<vmem>>, vector<1x1x256xf32>
    %16 = vector.shape_cast %15 : vector<1x1x256xf32> to vector<1x256xf32>
    %c0_5 = arith.constant 0 : index
    %c0_6 = arith.constant 0 : index
    %c0_7 = arith.constant 0 : index
    %17 = vector.load %arg2[%c0_5, %c0_6, %c0_7] : memref<1x4x256xf32, #tpu.memory_space<vmem>>, vector<1x1x256xf32>
    %18 = vector.shape_cast %17 : vector<1x1x256xf32> to vector<1x256xf32>
    %19 = vector.broadcast %18 : vector<1x256xf32> to vector<128x256xf32>
    %20 = vector.broadcast %8 : vector<128x1xf32> to vector<128x256xf32>
    %21 = arith.subf %19, %20 : vector<128x256xf32>
    %22 = arith.mulf %21, %21 : vector<128x256xf32>
    %cst_8 = arith.constant 1.000000e+00 : f32
    %23 = vector.broadcast %cst_8 : f32 to vector<128x256xf32>
    %24 = arith.addf %23, %22 : vector<128x256xf32>
    %25 = tpu.reciprocal %24 {approx = true} : vector<128x256xf32> -> vector<128x256xf32>
    %26 = vector.broadcast %16 : vector<1x256xf32> to vector<128x256xf32>
    %27 = arith.mulf %26, %25 : vector<128x256xf32>
    %c0_9 = arith.constant 0 : index
    %c0_10 = arith.constant 0 : index
    %c0_11 = arith.constant 0 : index
    %28 = vector.load %arg3[%c0_9, %c0_10, %c0_11] : memref<1x256x3xf32, #tpu.memory_space<vmem>>, vector<1x256x1xf32>
    %29 = vector.shape_cast %28 : vector<1x256x1xf32> to vector<256x1xf32>
    %30 = vector.broadcast %29 : vector<256x1xf32> to vector<256x128xf32>
    %31 = vector.broadcast %14 : vector<1x128xf32> to vector<256x128xf32>
    %32 = arith.subf %30, %31 : vector<256x128xf32>
    %33 = arith.mulf %32, %32 : vector<256x128xf32>
    %cst_12 = arith.constant 1.000000e+00 : f32
    %34 = vector.broadcast %cst_12 : f32 to vector<256x128xf32>
    %35 = arith.addf %34, %33 : vector<256x128xf32>
    %36 = tpu.reciprocal %35 {approx = true} : vector<256x128xf32> -> vector<256x128xf32>
    %c0_13 = arith.constant 0 : index
    %c0_14 = arith.constant 0 : index
    %c0_15 = arith.constant 0 : index
    %37 = vector.load %arg6[%c0_13, %c0_14, %c0_15] : memref<3x128x128xf32, #tpu.memory_space<vmem>>, vector<1x128x128xf32>
    %38 = vector.shape_cast %37 : vector<1x128x128xf32> to vector<128x128xf32>
    %39 = arith.truncf %27 : vector<128x256xf32> to vector<128x256xbf16>
    %40 = arith.truncf %36 : vector<256x128xf32> to vector<256x128xbf16>
    %cst_16 = arith.constant dense<0.000000e+00> : vector<128x128xf32>
    %41 = tpu.matmul %39, %40, %cst_16 {dimension_numbers = #tpu.dot_dimension_numbers<[1], [0], [0], [1], [0, 0, 1, 1], [], []>} : vector<128x256xbf16>, vector<256x128xbf16>, vector<128x128xf32> -> vector<128x128xf32>
    %42 = arith.addf %38, %41 : vector<128x128xf32>
    %c0_17 = arith.constant 0 : index
    %c0_18 = arith.constant 0 : index
    %c0_19 = arith.constant 0 : index
    %43 = vector.load %arg6[%c0_17, %c0_18, %c0_19] : memref<3x128x128xf32, #tpu.memory_space<vmem>>, vector<1x128x128xf32>
    %44 = vector.shape_cast %43 : vector<1x128x128xf32> to vector<128x128xf32>
    %45 = vector.shape_cast %42 : vector<128x128xf32> to vector<1x128x128xf32>
    tpu.vector_store %arg6[%c0_17, %c0_18, %c0_19], %45 {strides = array<i32>} : memref<3x128x128xf32, #tpu.memory_space<vmem>>, vector<1x128x128xf32>,
    %c0_20 = arith.constant 0 : index
    %c1 = arith.constant 1 : index
    %c0_21 = arith.constant 0 : index
    %46 = vector.load %arg2[%c0_20, %c1, %c0_21] : memref<1x4x256xf32, #tpu.memory_space<vmem>>, vector<1x1x256xf32>
    %47 = vector.shape_cast %46 : vector<1x1x256xf32> to vector<1x256xf32>
    %48 = vector.broadcast %47 : vector<1x256xf32> to vector<128x256xf32>
    %49 = vector.broadcast %8 : vector<128x1xf32> to vector<128x256xf32>
    %50 = arith.subf %48, %49 : vector<128x256xf32>
    %51 = arith.mulf %50, %50 : vector<128x256xf32>
    %cst_22 = arith.constant 1.000000e+00 : f32
    %52 = vector.broadcast %cst_22 : f32 to vector<128x256xf32>
    %53 = arith.addf %52, %51 : vector<128x256xf32>
    %54 = tpu.reciprocal %53 {approx = true} : vector<128x256xf32> -> vector<128x256xf32>
    %55 = vector.broadcast %16 : vector<1x256xf32> to vector<128x256xf32>
    %56 = arith.mulf %55, %54 : vector<128x256xf32>
    %c0_23 = arith.constant 0 : index
    %c0_24 = arith.constant 0 : index
    %c1_25 = arith.constant 1 : index
    %57 = vector.load %arg3[%c0_23, %c0_24, %c1_25] : memref<1x256x3xf32, #tpu.memory_space<vmem>>, vector<1x256x1xf32>
    %58 = vector.shape_cast %57 : vector<1x256x1xf32> to vector<256x1xf32>
    %59 = vector.broadcast %58 : vector<256x1xf32> to vector<256x128xf32>
    %60 = vector.broadcast %14 : vector<1x128xf32> to vector<256x128xf32>
    %61 = arith.subf %59, %60 : vector<256x128xf32>
    %62 = arith.mulf %61, %61 : vector<256x128xf32>
    %cst_26 = arith.constant 1.000000e+00 : f32
    %63 = vector.broadcast %cst_26 : f32 to vector<256x128xf32>
    %64 = arith.addf %63, %62 : vector<256x128xf32>
    %65 = tpu.reciprocal %64 {approx = true} : vector<256x128xf32> -> vector<256x128xf32>
    %c1_27 = arith.constant 1 : index
    %c0_28 = arith.constant 0 : index
    %c0_29 = arith.constant 0 : index
    %66 = vector.load %arg6[%c1_27, %c0_28, %c0_29] : memref<3x128x128xf32, #tpu.memory_space<vmem>>, vector<1x128x128xf32>
    %67 = vector.shape_cast %66 : vector<1x128x128xf32> to vector<128x128xf32>
    %68 = arith.truncf %56 : vector<128x256xf32> to vector<128x256xbf16>
    %69 = arith.truncf %65 : vector<256x128xf32> to vector<256x128xbf16>
    %cst_30 = arith.constant dense<0.000000e+00> : vector<128x128xf32>
    %70 = tpu.matmul %68, %69, %cst_30 {dimension_numbers = #tpu.dot_dimension_numbers<[1], [0], [0], [1], [0, 0, 1, 1], [], []>} : vector<128x256xbf16>, vector<256x128xbf16>, vector<128x128xf32> -> vector<128x128xf32>
    %71 = arith.addf %67, %70 : vector<128x128xf32>
    %c1_31 = arith.constant 1 : index
    %c0_32 = arith.constant 0 : index
    %c0_33 = arith.constant 0 : index
    %72 = vector.load %arg6[%c1_31, %c0_32, %c0_33] : memref<3x128x128xf32, #tpu.memory_space<vmem>>, vector<1x128x128xf32>
    %73 = vector.shape_cast %72 : vector<1x128x128xf32> to vector<128x128xf32>
    %74 = vector.shape_cast %71 : vector<128x128xf32> to vector<1x128x128xf32>
    tpu.vector_store %arg6[%c1_31, %c0_32, %c0_33], %74 {strides = array<i32>} : memref<3x128x128xf32, #tpu.memory_space<vmem>>, vector<1x128x128xf32>,
    %c0_34 = arith.constant 0 : index
    %c2 = arith.constant 2 : index
    %c0_35 = arith.constant 0 : index
    %75 = vector.load %arg2[%c0_34, %c2, %c0_35] : memref<1x4x256xf32, #tpu.memory_space<vmem>>, vector<1x1x256xf32>
    %76 = vector.shape_cast %75 : vector<1x1x256xf32> to vector<1x256xf32>
    %77 = vector.broadcast %76 : vector<1x256xf32> to vector<128x256xf32>
    %78 = vector.broadcast %8 : vector<128x1xf32> to vector<128x256xf32>
    %79 = arith.subf %77, %78 : vector<128x256xf32>
    %80 = arith.mulf %79, %79 : vector<128x256xf32>
    %cst_36 = arith.constant 1.000000e+00 : f32
    %81 = vector.broadcast %cst_36 : f32 to vector<128x256xf32>
    %82 = arith.addf %81, %80 : vector<128x256xf32>
    %83 = tpu.reciprocal %82 {approx = true} : vector<128x256xf32> -> vector<128x256xf32>
    %84 = vector.broadcast %16 : vector<1x256xf32> to vector<128x256xf32>
    %85 = arith.mulf %84, %83 : vector<128x256xf32>
    %c0_37 = arith.constant 0 : index
    %c0_38 = arith.constant 0 : index
    %c2_39 = arith.constant 2 : index
    %86 = vector.load %arg3[%c0_37, %c0_38, %c2_39] : memref<1x256x3xf32, #tpu.memory_space<vmem>>, vector<1x256x1xf32>
    %87 = vector.shape_cast %86 : vector<1x256x1xf32> to vector<256x1xf32>
    %88 = vector.broadcast %87 : vector<256x1xf32> to vector<256x128xf32>
    %89 = vector.broadcast %14 : vector<1x128xf32> to vector<256x128xf32>
    %90 = arith.subf %88, %89 : vector<256x128xf32>
    %91 = arith.mulf %90, %90 : vector<256x128xf32>
    %cst_40 = arith.constant 1.000000e+00 : f32
    %92 = vector.broadcast %cst_40 : f32 to vector<256x128xf32>
    %93 = arith.addf %92, %91 : vector<256x128xf32>
    %94 = tpu.reciprocal %93 {approx = true} : vector<256x128xf32> -> vector<256x128xf32>
    %c2_41 = arith.constant 2 : index
    %c0_42 = arith.constant 0 : index
    %c0_43 = arith.constant 0 : index
    %95 = vector.load %arg6[%c2_41, %c0_42, %c0_43] : memref<3x128x128xf32, #tpu.memory_space<vmem>>, vector<1x128x128xf32>
    %96 = vector.shape_cast %95 : vector<1x128x128xf32> to vector<128x128xf32>
    %97 = arith.truncf %85 : vector<128x256xf32> to vector<128x256xbf16>
    %98 = arith.truncf %94 : vector<256x128xf32> to vector<256x128xbf16>
    %cst_44 = arith.constant dense<0.000000e+00> : vector<128x128xf32>
    %99 = tpu.matmul %97, %98, %cst_44 {dimension_numbers = #tpu.dot_dimension_numbers<[1], [0], [0], [1], [0, 0, 1, 1], [], []>} : vector<128x256xbf16>, vector<256x128xbf16>, vector<128x128xf32> -> vector<128x128xf32>
    %100 = arith.addf %96, %99 : vector<128x128xf32>
    %c2_45 = arith.constant 2 : index
    %c0_46 = arith.constant 0 : index
    %c0_47 = arith.constant 0 : index
    %101 = vector.load %arg6[%c2_45, %c0_46, %c0_47] : memref<3x128x128xf32, #tpu.memory_space<vmem>>, vector<1x128x128xf32>
    %102 = vector.shape_cast %101 : vector<1x128x128xf32> to vector<128x128xf32>
    %103 = vector.shape_cast %100 : vector<128x128xf32> to vector<1x128x128xf32>
    tpu.vector_store %arg6[%c2_45, %c0_46, %c0_47], %103 {strides = array<i32>} : memref<3x128x128xf32, #tpu.memory_space<vmem>>, vector<1x128x128xf32>,
    %c0_i32_48 = arith.constant 0 : i32
    %104 = arith.cmpi eq, %arg1, %c0_i32_48 : i32
    %105 = arith.extui %104 : i1 to i32
    %c0_i32_49 = arith.constant 0 : i32
    %106 = arith.cmpi ne, %105, %c0_i32_49 : i32
    scf.if %106 {
      %c0_50 = arith.constant 0 : index
      %c0_51 = arith.constant 0 : index
      %c0_52 = arith.constant 0 : index
      %107 = vector.load %arg6[%c0_50, %c0_51, %c0_52] : memref<3x128x128xf32, #tpu.memory_space<vmem>>, vector<3x128x128xf32>
      %c0_53 = arith.constant 0 : index
      %c0_54 = arith.constant 0 : index
      %c0_55 = arith.constant 0 : index
      %c0_56 = arith.constant 0 : index
      %108 = vector.load %arg4[%c0_53, %c0_54, %c0_55, %c0_56] : memref<1x3x128x128xf32, #tpu.memory_space<vmem>>, vector<1x3x128x128xf32>
      %109 = vector.shape_cast %108 : vector<1x3x128x128xf32> to vector<3x128x128xf32>
      %110 = vector.shape_cast %107 : vector<3x128x128xf32> to vector<1x3x128x128xf32>
      tpu.vector_store %arg4[%c0_53, %c0_54, %c0_55, %c0_56], %110 {strides = array<i32>} : memref<1x3x128x128xf32, #tpu.memory_space<vmem>>, vector<1x3x128x128xf32>,
      %c0_57 = arith.constant 0 : index
      %c0_58 = arith.constant 0 : index
      %c0_59 = arith.constant 0 : index
      %111 = vector.load %arg6[%c0_57, %c0_58, %c0_59] : memref<3x128x128xf32, #tpu.memory_space<vmem>>, vector<3x128x128xf32>
      %112 = vector.shape_cast %111 : vector<3x128x128xf32> to vector<1x3x128x128xf32>
      %cst_60 = arith.constant dense<0.000000e+00> : vector<1xf32>
      %113 = vector.multi_reduction <add>, %112, %cst_60 [1, 2, 3] : vector<1x3x128x128xf32> to vector<1xf32>
      %114 = vector.shape_cast %113 : vector<1xf32> to vector<1x1x1x1xf32>
      %115 = vector.extract %114[0, 0, 0, 0] : f32 from vector<1x1x1x1xf32>
      %116 = vector.broadcast %115 : f32 to vector<1x1x1xf32>
      %cst_61 = arith.constant 9.99999997E-7 : f32
      %117 = vector.broadcast %cst_61 : f32 to vector<1x1x1xf32>
      %118 = arith.addf %116, %117 : vector<1x1x1xf32>
      %c0_62 = arith.constant 0 : index
      %c0_63 = arith.constant 0 : index
      %c0_64 = arith.constant 0 : index
      %119 = vector.load %arg5[%c0_62, %c0_63, %c0_64] : memref<1x1x1xf32, #tpu.memory_space<vmem>>, vector<1x1x1xf32>
      tpu.vector_store %arg5[%c0_62, %c0_63, %c0_64], %118 {strides = array<i32>} : memref<1x1x1xf32, #tpu.memory_space<vmem>>, vector<1x1x1xf32>,
    } else {
    }
    return
  }
  func.func @transform_0(%arg0: i32, %arg1: i32) -> (i32, i32, i32) {
    %c0_i32 = arith.constant 0 : i32
    %c0_i32_0 = arith.constant 0 : i32
    return %arg0, %c0_i32, %arg1 : i32, i32, i32
  }
  func.func @transform_1(%arg0: i32, %arg1: i32) -> (i32, i32, i32) {
    %c0_i32 = arith.constant 0 : i32
    %c0_i32_0 = arith.constant 0 : i32
    return %arg0, %arg1, %c0_i32 : i32, i32, i32
  }
  func.func @transform_2(%arg0: i32, %arg1: i32) -> (i32, i32, i32, i32) {
    %c0_i32 = arith.constant 0 : i32
    %c0_i32_0 = arith.constant 0 : i32
    %c0_i32_1 = arith.constant 0 : i32
    %c0_i32_2 = arith.constant 0 : i32
    return %arg0, %c0_i32, %c0_i32_0, %c0_i32_1 : i32, i32, i32, i32
  }
  func.func @transform_3(%arg0: i32, %arg1: i32) -> (i32, i32, i32) {
    %c0_i32 = arith.constant 0 : i32
    %c0_i32_0 = arith.constant 0 : i32
    %c0_i32_1 = arith.constant 0 : i32
    return %arg0, %c0_i32, %c0_i32_0 : i32, i32, i32
  }
}

module attributes {stable_mosaic.version = 11 : i64} {
  func.func @_loss_kernel(%arg0: i32, %arg1: memref<1x3x128x128xf32, #tpu.memory_space<vmem>>, %arg2: memref<1x1x1xf32, #tpu.memory_space<vmem>>, %arg3: memref<1x3x128x128xf32, #tpu.memory_space<vmem>>, %arg4: memref<1x1x1xf32, #tpu.memory_space<vmem>>, %arg5: memref<1x1xf32, #tpu.memory_space<vmem>>) attributes {dimension_semantics = [#tpu.dimension_semantics<arbitrary>], iteration_bounds = array<i64: 2>, scalar_prefetch = 0 : i64, scratch_operands = 0 : i64, tpu.core_type = #tpu.core_type<tc>, window_params = [{transform_indices = @transform_0, window_bounds = array<i64: 1, 3, 128, 128>}, {transform_indices = @transform_1, window_bounds = array<i64: 1, 1, 1>}, {transform_indices = @transform_2, window_bounds = array<i64: 1, 3, 128, 128>}, {transform_indices = @transform_3, window_bounds = array<i64: 1, 1, 1>}, {pipeline_mode = #tpu.pipeline_mode<synchronous>, transform_indices = @transform_4, window_bounds = array<i64: 1, 1>}]} {
    %c0 = arith.constant 0 : index
    %c0_0 = arith.constant 0 : index
    %c0_1 = arith.constant 0 : index
    %c0_2 = arith.constant 0 : index
    %0 = vector.load %arg1[%c0, %c0_0, %c0_1, %c0_2] : memref<1x3x128x128xf32, #tpu.memory_space<vmem>>, vector<1x3x128x128xf32>
    %1 = vector.shape_cast %0 : vector<1x3x128x128xf32> to vector<3x128x128xf32>
    %c0_3 = arith.constant 0 : index
    %c0_4 = arith.constant 0 : index
    %c0_5 = arith.constant 0 : index
    %c0_6 = arith.constant 0 : index
    %2 = vector.load %arg3[%c0_3, %c0_4, %c0_5, %c0_6] : memref<1x3x128x128xf32, #tpu.memory_space<vmem>>, vector<1x3x128x128xf32>
    %3 = vector.shape_cast %2 : vector<1x3x128x128xf32> to vector<3x128x128xf32>
    %c0_7 = arith.constant 0 : index
    %c0_8 = arith.constant 0 : index
    %c0_9 = arith.constant 0 : index
    %4 = vector.load %arg2[%c0_7, %c0_8, %c0_9] : memref<1x1x1xf32, #tpu.memory_space<vmem>>, vector<1x1x1xf32>
    %5 = vector.shape_cast %4 : vector<1x1x1xf32> to vector<1x1xf32>
    %6 = math.rsqrt %5 : vector<1x1xf32>
    %c0_10 = arith.constant 0 : index
    %c0_11 = arith.constant 0 : index
    %c0_12 = arith.constant 0 : index
    %7 = vector.load %arg4[%c0_10, %c0_11, %c0_12] : memref<1x1x1xf32, #tpu.memory_space<vmem>>, vector<1x1x1xf32>
    %8 = vector.shape_cast %7 : vector<1x1x1xf32> to vector<1x1xf32>
    %9 = math.rsqrt %8 : vector<1x1xf32>
    %10 = math.sqrt %3 : vector<3x128x128xf32>
    %11 = vector.shape_cast %9 : vector<1x1xf32> to vector<1x1x1xf32>
    %12 = vector.broadcast %11 : vector<1x1x1xf32> to vector<3x128x128xf32>
    %13 = arith.mulf %10, %12 : vector<3x128x128xf32>
    %14 = math.sqrt %1 : vector<3x128x128xf32>
    %15 = vector.shape_cast %6 : vector<1x1xf32> to vector<1x1x1xf32>
    %16 = vector.broadcast %15 : vector<1x1x1xf32> to vector<3x128x128xf32>
    %17 = arith.mulf %14, %16 : vector<3x128x128xf32>
    %18 = arith.subf %13, %17 : vector<3x128x128xf32>
    %19 = arith.mulf %18, %18 : vector<3x128x128xf32>
    %20 = vector.shape_cast %19 : vector<3x128x128xf32> to vector<1x3x128x128xf32>
    %cst = arith.constant dense<0.000000e+00> : vector<1xf32>
    %21 = vector.multi_reduction <add>, %20, %cst [1, 2, 3] : vector<1x3x128x128xf32> to vector<1xf32>
    %22 = vector.shape_cast %21 : vector<1xf32> to vector<1x1x1x1xf32>
    %23 = vector.extract %22[0, 0, 0, 0] : f32 from vector<1x1x1x1xf32>
    %c0_i32 = arith.constant 0 : i32
    %24 = arith.cmpi eq, %arg0, %c0_i32 : i32
    %25 = arith.extui %24 : i1 to i32
    %c0_i32_13 = arith.constant 0 : i32
    %26 = arith.cmpi ne, %25, %c0_i32_13 : i32
    scf.if %26 {
      %cst_19 = arith.constant 0.000000e+00 : f32
      %34 = vector.broadcast %cst_19 : f32 to vector<1x1xf32>
      %c0_20 = arith.constant 0 : index
      %c0_21 = arith.constant 0 : index
      %35 = vector.load %arg5[%c0_20, %c0_21] : memref<1x1xf32, #tpu.memory_space<vmem>>, vector<1x1xf32>
      tpu.vector_store %arg5[%c0_20, %c0_21], %34 {strides = array<i32>} : memref<1x1xf32, #tpu.memory_space<vmem>>, vector<1x1xf32>,
    } else {
    }
    %c0_14 = arith.constant 0 : index
    %c0_15 = arith.constant 0 : index
    %27 = vector.load %arg5[%c0_14, %c0_15] : memref<1x1xf32, #tpu.memory_space<vmem>>, vector<1x1xf32>
    %28 = vector.broadcast %23 : f32 to vector<1x1xf32>
    %29 = arith.addf %27, %28 : vector<1x1xf32>
    %c0_16 = arith.constant 0 : index
    %c0_17 = arith.constant 0 : index
    %30 = vector.load %arg5[%c0_16, %c0_17] : memref<1x1xf32, #tpu.memory_space<vmem>>, vector<1x1xf32>
    tpu.vector_store %arg5[%c0_16, %c0_17], %29 {strides = array<i32>} : memref<1x1xf32, #tpu.memory_space<vmem>>, vector<1x1xf32>,
    %c1_i32 = arith.constant 1 : i32
    %31 = arith.cmpi eq, %arg0, %c1_i32 : i32
    %32 = arith.extui %31 : i1 to i32
    %c0_i32_18 = arith.constant 0 : i32
    %33 = arith.cmpi ne, %32, %c0_i32_18 : i32
    scf.if %33 {
      %c0_19 = arith.constant 0 : index
      %c0_20 = arith.constant 0 : index
      %34 = vector.load %arg5[%c0_19, %c0_20] : memref<1x1xf32, #tpu.memory_space<vmem>>, vector<1x1xf32>
      %35 = math.sqrt %34 : vector<1x1xf32>
      %cst_21 = arith.constant 0.353553385 : f32
      %36 = vector.broadcast %cst_21 : f32 to vector<1x1xf32>
      %37 = arith.mulf %35, %36 : vector<1x1xf32>
      %c0_22 = arith.constant 0 : index
      %c0_23 = arith.constant 0 : index
      %38 = vector.load %arg5[%c0_22, %c0_23] : memref<1x1xf32, #tpu.memory_space<vmem>>, vector<1x1xf32>
      tpu.vector_store %arg5[%c0_22, %c0_23], %37 {strides = array<i32>} : memref<1x1xf32, #tpu.memory_space<vmem>>, vector<1x1xf32>,
    } else {
    }
    return
  }
  func.func @transform_0(%arg0: i32) -> (i32, i32, i32, i32) {
    %c0_i32 = arith.constant 0 : i32
    %c0_i32_0 = arith.constant 0 : i32
    %c0_i32_1 = arith.constant 0 : i32
    %c0_i32_2 = arith.constant 0 : i32
    return %arg0, %c0_i32, %c0_i32_0, %c0_i32_1 : i32, i32, i32, i32
  }
  func.func @transform_1(%arg0: i32) -> (i32, i32, i32) {
    %c0_i32 = arith.constant 0 : i32
    %c0_i32_0 = arith.constant 0 : i32
    %c0_i32_1 = arith.constant 0 : i32
    return %arg0, %c0_i32, %c0_i32_0 : i32, i32, i32
  }
  func.func @transform_2(%arg0: i32) -> (i32, i32, i32, i32) {
    %c0_i32 = arith.constant 0 : i32
    %c0_i32_0 = arith.constant 0 : i32
    %c0_i32_1 = arith.constant 0 : i32
    %c0_i32_2 = arith.constant 0 : i32
    return %arg0, %c0_i32, %c0_i32_0, %c0_i32_1 : i32, i32, i32, i32
  }
  func.func @transform_3(%arg0: i32) -> (i32, i32, i32) {
    %c0_i32 = arith.constant 0 : i32
    %c0_i32_0 = arith.constant 0 : i32
    %c0_i32_1 = arith.constant 0 : i32
    return %arg0, %c0_i32, %c0_i32_0 : i32, i32, i32
  }
  func.func @transform_4(%arg0: i32) -> (i32, i32) {
    %c0_i32 = arith.constant 0 : i32
    %c0_i32_0 = arith.constant 0 : i32
    %c0_i32_1 = arith.constant 0 : i32
    return %c0_i32, %c0_i32_0 : i32, i32
  }
}

</mosaic_0001>

<llo_original>
// kernel: hist_loss.5
$region0: #{hist_loss.5}
  #allocation0 [shape = 'u32[]', space=smem, size = 0x4, offset = 0x4, fixed_abs, tag = 'smem constant byte address 0x4 - core index']
  #allocation1 [shape = 'u32[144,128]{1,0:T(1,128)}', space=vmem, size = 0x12000, scoped, tag = 'internal scratch']
  %s0 = inlined_call_operand.vmem [shape: f32[2,3,128,128], index: 0, kind: input, shape index: {}]
  %s1 = inlined_call_operand.vmem [shape: f32[2,1,1], index: 1, kind: input, shape index: {}]
  %s2 = inlined_call_operand.vmem [shape: f32[2,3,128,128], index: 2, kind: input, shape index: {}]
  %s3 = inlined_call_operand.vmem [shape: f32[2,1,1], index: 3, kind: input, shape index: {}]
  %s4 = inlined_call_operand.hbm [shape: f32[1,1], index: 4, kind: output, shape index: {}]
  %s5 = sld [smem:[#allocation0]]
  $region57: #{hist_loss.5} parent=0
    _
  %s7 = ssub.s32 1, %s5
  %s8 = scalar_select 0, %s7, %s5
  $region1: #{hist_loss.5} parent=0
    #allocation2 [shape = 'u8[512]{0}', space=vmem, size = 0x400, scoped, tag = 'output window, operand 0, single buffered']
    #allocation3 [shape = 's32[2]{0}', space=sflag, size = 0x8, scoped, tag = 'scoped memory for hist_loss.5']
    %9 = vsyncpa [#allocation3], 0
    loop: start=0, step=1, limit=4
    $region2: #{hist_loss.5} parent=1 // loop_pre_header
      _
    $region3: #{hist_loss.5} parent=1 // loop_header
      %s11 = sphi 0, %s15
      %p12 = scmp.ge.s32.totalorder %s11, 4
      %s21 = sphi 0, %s23
      %s24 = sphi 0, %s21
      %s25 = sphi 0, %s24
      %s41 = sphi 0, %s25
      %s47 = sphi 0, %s49
      %s50 = sphi 0, %s47
      %s51 = sphi 0, %s50
      %s67 = sphi 0, %s51
      %s73 = sphi 0, %s75
      %s76 = sphi 0, %s73
      %s77 = sphi 0, %s76
      %s93 = sphi 0, %s77
      %s99 = sphi 0, %s101
      %s102 = sphi 0, %s99
      %s103 = sphi 0, %s102
      %s119 = sphi 0, %s103
      %s123 = sphi 0, %s123
      %s125 = sphi 0, %s123
      %s126 = sphi 0, %s125
      %s140 = sphi 0, %s126
    $region4: #{hist_loss.5} parent=1 // loop_header_branch
      %14 = sbr.rel (%p12) target = $region8
    $region5: #{hist_loss.5} parent=1 // loop_body
      %s16 = ssub.s32 %s11, 1
      %s17 = ssub.s32 %s11, 2
      %s18 = sadd.s32 %s11, 1
      %s19 = ssub.s32 %s11, %s18
      %p20 = scmp.eq.s32.totalorder %s19, 0
      %s22 = sadd.s32 %s21, 1
      %s23 = scalar_select %p20, %s21, %s22
      %p26 = pneg %p20
      %p27 = scmp.eq.s32.totalorder %s11, 1
      %p28 = por %p26, %p27
      %p29 = scmp.ne.s32.totalorder %s21, %s24
      %p30 = scmp.eq.s32.totalorder %s11, 0
      %p31 = por %p29, %p30
      %p32 = scmp.ne.s32.totalorder %s21, %s24
      %p33 = scmp.eq.s32.totalorder %s16, 1
      %p34 = por %p32, %p33
      %p35 = scmp.ne.s32.totalorder %s24, %s25
      %p36 = scmp.eq.s32.totalorder %s16, 0
      %p37 = por %p35, %p36
      %p38 = scmp.ne.s32.totalorder %s24, %s25
      %p39 = scmp.eq.s32.totalorder %s17, 1
      %p40 = por %p38, %p39
      %p42 = scmp.ne.s32.totalorder %s25, %s41
      %p43 = scmp.eq.s32.totalorder %s17, 0
      %p44 = por %p42, %p43
      %s45 = ssub.s32 %s11, %s18
      %p46 = scmp.eq.s32.totalorder %s45, 0
      %s48 = sadd.s32 %s47, 1
      %s49 = scalar_select %p46, %s47, %s48
      %p52 = pneg %p46
      %p53 = scmp.eq.s32.totalorder %s11, 1
      %p54 = por %p52, %p53
      %p55 = scmp.ne.s32.totalorder %s47, %s50
      %p56 = scmp.eq.s32.totalorder %s11, 0
      %p57 = por %p55, %p56
      %p58 = scmp.ne.s32.totalorder %s47, %s50
      %p59 = scmp.eq.s32.totalorder %s16, 1
      %p60 = por %p58, %p59
      %p61 = scmp.ne.s32.totalorder %s50, %s51
      %p62 = scmp.eq.s32.totalorder %s16, 0
      %p63 = por %p61, %p62
      %p64 = scmp.ne.s32.totalorder %s50, %s51
      %p65 = scmp.eq.s32.totalorder %s17, 1
      %p66 = por %p64, %p65
      %p68 = scmp.ne.s32.totalorder %s51, %s67
      %p69 = scmp.eq.s32.totalorder %s17, 0
      %p70 = por %p68, %p69
      %s71 = ssub.s32 %s11, %s18
      %p72 = scmp.eq.s32.totalorder %s71, 0
      %s74 = sadd.s32 %s73, 1
      %s75 = scalar_select %p72, %s73, %s74
      %p78 = pneg %p72
      %p79 = scmp.eq.s32.totalorder %s11, 1
      %p80 = por %p78, %p79
      %p81 = scmp.ne.s32.totalorder %s73, %s76
      %p82 = scmp.eq.s32.totalorder %s11, 0
      %p83 = por %p81, %p82
      %p84 = scmp.ne.s32.totalorder %s73, %s76
      %p85 = scmp.eq.s32.totalorder %s16, 1
      %p86 = por %p84, %p85
      %p87 = scmp.ne.s32.totalorder %s76, %s77
      %p88 = scmp.eq.s32.totalorder %s16, 0
      %p89 = por %p87, %p88
      %p90 = scmp.ne.s32.totalorder %s76, %s77
      %p91 = scmp.eq.s32.totalorder %s17, 1
      %p92 = por %p90, %p91
      %p94 = scmp.ne.s32.totalorder %s77, %s93
      %p95 = scmp.eq.s32.totalorder %s17, 0
      %p96 = por %p94, %p95
      %s97 = ssub.s32 %s11, %s18
      %p98 = scmp.eq.s32.totalorder %s97, 0
      %s100 = sadd.s32 %s99, 1
      %s101 = scalar_select %p98, %s99, %s100
      %p104 = pneg %p98
      %p105 = scmp.eq.s32.totalorder %s11, 1
      %p106 = por %p104, %p105
      %p107 = scmp.ne.s32.totalorder %s99, %s102
      %p108 = scmp.eq.s32.totalorder %s11, 0
      %p109 = por %p107, %p108
      %p110 = scmp.ne.s32.totalorder %s99, %s102
      %p111 = scmp.eq.s32.totalorder %s16, 1
      %p112 = por %p110, %p111
      %p113 = scmp.ne.s32.totalorder %s102, %s103
      %p114 = scmp.eq.s32.totalorder %s16, 0
      %p115 = por %p113, %p114
      %p116 = scmp.ne.s32.totalorder %s102, %s103
      %p117 = scmp.eq.s32.totalorder %s17, 1
      %p118 = por %p116, %p117
      %p120 = scmp.ne.s32.totalorder %s103, %s119
      %p121 = scmp.eq.s32.totalorder %s17, 0
      %p122 = por %p120, %p121
      %s124 = sadd.s32 %s123, 1
      %p127 = scmp.eq.s32.totalorder %s11, 1
      %p128 = scmp.ne.s32.totalorder %s123, %s125
      %p129 = scmp.eq.s32.totalorder %s11, 0
      %p130 = por %p128, %p129
      %p131 = scmp.ne.s32.totalorder %s123, %s125
      %p132 = scmp.eq.s32.totalorder %s16, 1
      %p133 = por %p131, %p132
      %p134 = scmp.ne.s32.totalorder %s125, %s126
      %p135 = scmp.eq.s32.totalorder %s16, 0
      %p136 = por %p134, %p135
      %p137 = scmp.ne.s32.totalorder %s125, %s126
      %p138 = scmp.eq.s32.totalorder %s17, 1
      %p139 = por %p137, %p138
      %p141 = scmp.ne.s32.totalorder %s126, %s140
      %p142 = scmp.eq.s32.totalorder %s17, 0
      %p143 = por %p141, %p142
      %p144 = scmp.le.s32.totalorder 1, %s11
      %p145 = scmp.lt.s32.totalorder %s11, 3
      %p146 = pnand %p144, %p145
      %p147 = pneg %p146
      // Predicated region
      $region9: #{hist_loss.5} parent=5 // pred_check
        _
      $region10: #{hist_loss.5} parent=5 // pred_check_branch
        %149 = sbr.rel (%p146) target = $region12
      $region11: #{hist_loss.5} parent=5 // pred_region
        %s150 = ssub.s32 %s11, 1
      $region12: #{hist_loss.5} parent=5 // pred_fallthru
        _
      %p151 = scmp.lt.s32.totalorder %s11, 2
      // Predicated region
      $region13: #{hist_loss.5} parent=5 // pred_check
        %p152 = pneg %p151
      $region14: #{hist_loss.5} parent=5 // pred_check_branch
        %154 = sbr.rel (%p152) target = $region16
      $region15: #{hist_loss.5} parent=5 // pred_region
        // Predicated region
        $region17: #{hist_loss.5} parent=15 // pred_check
          %p155 = pneg %p31
        $region18: #{hist_loss.5} parent=15 // pred_check_branch
          %157 = sbr.rel (%p155) target = $region20
        $region19: #{hist_loss.5} parent=15 // pred_region
          %p158 = scmp.lt.s32.totalorder %s11, 1
          %s159 = scalar_select %p158, %s11, 1
          %s160 = smul.addr %s159, 48
          %s161 = smul.addr %s160, 8
          %s162 = scalar_lea.vmem %s0, %s161
        $region20: #{hist_loss.5} parent=15 // pred_fallthru
          _
        // Predicated region
        $region21: #{hist_loss.5} parent=15 // pred_check
          %p163 = pneg %p57
        $region22: #{hist_loss.5} parent=15 // pred_check_branch
          %165 = sbr.rel (%p163) target = $region24
        $region23: #{hist_loss.5} parent=15 // pred_region
          %p166 = scmp.lt.s32.totalorder %s11, 1
          %s167 = scalar_select %p166, %s11, 1
          %s168 = scalar_lea.vmem %s1, %s167
        $region24: #{hist_loss.5} parent=15 // pred_fallthru
          _
        // Predicated region
        $region25: #{hist_loss.5} parent=15 // pred_check
          %p169 = pneg %p83
        $region26: #{hist_loss.5} parent=15 // pred_check_branch
          %171 = sbr.rel (%p169) target = $region28
        $region27: #{hist_loss.5} parent=15 // pred_region
          %p172 = scmp.lt.s32.totalorder %s11, 1
          %s173 = scalar_select %p172, %s11, 1
          %s174 = smul.addr %s173, 48
          %s175 = smul.addr %s174, 8
          %s176 = scalar_lea.vmem %s2, %s175
        $region28: #{hist_loss.5} parent=15 // pred_fallthru
          _
        // Predicated region
        $region29: #{hist_loss.5} parent=15 // pred_check
          %p177 = pneg %p109
        $region30: #{hist_loss.5} parent=15 // pred_check_branch
          %179 = sbr.rel (%p177) target = $region32
        $region31: #{hist_loss.5} parent=15 // pred_region
          %p180 = scmp.lt.s32.totalorder %s11, 1
          %s181 = scalar_select %p180, %s11, 1
          %s182 = scalar_lea.vmem %s3, %s181
        $region32: #{hist_loss.5} parent=15 // pred_fallthru
          _
      $region16: #{hist_loss.5} parent=5 // pred_fallthru
        _
      %p183 = scmp.le.s32.totalorder 1, %s11
      %p184 = scmp.lt.s32.totalorder %s11, 3
      %p185 = pnand %p183, %p184
      %p186 = pneg %p185
      // Predicated region
      $region33: #{hist_loss.5} parent=5 // pred_check
        _
      $region34: #{hist_loss.5} parent=5 // pred_check_branch
        %188 = sbr.rel (%p185) target = $region36
      $region35: #{hist_loss.5} parent=5 // pred_region
        %s189 = ssub.s32 %s11, 1
        %p190 = scmp.lt.s32.totalorder %s16, 1
        %s191 = scalar_select %p190, %s16, 1
        %s192 = smul.addr %s191, 48
        %s193 = smul.addr %s192, 8
        %s194 = scalar_lea.vmem %s0, %s193
        %p195 = pneg %p37
        %p196 = pneg %p34
        %p197 = scmp.lt.s32.totalorder %s16, 1
        %s198 = scalar_select %p197, %s16, 1
        %s199 = scalar_lea.vmem %s1, %s198
        %p200 = pneg %p63
        %p201 = pneg %p60
        %p202 = scmp.lt.s32.totalorder %s16, 1
        %s203 = scalar_select %p202, %s16, 1
        %s204 = smul.addr %s203, 48
        %s205 = smul.addr %s204, 8
        %s206 = scalar_lea.vmem %s2, %s205
        %p207 = pneg %p89
        %p208 = pneg %p86
        %p209 = scmp.lt.s32.totalorder %s16, 1
        %s210 = scalar_select %p209, %s16, 1
        %s211 = scalar_lea.vmem %s3, %s210
        %p212 = pneg %p115
        %p213 = pneg %p112
        %p214 = pneg %p136
        %p215 = pneg %p133
        %p216 = scmp.lt.s32.totalorder %s16, 1
        %s217 = scalar_select %p216, %s16, 1
        %s218 = smul.addr %s217, 48
        %s219 = smul.addr %s218, 8
        %s220 = scalar_lea.vmem %s0, %s219
        %p221 = scmp.lt.s32.totalorder %s16, 1
        %s222 = scalar_select %p221, %s16, 1
        %s223 = scalar_lea.vmem %s1, %s222
        %p224 = scmp.lt.s32.totalorder %s16, 1
        %s225 = scalar_select %p224, %s16, 1
        %s226 = smul.addr %s225, 48
        %s227 = smul.addr %s226, 8
        %s228 = scalar_lea.vmem %s2, %s227
        %p229 = scmp.lt.s32.totalorder %s16, 1
        %s230 = scalar_select %p229, %s16, 1
        %s231 = scalar_lea.vmem %s3, %s230
        %v232 = vld [vmem:[%s220] sm:$0xff]
        %v233 = vld [vmem:[%s220 + $0x8] sm:$0xff]
        %v234 = vld [vmem:[%s220 + $0x10] sm:$0xff]
        %v235 = vld [vmem:[%s220 + $0x18] sm:$0xff]
        %v236 = vld [vmem:[%s220 + $0x20] sm:$0xff]
        %v237 = vld [vmem:[%s220 + $0x28] sm:$0xff]
        %v238 = vld [vmem:[%s220 + $0x30] sm:$0xff]
        %v239 = vld [vmem:[%s220 + $0x38] sm:$0xff]
        %v240 = vld [vmem:[%s220 + $0x40] sm:$0xff]
        %v241 = vld [vmem:[%s220 + $0x48] sm:$0xff]
        %v242 = vld [vmem:[%s220 + $0x50] sm:$0xff]
        %v243 = vld [vmem:[%s220 + $0x58] sm:$0xff]
        %v244 = vld [vmem:[%s220 + $0x60] sm:$0xff]
        %v245 = vld [vmem:[%s220 + $0x68] sm:$0xff]
        %v246 = vld [vmem:[%s220 + $0x70] sm:$0xff]
        %v247 = vld [vmem:[%s220 + $0x78] sm:$0xff]
        %v248 = vld [vmem:[%s220 + $0x80] sm:$0xff]
        %v249 = vld [vmem:[%s220 + $0x88] sm:$0xff]
        %v250 = vld [vmem:[%s220 + $0x90] sm:$0xff]
        %v251 = vld [vmem:[%s220 + $0x98] sm:$0xff]
        %v252 = vld [vmem:[%s220 + $0xa0] sm:$0xff]
        %v253 = vld [vmem:[%s220 + $0xa8] sm:$0xff]
        %v254 = vld [vmem:[%s220 + $0xb0] sm:$0xff]
        %v255 = vld [vmem:[%s220 + $0xb8] sm:$0xff]
        %v256 = vld [vmem:[%s220 + $0xc0] sm:$0xff]
        %v257 = vld [vmem:[%s220 + $0xc8] sm:$0xff]
        %v258 = vld [vmem:[%s220 + $0xd0] sm:$0xff]
        %v259 = vld [vmem:[%s220 + $0xd8] sm:$0xff]
        %v260 = vld [vmem:[%s220 + $0xe0] sm:$0xff]
        %v261 = vld [vmem:[%s220 + $0xe8] sm:$0xff]
        %v262 = vld [vmem:[%s220 + $0xf0] sm:$0xff]
        %v263 = vld [vmem:[%s220 + $0xf8] sm:$0xff]
        %v264 = vld [vmem:[%s220 + $0x100] sm:$0xff]
        %v265 = vld [vmem:[%s220 + $0x108] sm:$0xff]
        %v266 = vld [vmem:[%s220 + $0x110] sm:$0xff]
        %v267 = vld [vmem:[%s220 + $0x118] sm:$0xff]
        %v268 = vld [vmem:[%s220 + $0x120] sm:$0xff]
        %v269 = vld [vmem:[%s220 + $0x128] sm:$0xff]
        %v270 = vld [vmem:[%s220 + $0x130] sm:$0xff]
        %v271 = vld [vmem:[%s220 + $0x138] sm:$0xff]
        %v272 = vld [vmem:[%s220 + $0x140] sm:$0xff]
        %v273 = vld [vmem:[%s220 + $0x148] sm:$0xff]
        %v274 = vld [vmem:[%s220 + $0x150] sm:$0xff]
        %v275 = vld [vmem:[%s220 + $0x158] sm:$0xff]
        %v276 = vld [vmem:[%s220 + $0x160] sm:$0xff]
        %v277 = vld [vmem:[%s220 + $0x168] sm:$0xff]
        %v278 = vld [vmem:[%s220 + $0x170] sm:$0xff]
        %v279 = vld [vmem:[%s220 + $0x178] sm:$0xff]
        %v280 = vld [vmem:[%s228] sm:$0xff]
        %v281 = vld [vmem:[%s228 + $0x8] sm:$0xff]
        %v282 = vld [vmem:[%s228 + $0x10] sm:$0xff]
        %v283 = vld [vmem:[%s228 + $0x18] sm:$0xff]
        %v284 = vld [vmem:[%s228 + $0x20] sm:$0xff]
        %v285 = vld [vmem:[%s228 + $0x28] sm:$0xff]
        %v286 = vld [vmem:[%s228 + $0x30] sm:$0xff]
        %v287 = vld [vmem:[%s228 + $0x38] sm:$0xff]
        %v288 = vld [vmem:[%s228 + $0x40] sm:$0xff]
        %v289 = vld [vmem:[%s228 + $0x48] sm:$0xff]
        %v290 = vld [vmem:[%s228 + $0x50] sm:$0xff]
        %v291 = vld [vmem:[%s228 + $0x58] sm:$0xff]
        %v292 = vld [vmem:[%s228 + $0x60] sm:$0xff]
        %v293 = vld [vmem:[%s228 + $0x68] sm:$0xff]
        %v294 = vld [vmem:[%s228 + $0x70] sm:$0xff]
        %v295 = vld [vmem:[%s228 + $0x78] sm:$0xff]
        %v296 = vld [vmem:[%s228 + $0x80] sm:$0xff]
        %v297 = vld [vmem:[%s228 + $0x88] sm:$0xff]
        %v298 = vld [vmem:[%s228 + $0x90] sm:$0xff]
        %v299 = vld [vmem:[%s228 + $0x98] sm:$0xff]
        %v300 = vld [vmem:[%s228 + $0xa0] sm:$0xff]
        %v301 = vld [vmem:[%s228 + $0xa8] sm:$0xff]
        %v302 = vld [vmem:[%s228 + $0xb0] sm:$0xff]
        %v303 = vld [vmem:[%s228 + $0xb8] sm:$0xff]
        %v304 = vld [vmem:[%s228 + $0xc0] sm:$0xff]
        %v305 = vld [vmem:[%s228 + $0xc8] sm:$0xff]
        %v306 = vld [vmem:[%s228 + $0xd0] sm:$0xff]
        %v307 = vld [vmem:[%s228 + $0xd8] sm:$0xff]
        %v308 = vld [vmem:[%s228 + $0xe0] sm:$0xff]
        %v309 = vld [vmem:[%s228 + $0xe8] sm:$0xff]
        %v310 = vld [vmem:[%s228 + $0xf0] sm:$0xff]
        %v311 = vld [vmem:[%s228 + $0xf8] sm:$0xff]
        %v312 = vld [vmem:[%s228 + $0x100] sm:$0xff]
        %v313 = vld [vmem:[%s228 + $0x108] sm:$0xff]
        %v314 = vld [vmem:[%s228 + $0x110] sm:$0xff]
        %v315 = vld [vmem:[%s228 + $0x118] sm:$0xff]
        %v316 = vld [vmem:[%s228 + $0x120] sm:$0xff]
        %v317 = vld [vmem:[%s228 + $0x128] sm:$0xff]
        %v318 = vld [vmem:[%s228 + $0x130] sm:$0xff]
        %v319 = vld [vmem:[%s228 + $0x138] sm:$0xff]
        %v320 = vld [vmem:[%s228 + $0x140] sm:$0xff]
        %v321 = vld [vmem:[%s228 + $0x148] sm:$0xff]
        %v322 = vld [vmem:[%s228 + $0x150] sm:$0xff]
        %v323 = vld [vmem:[%s228 + $0x158] sm:$0xff]
        %v324 = vld [vmem:[%s228 + $0x160] sm:$0xff]
        %v325 = vld [vmem:[%s228 + $0x168] sm:$0xff]
        %v326 = vld [vmem:[%s228 + $0x170] sm:$0xff]
        %v327 = vld [vmem:[%s228 + $0x178] sm:$0xff]
        %v328 = vld [vmem:[%s223] sm:$0x1]
        %v329 = vrsqrt.pop %v328
        %v330 = vld [vmem:[%s231] sm:$0x1]
        %v331 = vrsqrt.pop %v330
        %v332 = vrsqrt.pop %v280
        %v333 = vmul.f32 %v280, %v332
        %vm334 = vcmp.eq.f32.partialorder %v280, inf
        %v335 = vsel %vm334, %v280, %v333
        %vm336 = vcmp.eq.f32.partialorder %v280, 0.0
        %v337 = vand.u32 %v280, 2147483648
        %v338 = vsel %vm336, %v337, %v335
        %v339 = vrsqrt.pop %v281
        %v340 = vmul.f32 %v281, %v339
        %vm341 = vcmp.eq.f32.partialorder %v281, inf
        %v342 = vsel %vm341, %v281, %v340
        %vm343 = vcmp.eq.f32.partialorder %v281, 0.0
        %v344 = vand.u32 %v281, 2147483648
        %v345 = vsel %vm343, %v344, %v342
        %v346 = vrsqrt.pop %v282
        %v347 = vmul.f32 %v282, %v346
        %vm348 = vcmp.eq.f32.partialorder %v282, inf
        %v349 = vsel %vm348, %v282, %v347
        %vm350 = vcmp.eq.f32.partialorder %v282, 0.0
        %v351 = vand.u32 %v282, 2147483648
        %v352 = vsel %vm350, %v351, %v349
        %v353 = vrsqrt.pop %v283
        %v354 = vmul.f32 %v283, %v353
        %vm355 = vcmp.eq.f32.partialorder %v283, inf
        %v356 = vsel %vm355, %v283, %v354
        %vm357 = vcmp.eq.f32.partialorder %v283, 0.0
        %v358 = vand.u32 %v283, 2147483648
        %v359 = vsel %vm357, %v358, %v356
        %v360 = vrsqrt.pop %v284
        %v361 = vmul.f32 %v284, %v360
        %vm362 = vcmp.eq.f32.partialorder %v284, inf
        %v363 = vsel %vm362, %v284, %v361
        %vm364 = vcmp.eq.f32.partialorder %v284, 0.0
        %v365 = vand.u32 %v284, 2147483648
        %v366 = vsel %vm364, %v365, %v363
        %v367 = vrsqrt.pop %v285
        %v368 = vmul.f32 %v285, %v367
        %vm369 = vcmp.eq.f32.partialorder %v285, inf
        %v370 = vsel %vm369, %v285, %v368
        %vm371 = vcmp.eq.f32.partialorder %v285, 0.0
        %v372 = vand.u32 %v285, 2147483648
        %v373 = vsel %vm371, %v372, %v370
        %v374 = vrsqrt.pop %v286
        %v375 = vmul.f32 %v286, %v374
        %vm376 = vcmp.eq.f32.partialorder %v286, inf
        %v377 = vsel %vm376, %v286, %v375
        %vm378 = vcmp.eq.f32.partialorder %v286, 0.0
        %v379 = vand.u32 %v286, 2147483648
        %v380 = vsel %vm378, %v379, %v377
        %v381 = vrsqrt.pop %v287
        %v382 = vmul.f32 %v287, %v381
        %vm383 = vcmp.eq.f32.partialorder %v287, inf
        %v384 = vsel %vm383, %v287, %v382
        %vm385 = vcmp.eq.f32.partialorder %v287, 0.0
        %v386 = vand.u32 %v287, 2147483648
        %v387 = vsel %vm385, %v386, %v384
        %v388 = vrsqrt.pop %v288
        %v389 = vmul.f32 %v288, %v388
        %vm390 = vcmp.eq.f32.partialorder %v288, inf
        %v391 = vsel %vm390, %v288, %v389
        %vm392 = vcmp.eq.f32.partialorder %v288, 0.0
        %v393 = vand.u32 %v288, 2147483648
        %v394 = vsel %vm392, %v393, %v391
        %v395 = vrsqrt.pop %v289
        %v396 = vmul.f32 %v289, %v395
        %vm397 = vcmp.eq.f32.partialorder %v289, inf
        %v398 = vsel %vm397, %v289, %v396
        %vm399 = vcmp.eq.f32.partialorder %v289, 0.0
        %v400 = vand.u32 %v289, 2147483648
        %v401 = vsel %vm399, %v400, %v398
        %v402 = vrsqrt.pop %v290
        %v403 = vmul.f32 %v290, %v402
        %vm404 = vcmp.eq.f32.partialorder %v290, inf
        %v405 = vsel %vm404, %v290, %v403
        %vm406 = vcmp.eq.f32.partialorder %v290, 0.0
        %v407 = vand.u32 %v290, 2147483648
        %v408 = vsel %vm406, %v407, %v405
        %v409 = vrsqrt.pop %v291
        %v410 = vmul.f32 %v291, %v409
        %vm411 = vcmp.eq.f32.partialorder %v291, inf
        %v412 = vsel %vm411, %v291, %v410
        %vm413 = vcmp.eq.f32.partialorder %v291, 0.0
        %v414 = vand.u32 %v291, 2147483648
        %v415 = vsel %vm413, %v414, %v412
        %v416 = vrsqrt.pop %v292
        %v417 = vmul.f32 %v292, %v416
        %vm418 = vcmp.eq.f32.partialorder %v292, inf
        %v419 = vsel %vm418, %v292, %v417
        %vm420 = vcmp.eq.f32.partialorder %v292, 0.0
        %v421 = vand.u32 %v292, 2147483648
        %v422 = vsel %vm420, %v421, %v419
        %v423 = vrsqrt.pop %v293
        %v424 = vmul.f32 %v293, %v423
        %vm425 = vcmp.eq.f32.partialorder %v293, inf
        %v426 = vsel %vm425, %v293, %v424
        %vm427 = vcmp.eq.f32.partialorder %v293, 0.0
        %v428 = vand.u32 %v293, 2147483648
        %v429 = vsel %vm427, %v428, %v426
        %v430 = vrsqrt.pop %v294
        %v431 = vmul.f32 %v294, %v430
        %vm432 = vcmp.eq.f32.partialorder %v294, inf
        %v433 = vsel %vm432, %v294, %v431
        %vm434 = vcmp.eq.f32.partialorder %v294, 0.0
        %v435 = vand.u32 %v294, 2147483648
        %v436 = vsel %vm434, %v435, %v433
        %v437 = vrsqrt.pop %v295
        %v438 = vmul.f32 %v295, %v437
        %vm439 = vcmp.eq.f32.partialorder %v295, inf
        %v440 = vsel %vm439, %v295, %v438
        %vm441 = vcmp.eq.f32.partialorder %v295, 0.0
        %v442 = vand.u32 %v295, 2147483648
        %v443 = vsel %vm441, %v442, %v440
        %v444 = vrsqrt.pop %v296
        %v445 = vmul.f32 %v296, %v444
        %vm446 = vcmp.eq.f32.partialorder %v296, inf
        %v447 = vsel %vm446, %v296, %v445
        %vm448 = vcmp.eq.f32.partialorder %v296, 0.0
        %v449 = vand.u32 %v296, 2147483648
        %v450 = vsel %vm448, %v449, %v447
        %v451 = vrsqrt.pop %v297
        %v452 = vmul.f32 %v297, %v451
        %vm453 = vcmp.eq.f32.partialorder %v297, inf
        %v454 = vsel %vm453, %v297, %v452
        %vm455 = vcmp.eq.f32.partialorder %v297, 0.0
        %v456 = vand.u32 %v297, 2147483648
        %v457 = vsel %vm455, %v456, %v454
        %v458 = vrsqrt.pop %v298
        %v459 = vmul.f32 %v298, %v458
        %vm460 = vcmp.eq.f32.partialorder %v298, inf
        %v461 = vsel %vm460, %v298, %v459
        %vm462 = vcmp.eq.f32.partialorder %v298, 0.0
        %v463 = vand.u32 %v298, 2147483648
        %v464 = vsel %vm462, %v463, %v461
        %v465 = vrsqrt.pop %v299
        %v466 = vmul.f32 %v299, %v465
        %vm467 = vcmp.eq.f32.partialorder %v299, inf
        %v468 = vsel %vm467, %v299, %v466
        %vm469 = vcmp.eq.f32.partialorder %v299, 0.0
        %v470 = vand.u32 %v299, 2147483648
        %v471 = vsel %vm469, %v470, %v468
        %v472 = vrsqrt.pop %v300
        %v473 = vmul.f32 %v300, %v472
        %vm474 = vcmp.eq.f32.partialorder %v300, inf
        %v475 = vsel %vm474, %v300, %v473
        %vm476 = vcmp.eq.f32.partialorder %v300, 0.0
        %v477 = vand.u32 %v300, 2147483648
        %v478 = vsel %vm476, %v477, %v475
        %v479 = vrsqrt.pop %v301
        %v480 = vmul.f32 %v301, %v479
        %vm481 = vcmp.eq.f32.partialorder %v301, inf
        %v482 = vsel %vm481, %v301, %v480
        %vm483 = vcmp.eq.f32.partialorder %v301, 0.0
        %v484 = vand.u32 %v301, 2147483648
        %v485 = vsel %vm483, %v484, %v482
        %v486 = vrsqrt.pop %v302
        %v487 = vmul.f32 %v302, %v486
        %vm488 = vcmp.eq.f32.partialorder %v302, inf
        %v489 = vsel %vm488, %v302, %v487
        %vm490 = vcmp.eq.f32.partialorder %v302, 0.0
        %v491 = vand.u32 %v302, 2147483648
        %v492 = vsel %vm490, %v491, %v489
        %v493 = vrsqrt.pop %v303
        %v494 = vmul.f32 %v303, %v493
        %vm495 = vcmp.eq.f32.partialorder %v303, inf
        %v496 = vsel %vm495, %v303, %v494
        %vm497 = vcmp.eq.f32.partialorder %v303, 0.0
        %v498 = vand.u32 %v303, 2147483648
        %v499 = vsel %vm497, %v498, %v496
        %v500 = vrsqrt.pop %v304
        %v501 = vmul.f32 %v304, %v500
        %vm502 = vcmp.eq.f32.partialorder %v304, inf
        %v503 = vsel %vm502, %v304, %v501
        %vm504 = vcmp.eq.f32.partialorder %v304, 0.0
        %v505 = vand.u32 %v304, 2147483648
        %v506 = vsel %vm504, %v505, %v503
        %v507 = vrsqrt.pop %v305
        %v508 = vmul.f32 %v305, %v507
        %vm509 = vcmp.eq.f32.partialorder %v305, inf
        %v510 = vsel %vm509, %v305, %v508
        %vm511 = vcmp.eq.f32.partialorder %v305, 0.0
        %v512 = vand.u32 %v305, 2147483648
        %v513 = vsel %vm511, %v512, %v510
        %v514 = vrsqrt.pop %v306
        %v515 = vmul.f32 %v306, %v514
        %vm516 = vcmp.eq.f32.partialorder %v306, inf
        %v517 = vsel %vm516, %v306, %v515
        %vm518 = vcmp.eq.f32.partialorder %v306, 0.0
        %v519 = vand.u32 %v306, 2147483648
        %v520 = vsel %vm518, %v519, %v517
        %v521 = vrsqrt.pop %v307
        %v522 = vmul.f32 %v307, %v521
        %vm523 = vcmp.eq.f32.partialorder %v307, inf
        %v524 = vsel %vm523, %v307, %v522
        %vm525 = vcmp.eq.f32.partialorder %v307, 0.0
        %v526 = vand.u32 %v307, 2147483648
        %v527 = vsel %vm525, %v526, %v524
        %v528 = vrsqrt.pop %v308
        %v529 = vmul.f32 %v308, %v528
        %vm530 = vcmp.eq.f32.partialorder %v308, inf
        %v531 = vsel %vm530, %v308, %v529
        %vm532 = vcmp.eq.f32.partialorder %v308, 0.0
        %v533 = vand.u32 %v308, 2147483648
        %v534 = vsel %vm532, %v533, %v531
        %v535 = vrsqrt.pop %v309
        %v536 = vmul.f32 %v309, %v535
        %vm537 = vcmp.eq.f32.partialorder %v309, inf
        %v538 = vsel %vm537, %v309, %v536
        %vm539 = vcmp.eq.f32.partialorder %v309, 0.0
        %v540 = vand.u32 %v309, 2147483648
        %v541 = vsel %vm539, %v540, %v538
        %v542 = vrsqrt.pop %v310
        %v543 = vmul.f32 %v310, %v542
        %vm544 = vcmp.eq.f32.partialorder %v310, inf
        %v545 = vsel %vm544, %v310, %v543
        %vm546 = vcmp.eq.f32.partialorder %v310, 0.0
        %v547 = vand.u32 %v310, 2147483648
        %v548 = vsel %vm546, %v547, %v545
        %v549 = vrsqrt.pop %v311
        %v550 = vmul.f32 %v311, %v549
        %vm551 = vcmp.eq.f32.partialorder %v311, inf
        %v552 = vsel %vm551, %v311, %v550
        %vm553 = vcmp.eq.f32.partialorder %v311, 0.0
        %v554 = vand.u32 %v311, 2147483648
        %v555 = vsel %vm553, %v554, %v552
        %v556 = vrsqrt.pop %v312
        %v557 = vmul.f32 %v312, %v556
        %vm558 = vcmp.eq.f32.partialorder %v312, inf
        %v559 = vsel %vm558, %v312, %v557
        %vm560 = vcmp.eq.f32.partialorder %v312, 0.0
        %v561 = vand.u32 %v312, 2147483648
        %v562 = vsel %vm560, %v561, %v559
        %v563 = vrsqrt.pop %v313
        %v564 = vmul.f32 %v313, %v563
        %vm565 = vcmp.eq.f32.partialorder %v313, inf
        %v566 = vsel %vm565, %v313, %v564
        %vm567 = vcmp.eq.f32.partialorder %v313, 0.0
        %v568 = vand.u32 %v313, 2147483648
        %v569 = vsel %vm567, %v568, %v566
        %v570 = vrsqrt.pop %v314
        %v571 = vmul.f32 %v314, %v570
        %vm572 = vcmp.eq.f32.partialorder %v314, inf
        %v573 = vsel %vm572, %v314, %v571
        %vm574 = vcmp.eq.f32.partialorder %v314, 0.0
        %v575 = vand.u32 %v314, 2147483648
        %v576 = vsel %vm574, %v575, %v573
        %v577 = vrsqrt.pop %v315
        %v578 = vmul.f32 %v315, %v577
        %vm579 = vcmp.eq.f32.partialorder %v315, inf
        %v580 = vsel %vm579, %v315, %v578
        %vm581 = vcmp.eq.f32.partialorder %v315, 0.0
        %v582 = vand.u32 %v315, 2147483648
        %v583 = vsel %vm581, %v582, %v580
        %v584 = vrsqrt.pop %v316
        %v585 = vmul.f32 %v316, %v584
        %vm586 = vcmp.eq.f32.partialorder %v316, inf
        %v587 = vsel %vm586, %v316, %v585
        %vm588 = vcmp.eq.f32.partialorder %v316, 0.0
        %v589 = vand.u32 %v316, 2147483648
        %v590 = vsel %vm588, %v589, %v587
        %v591 = vrsqrt.pop %v317
        %v592 = vmul.f32 %v317, %v591
        %vm593 = vcmp.eq.f32.partialorder %v317, inf
        %v594 = vsel %vm593, %v317, %v592
        %vm595 = vcmp.eq.f32.partialorder %v317, 0.0
        %v596 = vand.u32 %v317, 2147483648
        %v597 = vsel %vm595, %v596, %v594
        %v598 = vrsqrt.pop %v318
        %v599 = vmul.f32 %v318, %v598
        %vm600 = vcmp.eq.f32.partialorder %v318, inf
        %v601 = vsel %vm600, %v318, %v599
        %vm602 = vcmp.eq.f32.partialorder %v318, 0.0
        %v603 = vand.u32 %v318, 2147483648
        %v604 = vsel %vm602, %v603, %v601
        %v605 = vrsqrt.pop %v319
        %v606 = vmul.f32 %v319, %v605
        %vm607 = vcmp.eq.f32.partialorder %v319, inf
        %v608 = vsel %vm607, %v319, %v606
        %vm609 = vcmp.eq.f32.partialorder %v319, 0.0
        %v610 = vand.u32 %v319, 2147483648
        %v611 = vsel %vm609, %v610, %v608
        %v612 = vrsqrt.pop %v320
        %v613 = vmul.f32 %v320, %v612
        %vm614 = vcmp.eq.f32.partialorder %v320, inf
        %v615 = vsel %vm614, %v320, %v613
        %vm616 = vcmp.eq.f32.partialorder %v320, 0.0
        %v617 = vand.u32 %v320, 2147483648
        %v618 = vsel %vm616, %v617, %v615
        %v619 = vrsqrt.pop %v321
        %v620 = vmul.f32 %v321, %v619
        %vm621 = vcmp.eq.f32.partialorder %v321, inf
        %v622 = vsel %vm621, %v321, %v620
        %vm623 = vcmp.eq.f32.partialorder %v321, 0.0
        %v624 = vand.u32 %v321, 2147483648
        %v625 = vsel %vm623, %v624, %v622
        %v626 = vrsqrt.pop %v322
        %v627 = vmul.f32 %v322, %v626
        %vm628 = vcmp.eq.f32.partialorder %v322, inf
        %v629 = vsel %vm628, %v322, %v627
        %vm630 = vcmp.eq.f32.partialorder %v322, 0.0
        %v631 = vand.u32 %v322, 2147483648
        %v632 = vsel %vm630, %v631, %v629
        %v633 = vrsqrt.pop %v323
        %v634 = vmul.f32 %v323, %v633
        %vm635 = vcmp.eq.f32.partialorder %v323, inf
        %v636 = vsel %vm635, %v323, %v634
        %vm637 = vcmp.eq.f32.partialorder %v323, 0.0
        %v638 = vand.u32 %v323, 2147483648
        %v639 = vsel %vm637, %v638, %v636
        %v640 = vrsqrt.pop %v324
        %v641 = vmul.f32 %v324, %v640
        %vm642 = vcmp.eq.f32.partialorder %v324, inf
        %v643 = vsel %vm642, %v324, %v641
        %vm644 = vcmp.eq.f32.partialorder %v324, 0.0
        %v645 = vand.u32 %v324, 2147483648
        %v646 = vsel %vm644, %v645, %v643
        %v647 = vrsqrt.pop %v325
        %v648 = vmul.f32 %v325, %v647
        %vm649 = vcmp.eq.f32.partialorder %v325, inf
        %v650 = vsel %vm649, %v325, %v648
        %vm651 = vcmp.eq.f32.partialorder %v325, 0.0
        %v652 = vand.u32 %v325, 2147483648
        %v653 = vsel %vm651, %v652, %v650
        %v654 = vrsqrt.pop %v326
        %v655 = vmul.f32 %v326, %v654
        %vm656 = vcmp.eq.f32.partialorder %v326, inf
        %v657 = vsel %vm656, %v326, %v655
        %vm658 = vcmp.eq.f32.partialorder %v326, 0.0
        %v659 = vand.u32 %v326, 2147483648
        %v660 = vsel %vm658, %v659, %v657
        %v661 = vrsqrt.pop %v327
        %v662 = vmul.f32 %v327, %v661
        %vm663 = vcmp.eq.f32.partialorder %v327, inf
        %v664 = vsel %vm663, %v327, %v662
        %vm665 = vcmp.eq.f32.partialorder %v327, 0.0
        %v666 = vand.u32 %v327, 2147483648
        %v667 = vsel %vm665, %v666, %v664
        %v669 = vlaneseq
        %v670 = vshrl.u32 %v669, 7
        %v671 = vsub.s32 0, %v670
        %v672 = vrot.slane %v331, %v671
        %673 = vset.pattern.permute.xlu0 0
        %674 = vperm.xlu0 %673, %v672
        %v675 = vpop.permute.xlu0 %674
        %v677 = vmul.f32 %v338, %v675
        %v678 = vmul.f32 %v345, %v675
        %v679 = vmul.f32 %v352, %v675
        %v680 = vmul.f32 %v359, %v675
        %v681 = vmul.f32 %v366, %v675
        %v682 = vmul.f32 %v373, %v675
        %v683 = vmul.f32 %v380, %v675
        %v684 = vmul.f32 %v387, %v675
        %v685 = vmul.f32 %v394, %v675
        %v686 = vmul.f32 %v401, %v675
        %v687 = vmul.f32 %v408, %v675
        %v688 = vmul.f32 %v415, %v675
        %v689 = vmul.f32 %v422, %v675
        %v690 = vmul.f32 %v429, %v675
        %v691 = vmul.f32 %v436, %v675
        %v692 = vmul.f32 %v443, %v675
        %v693 = vmul.f32 %v450, %v675
        %v694 = vmul.f32 %v457, %v675
        %v695 = vmul.f32 %v464, %v675
        %v696 = vmul.f32 %v471, %v675
        %v697 = vmul.f32 %v478, %v675
        %v698 = vmul.f32 %v485, %v675
        %v699 = vmul.f32 %v492, %v675
        %v700 = vmul.f32 %v499, %v675
        %v701 = vmul.f32 %v506, %v675
        %v702 = vmul.f32 %v513, %v675
        %v703 = vmul.f32 %v520, %v675
        %v704 = vmul.f32 %v527, %v675
        %v705 = vmul.f32 %v534, %v675
        %v706 = vmul.f32 %v541, %v675
        %v707 = vmul.f32 %v548, %v675
        %v708 = vmul.f32 %v555, %v675
        %v709 = vmul.f32 %v562, %v675
        %v710 = vmul.f32 %v569, %v675
        %v711 = vmul.f32 %v576, %v675
        %v712 = vmul.f32 %v583, %v675
        %v713 = vmul.f32 %v590, %v675
        %v714 = vmul.f32 %v597, %v675
        %v715 = vmul.f32 %v604, %v675
        %v716 = vmul.f32 %v611, %v675
        %v717 = vmul.f32 %v618, %v675
        %v718 = vmul.f32 %v625, %v675
        %v719 = vmul.f32 %v632, %v675
        %v720 = vmul.f32 %v639, %v675
        %v721 = vmul.f32 %v646, %v675
        %v722 = vmul.f32 %v653, %v675
        %v723 = vmul.f32 %v660, %v675
        %v724 = vmul.f32 %v667, %v675
        %v725 = vrsqrt.pop %v232
        %v726 = vmul.f32 %v232, %v725
        %vm727 = vcmp.eq.f32.partialorder %v232, inf
        %v728 = vsel %vm727, %v232, %v726
        %vm729 = vcmp.eq.f32.partialorder %v232, 0.0
        %v730 = vand.u32 %v232, 2147483648
        %v731 = vsel %vm729, %v730, %v728
        %v732 = vrsqrt.pop %v233
        %v733 = vmul.f32 %v233, %v732
        %vm734 = vcmp.eq.f32.partialorder %v233, inf
        %v735 = vsel %vm734, %v233, %v733
        %vm736 = vcmp.eq.f32.partialorder %v233, 0.0
        %v737 = vand.u32 %v233, 2147483648
        %v738 = vsel %vm736, %v737, %v735
        %v739 = vrsqrt.pop %v234
        %v740 = vmul.f32 %v234, %v739
        %vm741 = vcmp.eq.f32.partialorder %v234, inf
        %v742 = vsel %vm741, %v234, %v740
        %vm743 = vcmp.eq.f32.partialorder %v234, 0.0
        %v744 = vand.u32 %v234, 2147483648
        %v745 = vsel %vm743, %v744, %v742
        %v746 = vrsqrt.pop %v235
        %v747 = vmul.f32 %v235, %v746
        %vm748 = vcmp.eq.f32.partialorder %v235, inf
        %v749 = vsel %vm748, %v235, %v747
        %vm750 = vcmp.eq.f32.partialorder %v235, 0.0
        %v751 = vand.u32 %v235, 2147483648
        %v752 = vsel %vm750, %v751, %v749
        %v753 = vrsqrt.pop %v236
        %v754 = vmul.f32 %v236, %v753
        %vm755 = vcmp.eq.f32.partialorder %v236, inf
        %v756 = vsel %vm755, %v236, %v754
        %vm757 = vcmp.eq.f32.partialorder %v236, 0.0
        %v758 = vand.u32 %v236, 2147483648
        %v759 = vsel %vm757, %v758, %v756
        %v760 = vrsqrt.pop %v237
        %v761 = vmul.f32 %v237, %v760
        %vm762 = vcmp.eq.f32.partialorder %v237, inf
        %v763 = vsel %vm762, %v237, %v761
        %vm764 = vcmp.eq.f32.partialorder %v237, 0.0
        %v765 = vand.u32 %v237, 2147483648
        %v766 = vsel %vm764, %v765, %v763
        %v767 = vrsqrt.pop %v238
        %v768 = vmul.f32 %v238, %v767
        %vm769 = vcmp.eq.f32.partialorder %v238, inf
        %v770 = vsel %vm769, %v238, %v768
        %vm771 = vcmp.eq.f32.partialorder %v238, 0.0
        %v772 = vand.u32 %v238, 2147483648
        %v773 = vsel %vm771, %v772, %v770
        %v774 = vrsqrt.pop %v239
        %v775 = vmul.f32 %v239, %v774
        %vm776 = vcmp.eq.f32.partialorder %v239, inf
        %v777 = vsel %vm776, %v239, %v775
        %vm778 = vcmp.eq.f32.partialorder %v239, 0.0
        %v779 = vand.u32 %v239, 2147483648
        %v780 = vsel %vm778, %v779, %v777
        %v781 = vrsqrt.pop %v240
        %v782 = vmul.f32 %v240, %v781
        %vm783 = vcmp.eq.f32.partialorder %v240, inf
        %v784 = vsel %vm783, %v240, %v782
        %vm785 = vcmp.eq.f32.partialorder %v240, 0.0
        %v786 = vand.u32 %v240, 2147483648
        %v787 = vsel %vm785, %v786, %v784
        %v788 = vrsqrt.pop %v241
        %v789 = vmul.f32 %v241, %v788
        %vm790 = vcmp.eq.f32.partialorder %v241, inf
        %v791 = vsel %vm790, %v241, %v789
        %vm792 = vcmp.eq.f32.partialorder %v241, 0.0
        %v793 = vand.u32 %v241, 2147483648
        %v794 = vsel %vm792, %v793, %v791
        %v795 = vrsqrt.pop %v242
        %v796 = vmul.f32 %v242, %v795
        %vm797 = vcmp.eq.f32.partialorder %v242, inf
        %v798 = vsel %vm797, %v242, %v796
        %vm799 = vcmp.eq.f32.partialorder %v242, 0.0
        %v800 = vand.u32 %v242, 2147483648
        %v801 = vsel %vm799, %v800, %v798
        %v802 = vrsqrt.pop %v243
        %v803 = vmul.f32 %v243, %v802
        %vm804 = vcmp.eq.f32.partialorder %v243, inf
        %v805 = vsel %vm804, %v243, %v803
        %vm806 = vcmp.eq.f32.partialorder %v243, 0.0
        %v807 = vand.u32 %v243, 2147483648
        %v808 = vsel %vm806, %v807, %v805
        %v809 = vrsqrt.pop %v244
        %v810 = vmul.f32 %v244, %v809
        %vm811 = vcmp.eq.f32.partialorder %v244, inf
        %v812 = vsel %vm811, %v244, %v810
        %vm813 = vcmp.eq.f32.partialorder %v244, 0.0
        %v814 = vand.u32 %v244, 2147483648
        %v815 = vsel %vm813, %v814, %v812
        %v816 = vrsqrt.pop %v245
        %v817 = vmul.f32 %v245, %v816
        %vm818 = vcmp.eq.f32.partialorder %v245, inf
        %v819 = vsel %vm818, %v245, %v817
        %vm820 = vcmp.eq.f32.partialorder %v245, 0.0
        %v821 = vand.u32 %v245, 2147483648
        %v822 = vsel %vm820, %v821, %v819
        %v823 = vrsqrt.pop %v246
        %v824 = vmul.f32 %v246, %v823
        %vm825 = vcmp.eq.f32.partialorder %v246, inf
        %v826 = vsel %vm825, %v246, %v824
        %vm827 = vcmp.eq.f32.partialorder %v246, 0.0
        %v828 = vand.u32 %v246, 2147483648
        %v829 = vsel %vm827, %v828, %v826
        %v830 = vrsqrt.pop %v247
        %v831 = vmul.f32 %v247, %v830
        %vm832 = vcmp.eq.f32.partialorder %v247, inf
        %v833 = vsel %vm832, %v247, %v831
        %vm834 = vcmp.eq.f32.partialorder %v247, 0.0
        %v835 = vand.u32 %v247, 2147483648
        %v836 = vsel %vm834, %v835, %v833
        %v837 = vrsqrt.pop %v248
        %v838 = vmul.f32 %v248, %v837
        %vm839 = vcmp.eq.f32.partialorder %v248, inf
        %v840 = vsel %vm839, %v248, %v838
        %vm841 = vcmp.eq.f32.partialorder %v248, 0.0
        %v842 = vand.u32 %v248, 2147483648
        %v843 = vsel %vm841, %v842, %v840
        %v844 = vrsqrt.pop %v249
        %v845 = vmul.f32 %v249, %v844
        %vm846 = vcmp.eq.f32.partialorder %v249, inf
        %v847 = vsel %vm846, %v249, %v845
        %vm848 = vcmp.eq.f32.partialorder %v249, 0.0
        %v849 = vand.u32 %v249, 2147483648
        %v850 = vsel %vm848, %v849, %v847
        %v851 = vrsqrt.pop %v250
        %v852 = vmul.f32 %v250, %v851
        %vm853 = vcmp.eq.f32.partialorder %v250, inf
        %v854 = vsel %vm853, %v250, %v852
        %vm855 = vcmp.eq.f32.partialorder %v250, 0.0
        %v856 = vand.u32 %v250, 2147483648
        %v857 = vsel %vm855, %v856, %v854
        %v858 = vrsqrt.pop %v251
        %v859 = vmul.f32 %v251, %v858
        %vm860 = vcmp.eq.f32.partialorder %v251, inf
        %v861 = vsel %vm860, %v251, %v859
        %vm862 = vcmp.eq.f32.partialorder %v251, 0.0
        %v863 = vand.u32 %v251, 2147483648
        %v864 = vsel %vm862, %v863, %v861
        %v865 = vrsqrt.pop %v252
        %v866 = vmul.f32 %v252, %v865
        %vm867 = vcmp.eq.f32.partialorder %v252, inf
        %v868 = vsel %vm867, %v252, %v866
        %vm869 = vcmp.eq.f32.partialorder %v252, 0.0
        %v870 = vand.u32 %v252, 2147483648
        %v871 = vsel %vm869, %v870, %v868
        %v872 = vrsqrt.pop %v253
        %v873 = vmul.f32 %v253, %v872
        %vm874 = vcmp.eq.f32.partialorder %v253, inf
        %v875 = vsel %vm874, %v253, %v873
        %vm876 = vcmp.eq.f32.partialorder %v253, 0.0
        %v877 = vand.u32 %v253, 2147483648
        %v878 = vsel %vm876, %v877, %v875
        %v879 = vrsqrt.pop %v254
        %v880 = vmul.f32 %v254, %v879
        %vm881 = vcmp.eq.f32.partialorder %v254, inf
        %v882 = vsel %vm881, %v254, %v880
        %vm883 = vcmp.eq.f32.partialorder %v254, 0.0
        %v884 = vand.u32 %v254, 2147483648
        %v885 = vsel %vm883, %v884, %v882
        %v886 = vrsqrt.pop %v255
        %v887 = vmul.f32 %v255, %v886
        %vm888 = vcmp.eq.f32.partialorder %v255, inf
        %v889 = vsel %vm888, %v255, %v887
        %vm890 = vcmp.eq.f32.partialorder %v255, 0.0
        %v891 = vand.u32 %v255, 2147483648
        %v892 = vsel %vm890, %v891, %v889
        %v893 = vrsqrt.pop %v256
        %v894 = vmul.f32 %v256, %v893
        %vm895 = vcmp.eq.f32.partialorder %v256, inf
        %v896 = vsel %vm895, %v256, %v894
        %vm897 = vcmp.eq.f32.partialorder %v256, 0.0
        %v898 = vand.u32 %v256, 2147483648
        %v899 = vsel %vm897, %v898, %v896
        %v900 = vrsqrt.pop %v257
        %v901 = vmul.f32 %v257, %v900
        %vm902 = vcmp.eq.f32.partialorder %v257, inf
        %v903 = vsel %vm902, %v257, %v901
        %vm904 = vcmp.eq.f32.partialorder %v257, 0.0
        %v905 = vand.u32 %v257, 2147483648
        %v906 = vsel %vm904, %v905, %v903
        %v907 = vrsqrt.pop %v258
        %v908 = vmul.f32 %v258, %v907
        %vm909 = vcmp.eq.f32.partialorder %v258, inf
        %v910 = vsel %vm909, %v258, %v908
        %vm911 = vcmp.eq.f32.partialorder %v258, 0.0
        %v912 = vand.u32 %v258, 2147483648
        %v913 = vsel %vm911, %v912, %v910
        %v914 = vrsqrt.pop %v259
        %v915 = vmul.f32 %v259, %v914
        %vm916 = vcmp.eq.f32.partialorder %v259, inf
        %v917 = vsel %vm916, %v259, %v915
        %vm918 = vcmp.eq.f32.partialorder %v259, 0.0
        %v919 = vand.u32 %v259, 2147483648
        %v920 = vsel %vm918, %v919, %v917
        %v921 = vrsqrt.pop %v260
        %v922 = vmul.f32 %v260, %v921
        %vm923 = vcmp.eq.f32.partialorder %v260, inf
        %v924 = vsel %vm923, %v260, %v922
        %vm925 = vcmp.eq.f32.partialorder %v260, 0.0
        %v926 = vand.u32 %v260, 2147483648
        %v927 = vsel %vm925, %v926, %v924
        %v928 = vrsqrt.pop %v261
        %v929 = vmul.f32 %v261, %v928
        %vm930 = vcmp.eq.f32.partialorder %v261, inf
        %v931 = vsel %vm930, %v261, %v929
        %vm932 = vcmp.eq.f32.partialorder %v261, 0.0
        %v933 = vand.u32 %v261, 2147483648
        %v934 = vsel %vm932, %v933, %v931
        %v935 = vrsqrt.pop %v262
        %v936 = vmul.f32 %v262, %v935
        %vm937 = vcmp.eq.f32.partialorder %v262, inf
        %v938 = vsel %vm937, %v262, %v936
        %vm939 = vcmp.eq.f32.partialorder %v262, 0.0
        %v940 = vand.u32 %v262, 2147483648
        %v941 = vsel %vm939, %v940, %v938
        %v942 = vrsqrt.pop %v263
        %v943 = vmul.f32 %v263, %v942
        %vm944 = vcmp.eq.f32.partialorder %v263, inf
        %v945 = vsel %vm944, %v263, %v943
        %vm946 = vcmp.eq.f32.partialorder %v263, 0.0
        %v947 = vand.u32 %v263, 2147483648
        %v948 = vsel %vm946, %v947, %v945
        %v949 = vrsqrt.pop %v264
        %v950 = vmul.f32 %v264, %v949
        %vm951 = vcmp.eq.f32.partialorder %v264, inf
        %v952 = vsel %vm951, %v264, %v950
        %vm953 = vcmp.eq.f32.partialorder %v264, 0.0
        %v954 = vand.u32 %v264, 2147483648
        %v955 = vsel %vm953, %v954, %v952
        %v956 = vrsqrt.pop %v265
        %v957 = vmul.f32 %v265, %v956
        %vm958 = vcmp.eq.f32.partialorder %v265, inf
        %v959 = vsel %vm958, %v265, %v957
        %vm960 = vcmp.eq.f32.partialorder %v265, 0.0
        %v961 = vand.u32 %v265, 2147483648
        %v962 = vsel %vm960, %v961, %v959
        %v963 = vrsqrt.pop %v266
        %v964 = vmul.f32 %v266, %v963
        %vm965 = vcmp.eq.f32.partialorder %v266, inf
        %v966 = vsel %vm965, %v266, %v964
        %vm967 = vcmp.eq.f32.partialorder %v266, 0.0
        %v968 = vand.u32 %v266, 2147483648
        %v969 = vsel %vm967, %v968, %v966
        %v970 = vrsqrt.pop %v267
        %v971 = vmul.f32 %v267, %v970
        %vm972 = vcmp.eq.f32.partialorder %v267, inf
        %v973 = vsel %vm972, %v267, %v971
        %vm974 = vcmp.eq.f32.partialorder %v267, 0.0
        %v975 = vand.u32 %v267, 2147483648
        %v976 = vsel %vm974, %v975, %v973
        %v977 = vrsqrt.pop %v268
        %v978 = vmul.f32 %v268, %v977
        %vm979 = vcmp.eq.f32.partialorder %v268, inf
        %v980 = vsel %vm979, %v268, %v978
        %vm981 = vcmp.eq.f32.partialorder %v268, 0.0
        %v982 = vand.u32 %v268, 2147483648
        %v983 = vsel %vm981, %v982, %v980
        %v984 = vrsqrt.pop %v269
        %v985 = vmul.f32 %v269, %v984
        %vm986 = vcmp.eq.f32.partialorder %v269, inf
        %v987 = vsel %vm986, %v269, %v985
        %vm988 = vcmp.eq.f32.partialorder %v269, 0.0
        %v989 = vand.u32 %v269, 2147483648
        %v990 = vsel %vm988, %v989, %v987
        %v991 = vrsqrt.pop %v270
        %v992 = vmul.f32 %v270, %v991
        %vm993 = vcmp.eq.f32.partialorder %v270, inf
        %v994 = vsel %vm993, %v270, %v992
        %vm995 = vcmp.eq.f32.partialorder %v270, 0.0
        %v996 = vand.u32 %v270, 2147483648
        %v997 = vsel %vm995, %v996, %v994
        %v998 = vrsqrt.pop %v271
        %v999 = vmul.f32 %v271, %v998
        %vm1000 = vcmp.eq.f32.partialorder %v271, inf
        %v1001 = vsel %vm1000, %v271, %v999
        %vm1002 = vcmp.eq.f32.partialorder %v271, 0.0
        %v1003 = vand.u32 %v271, 2147483648
        %v1004 = vsel %vm1002, %v1003, %v1001
        %v1005 = vrsqrt.pop %v272
        %v1006 = vmul.f32 %v272, %v1005
        %vm1007 = vcmp.eq.f32.partialorder %v272, inf
        %v1008 = vsel %vm1007, %v272, %v1006
        %vm1009 = vcmp.eq.f32.partialorder %v272, 0.0
        %v1010 = vand.u32 %v272, 2147483648
        %v1011 = vsel %vm1009, %v1010, %v1008
        %v1012 = vrsqrt.pop %v273
        %v1013 = vmul.f32 %v273, %v1012
        %vm1014 = vcmp.eq.f32.partialorder %v273, inf
        %v1015 = vsel %vm1014, %v273, %v1013
        %vm1016 = vcmp.eq.f32.partialorder %v273, 0.0
        %v1017 = vand.u32 %v273, 2147483648
        %v1018 = vsel %vm1016, %v1017, %v1015
        %v1019 = vrsqrt.pop %v274
        %v1020 = vmul.f32 %v274, %v1019
        %vm1021 = vcmp.eq.f32.partialorder %v274, inf
        %v1022 = vsel %vm1021, %v274, %v1020
        %vm1023 = vcmp.eq.f32.partialorder %v274, 0.0
        %v1024 = vand.u32 %v274, 2147483648
        %v1025 = vsel %vm1023, %v1024, %v1022
        %v1026 = vrsqrt.pop %v275
        %v1027 = vmul.f32 %v275, %v1026
        %vm1028 = vcmp.eq.f32.partialorder %v275, inf
        %v1029 = vsel %vm1028, %v275, %v1027
        %vm1030 = vcmp.eq.f32.partialorder %v275, 0.0
        %v1031 = vand.u32 %v275, 2147483648
        %v1032 = vsel %vm1030, %v1031, %v1029
        %v1033 = vrsqrt.pop %v276
        %v1034 = vmul.f32 %v276, %v1033
        %vm1035 = vcmp.eq.f32.partialorder %v276, inf
        %v1036 = vsel %vm1035, %v276, %v1034
        %vm1037 = vcmp.eq.f32.partialorder %v276, 0.0
        %v1038 = vand.u32 %v276, 2147483648
        %v1039 = vsel %vm1037, %v1038, %v1036
        %v1040 = vrsqrt.pop %v277
        %v1041 = vmul.f32 %v277, %v1040
        %vm1042 = vcmp.eq.f32.partialorder %v277, inf
        %v1043 = vsel %vm1042, %v277, %v1041
        %vm1044 = vcmp.eq.f32.partialorder %v277, 0.0
        %v1045 = vand.u32 %v277, 2147483648
        %v1046 = vsel %vm1044, %v1045, %v1043
        %v1047 = vrsqrt.pop %v278
        %v1048 = vmul.f32 %v278, %v1047
        %vm1049 = vcmp.eq.f32.partialorder %v278, inf
        %v1050 = vsel %vm1049, %v278, %v1048
        %vm1051 = vcmp.eq.f32.partialorder %v278, 0.0
        %v1052 = vand.u32 %v278, 2147483648
        %v1053 = vsel %vm1051, %v1052, %v1050
        %v1054 = vrsqrt.pop %v279
        %v1055 = vmul.f32 %v279, %v1054
        %vm1056 = vcmp.eq.f32.partialorder %v279, inf
        %v1057 = vsel %vm1056, %v279, %v1055
        %vm1058 = vcmp.eq.f32.partialorder %v279, 0.0
        %v1059 = vand.u32 %v279, 2147483648
        %v1060 = vsel %vm1058, %v1059, %v1057
        %v1062 = vlaneseq
        %v1063 = vshrl.u32 %v1062, 7
        %v1064 = vsub.s32 0, %v1063
        %v1065 = vrot.slane %v329, %v1064
        %1066 = vset.pattern.permute.xlu0 0
        %1067 = vperm.xlu0 %1066, %v1065
        %v1068 = vpop.permute.xlu0 %1067
        %v1070 = vmul.f32 %v731, %v1068
        %v1071 = vmul.f32 %v738, %v1068
        %v1072 = vmul.f32 %v745, %v1068
        %v1073 = vmul.f32 %v752, %v1068
        %v1074 = vmul.f32 %v759, %v1068
        %v1075 = vmul.f32 %v766, %v1068
        %v1076 = vmul.f32 %v773, %v1068
        %v1077 = vmul.f32 %v780, %v1068
        %v1078 = vmul.f32 %v787, %v1068
        %v1079 = vmul.f32 %v794, %v1068
        %v1080 = vmul.f32 %v801, %v1068
        %v1081 = vmul.f32 %v808, %v1068
        %v1082 = vmul.f32 %v815, %v1068
        %v1083 = vmul.f32 %v822, %v1068
        %v1084 = vmul.f32 %v829, %v1068
        %v1085 = vmul.f32 %v836, %v1068
        %v1086 = vmul.f32 %v843, %v1068
        %v1087 = vmul.f32 %v850, %v1068
        %v1088 = vmul.f32 %v857, %v1068
        %v1089 = vmul.f32 %v864, %v1068
        %v1090 = vmul.f32 %v871, %v1068
        %v1091 = vmul.f32 %v878, %v1068
        %v1092 = vmul.f32 %v885, %v1068
        %v1093 = vmul.f32 %v892, %v1068
        %v1094 = vmul.f32 %v899, %v1068
        %v1095 = vmul.f32 %v906, %v1068
        %v1096 = vmul.f32 %v913, %v1068
        %v1097 = vmul.f32 %v920, %v1068
        %v1098 = vmul.f32 %v927, %v1068
        %v1099 = vmul.f32 %v934, %v1068
        %v1100 = vmul.f32 %v941, %v1068
        %v1101 = vmul.f32 %v948, %v1068
        %v1102 = vmul.f32 %v955, %v1068
        %v1103 = vmul.f32 %v962, %v1068
        %v1104 = vmul.f32 %v969, %v1068
        %v1105 = vmul.f32 %v976, %v1068
        %v1106 = vmul.f32 %v983, %v1068
        %v1107 = vmul.f32 %v990, %v1068
        %v1108 = vmul.f32 %v997, %v1068
        %v1109 = vmul.f32 %v1004, %v1068
        %v1110 = vmul.f32 %v1011, %v1068
        %v1111 = vmul.f32 %v1018, %v1068
        %v1112 = vmul.f32 %v1025, %v1068
        %v1113 = vmul.f32 %v1032, %v1068
        %v1114 = vmul.f32 %v1039, %v1068
        %v1115 = vmul.f32 %v1046, %v1068
        %v1116 = vmul.f32 %v1053, %v1068
        %v1117 = vmul.f32 %v1060, %v1068
        %v1118 = vsub.f32 %v677, %v1070
        %v1119 = vsub.f32 %v678, %v1071
        %v1120 = vsub.f32 %v679, %v1072
        %v1121 = vsub.f32 %v680, %v1073
        %v1122 = vsub.f32 %v681, %v1074
        %v1123 = vsub.f32 %v682, %v1075
        %v1124 = vsub.f32 %v683, %v1076
        %v1125 = vsub.f32 %v684, %v1077
        %v1126 = vsub.f32 %v685, %v1078
        %v1127 = vsub.f32 %v686, %v1079
        %v1128 = vsub.f32 %v687, %v1080
        %v1129 = vsub.f32 %v688, %v1081
        %v1130 = vsub.f32 %v689, %v1082
        %v1131 = vsub.f32 %v690, %v1083
        %v1132 = vsub.f32 %v691, %v1084
        %v1133 = vsub.f32 %v692, %v1085
        %v1134 = vsub.f32 %v693, %v1086
        %v1135 = vsub.f32 %v694, %v1087
        %v1136 = vsub.f32 %v695, %v1088
        %v1137 = vsub.f32 %v696, %v1089
        %v1138 = vsub.f32 %v697, %v1090
        %v1139 = vsub.f32 %v698, %v1091
        %v1140 = vsub.f32 %v699, %v1092
        %v1141 = vsub.f32 %v700, %v1093
        %v1142 = vsub.f32 %v701, %v1094
        %v1143 = vsub.f32 %v702, %v1095
        %v1144 = vsub.f32 %v703, %v1096
        %v1145 = vsub.f32 %v704, %v1097
        %v1146 = vsub.f32 %v705, %v1098
        %v1147 = vsub.f32 %v706, %v1099
        %v1148 = vsub.f32 %v707, %v1100
        %v1149 = vsub.f32 %v708, %v1101
        %v1150 = vsub.f32 %v709, %v1102
        %v1151 = vsub.f32 %v710, %v1103
        %v1152 = vsub.f32 %v711, %v1104
        %v1153 = vsub.f32 %v712, %v1105
        %v1154 = vsub.f32 %v713, %v1106
        %v1155 = vsub.f32 %v714, %v1107
        %v1156 = vsub.f32 %v715, %v1108
        %v1157 = vsub.f32 %v716, %v1109
        %v1158 = vsub.f32 %v717, %v1110
        %v1159 = vsub.f32 %v718, %v1111
        %v1160 = vsub.f32 %v719, %v1112
        %v1161 = vsub.f32 %v720, %v1113
        %v1162 = vsub.f32 %v721, %v1114
        %v1163 = vsub.f32 %v722, %v1115
        %v1164 = vsub.f32 %v723, %v1116
        %v1165 = vsub.f32 %v724, %v1117
        %v1166 = vmul.f32 %v1118, %v1118
        %v1167 = vmul.f32 %v1119, %v1119
        %v1168 = vmul.f32 %v1120, %v1120
        %v1169 = vmul.f32 %v1121, %v1121
        %v1170 = vmul.f32 %v1122, %v1122
        %v1171 = vmul.f32 %v1123, %v1123
        %v1172 = vmul.f32 %v1124, %v1124
        %v1173 = vmul.f32 %v1125, %v1125
        %v1174 = vmul.f32 %v1126, %v1126
        %v1175 = vmul.f32 %v1127, %v1127
        %v1176 = vmul.f32 %v1128, %v1128
        %v1177 = vmul.f32 %v1129, %v1129
        %v1178 = vmul.f32 %v1130, %v1130
        %v1179 = vmul.f32 %v1131, %v1131
        %v1180 = vmul.f32 %v1132, %v1132
        %v1181 = vmul.f32 %v1133, %v1133
        %v1182 = vmul.f32 %v1134, %v1134
        %v1183 = vmul.f32 %v1135, %v1135
        %v1184 = vmul.f32 %v1136, %v1136
        %v1185 = vmul.f32 %v1137, %v1137
        %v1186 = vmul.f32 %v1138, %v1138
        %v1187 = vmul.f32 %v1139, %v1139
        %v1188 = vmul.f32 %v1140, %v1140
        %v1189 = vmul.f32 %v1141, %v1141
        %v1190 = vmul.f32 %v1142, %v1142
        %v1191 = vmul.f32 %v1143, %v1143
        %v1192 = vmul.f32 %v1144, %v1144
        %v1193 = vmul.f32 %v1145, %v1145
        %v1194 = vmul.f32 %v1146, %v1146
        %v1195 = vmul.f32 %v1147, %v1147
        %v1196 = vmul.f32 %v1148, %v1148
        %v1197 = vmul.f32 %v1149, %v1149
        %v1198 = vmul.f32 %v1150, %v1150
        %v1199 = vmul.f32 %v1151, %v1151
        %v1200 = vmul.f32 %v1152, %v1152
        %v1201 = vmul.f32 %v1153, %v1153
        %v1202 = vmul.f32 %v1154, %v1154
        %v1203 = vmul.f32 %v1155, %v1155
        %v1204 = vmul.f32 %v1156, %v1156
        %v1205 = vmul.f32 %v1157, %v1157
        %v1206 = vmul.f32 %v1158, %v1158
        %v1207 = vmul.f32 %v1159, %v1159
        %v1208 = vmul.f32 %v1160, %v1160
        %v1209 = vmul.f32 %v1161, %v1161
        %v1210 = vmul.f32 %v1162, %v1162
        %v1211 = vmul.f32 %v1163, %v1163
        %v1212 = vmul.f32 %v1164, %v1164
        %v1213 = vmul.f32 %v1165, %v1165
        %v1214 = vadd.f32 %v1166, %v1167
        %v1215 = vadd.f32 %v1214, %v1168
        %v1216 = vadd.f32 %v1215, %v1169
        %v1217 = vadd.f32 %v1216, %v1170
        %v1218 = vadd.f32 %v1217, %v1171
        %v1219 = vadd.f32 %v1218, %v1172
        %v1220 = vadd.f32 %v1219, %v1173
        %v1221 = vadd.f32 %v1220, %v1174
        %v1222 = vadd.f32 %v1221, %v1175
        %v1223 = vadd.f32 %v1222, %v1176
        %v1224 = vadd.f32 %v1223, %v1177
        %v1225 = vadd.f32 %v1224, %v1178
        %v1226 = vadd.f32 %v1225, %v1179
        %v1227 = vadd.f32 %v1226, %v1180
        %v1228 = vadd.f32 %v1227, %v1181
        %v1229 = vadd.f32 %v1228, %v1182
        %v1230 = vadd.f32 %v1229, %v1183
        %v1231 = vadd.f32 %v1230, %v1184
        %v1232 = vadd.f32 %v1231, %v1185
        %v1233 = vadd.f32 %v1232, %v1186
        %v1234 = vadd.f32 %v1233, %v1187
        %v1235 = vadd.f32 %v1234, %v1188
        %v1236 = vadd.f32 %v1235, %v1189
        %v1237 = vadd.f32 %v1236, %v1190
        %v1238 = vadd.f32 %v1237, %v1191
        %v1239 = vadd.f32 %v1238, %v1192
        %v1240 = vadd.f32 %v1239, %v1193
        %v1241 = vadd.f32 %v1240, %v1194
        %v1242 = vadd.f32 %v1241, %v1195
        %v1243 = vadd.f32 %v1242, %v1196
        %v1244 = vadd.f32 %v1243, %v1197
        %v1245 = vadd.f32 %v1244, %v1198
        %v1246 = vadd.f32 %v1245, %v1199
        %v1247 = vadd.f32 %v1246, %v1200
        %v1248 = vadd.f32 %v1247, %v1201
        %v1249 = vadd.f32 %v1248, %v1202
        %v1250 = vadd.f32 %v1249, %v1203
        %v1251 = vadd.f32 %v1250, %v1204
        %v1252 = vadd.f32 %v1251, %v1205
        %v1253 = vadd.f32 %v1252, %v1206
        %v1254 = vadd.f32 %v1253, %v1207
        %v1255 = vadd.f32 %v1254, %v1208
        %v1256 = vadd.f32 %v1255, %v1209
        %v1257 = vadd.f32 %v1256, %v1210
        %v1258 = vadd.f32 %v1257, %v1211
        %v1259 = vadd.f32 %v1258, %v1212
        %v1260 = vadd.f32 %v1259, %v1213
        %1261 = vadd.xlane.f32.xlu0 %v1260
        %v1262 = vpop.xlane.xlu0 %1261
        %v1263 = vrot.slane %v1262, 4
        %v1264 = vadd.f32 %v1262, %v1263
        %v1265 = vrot.slane %v1264, 2
        %v1266 = vadd.f32 %v1264, %v1265
        %v1267 = vrot.slane %v1266, 1
        %v1268 = vadd.f32 %v1266, %v1267
        %s1269 = vtos %v1268
        %p1270 = scmp.eq.s32.totalorder %s16, 0
        // Predicated region
        $region37: #{hist_loss.5} parent=35 // pred_check
          %p1271 = pneg %p1270
        $region38: #{hist_loss.5} parent=35 // pred_check_branch
          %1273 = sbr.rel (%p1271) target = $region40
        $region39: #{hist_loss.5} parent=35 // pred_region
          %vm1274 = vcmask 0
          %1275 = vst.msk [vmem:[#allocation2] sm:$0x1] %vm1274, 0.0
        $region40: #{hist_loss.5} parent=35 // pred_fallthru
          _
        %v1276 = vld [vmem:[#allocation2] sm:$0x1]
        %v1277 = vstv %s1269
        %v1278 = vadd.f32 %v1276, %v1277
        %vm1279 = vcmask 0
        %1280 = vst.msk [vmem:[#allocation2] sm:$0x1] %vm1279, %v1278
        %p1281 = scmp.eq.s32.totalorder %s16, 1
        // Predicated region
        $region41: #{hist_loss.5} parent=35 // pred_check
          %p1282 = pneg %p1281
        $region42: #{hist_loss.5} parent=35 // pred_check_branch
          %1284 = sbr.rel (%p1282) target = $region44
        $region43: #{hist_loss.5} parent=35 // pred_region
          %v1285 = vld [vmem:[#allocation2] sm:$0x1]
          %v1286 = vrsqrt.pop %v1285
          %v1287 = vmul.f32 %v1285, %v1286
          %vm1288 = vcmp.eq.f32.partialorder %v1285, inf
          %v1289 = vsel %vm1288, %v1285, %v1287
          %vm1290 = vcmp.eq.f32.partialorder %v1285, 0.0
          %v1291 = vand.u32 %v1285, 2147483648
          %v1292 = vsel %vm1290, %v1291, %v1289
          %v1293 = vmul.f32 %v1292, 0.35355338
          %1294 = vst.msk [vmem:[#allocation2] sm:$0x1] %vm1279, %v1293
        $region44: #{hist_loss.5} parent=35 // pred_fallthru
          _
        // Predicated region
        $region45: #{hist_loss.5} parent=35 // pred_check
          %p1295 = pneg %p133
        $region46: #{hist_loss.5} parent=35 // pred_check_branch
          %1297 = sbr.rel (%p1295) target = $region48
        $region47: #{hist_loss.5} parent=35 // pred_region
          %s1299 = ssub.s32 16, 16
          %1300 = vsyncadd [#allocation3], %s1299
          %s1302 = sshll.u32 [#allocation2], 4
          %s1303 = int_to_ptr.vmem [resolvable:$true] %s1302
          %1305 = dma.vmem_to_hbm [thread:$0]  %s1303, 16, %s4, [#allocation3]
        $region48: #{hist_loss.5} parent=35 // pred_fallthru
          _
        // Predicated region
        $region49: #{hist_loss.5} parent=35 // pred_check
          %p1306 = pneg %p133
        $region50: #{hist_loss.5} parent=35 // pred_check_branch
          %1308 = sbr.rel (%p1306) target = $region52
        $region51: #{hist_loss.5} parent=35 // pred_region
          %1309 = dma.done [#allocation3], 16
        $region52: #{hist_loss.5} parent=35 // pred_fallthru
          _
      $region36: #{hist_loss.5} parent=5 // pred_fallthru
        _
      %p1310 = scmp.le.s32.totalorder 2, %s11
      // Predicated region
      $region53: #{hist_loss.5} parent=5 // pred_check
        %p1311 = pneg %p1310
      $region54: #{hist_loss.5} parent=5 // pred_check_branch
        %1313 = sbr.rel (%p1311) target = $region56
      $region55: #{hist_loss.5} parent=5 // pred_region
        %s1314 = ssub.s32 %s11, 2
      $region56: #{hist_loss.5} parent=5 // pred_fallthru
        _
    $region6: #{hist_loss.5} parent=1 // loop_footer
      %s15 = sadd.s32 1, %s11
    $region7: #{hist_loss.5} parent=1 // loop_footer_branch
      %10 = sbr.rel target = $region3
    $region8: #{hist_loss.5} parent=1 // loop_exit
      _
    %1315 = vsyncpa [#allocation3], 1
    %s1316 = scalar_lea.sflag [#allocation3], 1
    %1317 = vsyncpa %s1316, 1

// kernel: hist_loss.4
$region0: #{hist_loss.4}
  #allocation0 [shape = 'u32[]', space=smem, size = 0x4, offset = 0x4, fixed_abs, tag = 'smem constant byte address 0x4 - core index']
  #allocation1 [shape = 'u32[144,128]{1,0:T(1,128)}', space=vmem, size = 0x12000, scoped, tag = 'internal scratch']
  #allocation2 [shape = 'f32[3,128,128]{2,1,0:T(8,128)}', space=vmem, size = 0x30000, scoped, tag = 'scratch operand']
  %s0 = inlined_call_operand.vmem [shape: f32[2,4,256], index: 0, kind: input, shape index: {}]
  %s1 = inlined_call_operand.vmem [shape: f32[2,256,3], index: 1, kind: input, shape index: {}]
  %s2 = inlined_call_operand.vmem [shape: f32[2,3,128,128], index: 2, kind: output, shape index: {0}]
  %s3 = inlined_call_operand.vmem [shape: f32[2,1,1], index: 3, kind: output, shape index: {1}]
  %4 = xla_tuple %s2, %s3
  %s5 = sld [smem:[#allocation0]]
  $region57: #{hist_loss.4} parent=0
    _
  %s7 = ssub.s32 1, %s5
  %s8 = scalar_select 0, %s7, %s5
  loop: start=0, step=1, limit=4
  $region2: #{hist_loss.4} parent=0 // loop_pre_header
    _
  $region3: #{hist_loss.4} parent=0 // loop_header
    %s10 = sphi 0, %s14
    %p11 = scmp.ge.s32.totalorder %s10, 4
    %s17 = sphi 0, %s29
    %s18 = sphi 0, %s25
    %s19 = sphi 0, %s17
    %s20 = sphi 0, %s18
    %s21 = sphi 0, %s19
    %s22 = sphi 0, %s20
    %s34 = sphi 0, %s36
    %s37 = sphi 0, %s34
    %s38 = sphi 0, %s37
    %s54 = sphi 0, %s38
    %s62 = sphi 0, %s64
    %s65 = sphi 0, %s62
    %s66 = sphi 0, %s65
    %s82 = sphi 0, %s66
    %s88 = sphi 0, %s90
    %s91 = sphi 0, %s88
    %s92 = sphi 0, %s91
    %s108 = sphi 0, %s92
    %s114 = sphi 0, %s116
    %s117 = sphi 0, %s114
    %s118 = sphi 0, %s117
    %s134 = sphi 0, %s118
  $region4: #{hist_loss.4} parent=0 // loop_header_branch
    %13 = sbr.rel (%p11) target = $region8
  $region5: #{hist_loss.4} parent=0 // loop_body
    %s15 = ssub.s32 %s10, 1
    %s16 = ssub.s32 %s10, 2
    %s23 = sadd.s32 1, %s18
    %p24 = scmp.ge.s32.totalorder %s23, 1
    %s25 = scalar_select %p24, 0, %s23
    %s26 = sadd.s32 1, %s17
    %s27 = scalar_select %p24, %s26, %s17
    %p28 = scmp.ge.s32.totalorder %s27, 2
    %s29 = scalar_select %p28, 0, %s27
    %s30 = ssub.s32 %s17, %s29
    %s31 = ssub.s32 %s18, %s25
    %s32 = sor.u32 %s30, %s31
    %p33 = scmp.eq.s32.totalorder %s32, 0
    %s35 = sadd.s32 %s34, 1
    %s36 = scalar_select %p33, %s34, %s35
    %p39 = pneg %p33
    %p40 = scmp.eq.s32.totalorder %s10, 1
    %p41 = por %p39, %p40
    %p42 = scmp.ne.s32.totalorder %s34, %s37
    %p43 = scmp.eq.s32.totalorder %s10, 0
    %p44 = por %p42, %p43
    %p45 = scmp.ne.s32.totalorder %s34, %s37
    %p46 = scmp.eq.s32.totalorder %s15, 1
    %p47 = por %p45, %p46
    %p48 = scmp.ne.s32.totalorder %s37, %s38
    %p49 = scmp.eq.s32.totalorder %s15, 0
    %p50 = por %p48, %p49
    %p51 = scmp.ne.s32.totalorder %s37, %s38
    %p52 = scmp.eq.s32.totalorder %s16, 1
    %p53 = por %p51, %p52
    %p55 = scmp.ne.s32.totalorder %s38, %s54
    %p56 = scmp.eq.s32.totalorder %s16, 0
    %p57 = por %p55, %p56
    %s58 = ssub.s32 %s17, %s29
    %s59 = ssub.s32 %s18, %s25
    %s60 = sor.u32 %s58, %s59
    %p61 = scmp.eq.s32.totalorder %s60, 0
    %s63 = sadd.s32 %s62, 1
    %s64 = scalar_select %p61, %s62, %s63
    %p67 = pneg %p61
    %p68 = scmp.eq.s32.totalorder %s10, 1
    %p69 = por %p67, %p68
    %p70 = scmp.ne.s32.totalorder %s62, %s65
    %p71 = scmp.eq.s32.totalorder %s10, 0
    %p72 = por %p70, %p71
    %p73 = scmp.ne.s32.totalorder %s62, %s65
    %p74 = scmp.eq.s32.totalorder %s15, 1
    %p75 = por %p73, %p74
    %p76 = scmp.ne.s32.totalorder %s65, %s66
    %p77 = scmp.eq.s32.totalorder %s15, 0
    %p78 = por %p76, %p77
    %p79 = scmp.ne.s32.totalorder %s65, %s66
    %p80 = scmp.eq.s32.totalorder %s16, 1
    %p81 = por %p79, %p80
    %p83 = scmp.ne.s32.totalorder %s66, %s82
    %p84 = scmp.eq.s32.totalorder %s16, 0
    %p85 = por %p83, %p84
    %s86 = ssub.s32 %s17, %s29
    %p87 = scmp.eq.s32.totalorder %s86, 0
    %s89 = sadd.s32 %s88, 1
    %s90 = scalar_select %p87, %s88, %s89
    %p93 = pneg %p87
    %p94 = scmp.eq.s32.totalorder %s10, 1
    %p95 = por %p93, %p94
    %p96 = scmp.ne.s32.totalorder %s88, %s91
    %p97 = scmp.eq.s32.totalorder %s10, 0
    %p98 = por %p96, %p97
    %p99 = scmp.ne.s32.totalorder %s88, %s91
    %p100 = scmp.eq.s32.totalorder %s15, 1
    %p101 = por %p99, %p100
    %p102 = scmp.ne.s32.totalorder %s91, %s92
    %p103 = scmp.eq.s32.totalorder %s15, 0
    %p104 = por %p102, %p103
    %p105 = scmp.ne.s32.totalorder %s91, %s92
    %p106 = scmp.eq.s32.totalorder %s16, 1
    %p107 = por %p105, %p106
    %p109 = scmp.ne.s32.totalorder %s92, %s108
    %p110 = scmp.eq.s32.totalorder %s16, 0
    %p111 = por %p109, %p110
    %s112 = ssub.s32 %s17, %s29
    %p113 = scmp.eq.s32.totalorder %s112, 0
    %s115 = sadd.s32 %s114, 1
    %s116 = scalar_select %p113, %s114, %s115
    %p119 = pneg %p113
    %p120 = scmp.eq.s32.totalorder %s10, 1
    %p121 = por %p119, %p120
    %p122 = scmp.ne.s32.totalorder %s114, %s117
    %p123 = scmp.eq.s32.totalorder %s10, 0
    %p124 = por %p122, %p123
    %p125 = scmp.ne.s32.totalorder %s114, %s117
    %p126 = scmp.eq.s32.totalorder %s15, 1
    %p127 = por %p125, %p126
    %p128 = scmp.ne.s32.totalorder %s117, %s118
    %p129 = scmp.eq.s32.totalorder %s15, 0
    %p130 = por %p128, %p129
    %p131 = scmp.ne.s32.totalorder %s117, %s118
    %p132 = scmp.eq.s32.totalorder %s16, 1
    %p133 = por %p131, %p132
    %p135 = scmp.ne.s32.totalorder %s118, %s134
    %p136 = scmp.eq.s32.totalorder %s16, 0
    %p137 = por %p135, %p136
    %p138 = scmp.le.s32.totalorder 1, %s10
    %p139 = scmp.lt.s32.totalorder %s10, 3
    %p140 = pnand %p138, %p139
    %p141 = pneg %p140
    // Predicated region
    $region9: #{hist_loss.4} parent=5 // pred_check
      _
    $region10: #{hist_loss.4} parent=5 // pred_check_branch
      %143 = sbr.rel (%p140) target = $region12
    $region11: #{hist_loss.4} parent=5 // pred_region
      %s144 = ssub.s32 %s10, 1
    $region12: #{hist_loss.4} parent=5 // pred_fallthru
      _
    %p145 = scmp.lt.s32.totalorder %s10, 2
    // Predicated region
    $region13: #{hist_loss.4} parent=5 // pred_check
      %p146 = pneg %p145
    $region14: #{hist_loss.4} parent=5 // pred_check_branch
      %148 = sbr.rel (%p146) target = $region16
    $region15: #{hist_loss.4} parent=5 // pred_region
      // Predicated region
      $region17: #{hist_loss.4} parent=15 // pred_check
        %p149 = pneg %p44
      $region18: #{hist_loss.4} parent=15 // pred_check_branch
        %151 = sbr.rel (%p149) target = $region20
      $region19: #{hist_loss.4} parent=15 // pred_region
        %s152 = smul.u32 2, %s18
        %p153 = scmp.lt.s32.totalorder %s17, 1
        %s154 = scalar_select %p153, %s17, 1
        %p155 = scmp.lt.s32.totalorder %s152, 1
        %s156 = scalar_select %p155, %s152, 1
        %s157 = smul.addr %s154, 2
        %s158 = sadd.s32 %s156, %s157
        %s159 = smul.addr %s158, 4
        %s160 = scalar_lea.vmem %s0, %s159
        %s161 = smul.u32 2, %s18
      $region20: #{hist_loss.4} parent=15 // pred_fallthru
        _
      // Predicated region
      $region21: #{hist_loss.4} parent=15 // pred_check
        %p162 = pneg %p72
      $region22: #{hist_loss.4} parent=15 // pred_check_branch
        %164 = sbr.rel (%p162) target = $region24
      $region23: #{hist_loss.4} parent=15 // pred_region
        %s165 = smul.u32 32, %s18
        %p166 = scmp.lt.s32.totalorder %s17, 1
        %s167 = scalar_select %p166, %s17, 1
        %p168 = scmp.lt.s32.totalorder %s165, 31
        %s169 = scalar_select %p168, %s165, 31
        %s170 = smul.addr %s167, 32
        %s171 = sadd.s32 %s169, %s170
        %s172 = smul.addr %s171, 8
        %s173 = scalar_lea.vmem %s1, %s172
        %s174 = smul.u32 32, %s18
      $region24: #{hist_loss.4} parent=15 // pred_fallthru
        _
    $region16: #{hist_loss.4} parent=5 // pred_fallthru
      _
    %p175 = scmp.le.s32.totalorder 1, %s10
    %p176 = scmp.lt.s32.totalorder %s10, 3
    %p177 = pnand %p175, %p176
    %p178 = pneg %p177
    // Predicated region
    $region25: #{hist_loss.4} parent=5 // pred_check
      _
    $region26: #{hist_loss.4} parent=5 // pred_check_branch
      %180 = sbr.rel (%p177) target = $region28
    $region27: #{hist_loss.4} parent=5 // pred_region
      %s181 = ssub.s32 %s10, 1
      %s182 = smul.u32 2, %s20
      %p183 = scmp.lt.s32.totalorder %s19, 1
      %s184 = scalar_select %p183, %s19, 1
      %p185 = scmp.lt.s32.totalorder %s182, 1
      %s186 = scalar_select %p185, %s182, 1
      %s187 = smul.addr %s184, 2
      %s188 = sadd.s32 %s186, %s187
      %s189 = smul.addr %s188, 4
      %s190 = scalar_lea.vmem %s0, %s189
      %p191 = pneg %p50
      %p192 = pneg %p47
      %s193 = smul.u32 32, %s20
      %p194 = scmp.lt.s32.totalorder %s19, 1
      %s195 = scalar_select %p194, %s19, 1
      %p196 = scmp.lt.s32.totalorder %s193, 31
      %s197 = scalar_select %p196, %s193, 31
      %s198 = smul.addr %s195, 32
      %s199 = sadd.s32 %s197, %s198
      %s200 = smul.addr %s199, 8
      %s201 = scalar_lea.vmem %s1, %s200
      %p202 = pneg %p78
      %p203 = pneg %p75
      %p204 = pneg %p104
      %p205 = pneg %p101
      %p206 = scmp.lt.s32.totalorder %s19, 1
      %s207 = scalar_select %p206, %s19, 1
      %s208 = smul.addr %s207, 48
      %s209 = smul.addr %s208, 8
      %s210 = scalar_lea.vmem %s2, %s209
      %p211 = pneg %p130
      %p212 = pneg %p127
      %p213 = scmp.lt.s32.totalorder %s19, 1
      %s214 = scalar_select %p213, %s19, 1
      %s215 = scalar_lea.vmem %s3, %s214
      %s216 = smul.u32 2, %s20
      %p217 = scmp.lt.s32.totalorder %s19, 1
      %s218 = scalar_select %p217, %s19, 1
      %p219 = scmp.lt.s32.totalorder %s216, 1
      %s220 = scalar_select %p219, %s216, 1
      %s221 = smul.addr %s218, 2
      %s222 = sadd.s32 %s220, %s221
      %s223 = smul.addr %s222, 4
      %s224 = scalar_lea.vmem %s0, %s223
      %s225 = smul.u32 2, %s20
      %s226 = smul.u32 32, %s20
      %p227 = scmp.lt.s32.totalorder %s19, 1
      %s228 = scalar_select %p227, %s19, 1
      %p229 = scmp.lt.s32.totalorder %s226, 31
      %s230 = scalar_select %p229, %s226, 31
      %s231 = smul.addr %s228, 32
      %s232 = sadd.s32 %s230, %s231
      %s233 = smul.addr %s232, 8
      %s234 = scalar_lea.vmem %s1, %s233
      %s235 = smul.u32 32, %s20
      %p236 = scmp.lt.s32.totalorder %s19, 1
      %s237 = scalar_select %p236, %s19, 1
      %s238 = smul.addr %s237, 48
      %s239 = smul.addr %s238, 8
      %s240 = scalar_lea.vmem %s2, %s239
      %p241 = scmp.lt.s32.totalorder %s19, 1
      %s242 = scalar_select %p241, %s19, 1
      %s243 = scalar_lea.vmem %s3, %s242
      %p245 = scmp.eq.s32.totalorder %s20, 0
      // Predicated region
      $region29: #{hist_loss.4} parent=27 // pred_check
        %p246 = pneg %p245
      $region30: #{hist_loss.4} parent=27 // pred_check_branch
        %248 = sbr.rel (%p246) target = $region32
      $region31: #{hist_loss.4} parent=27 // pred_region
        %249 = vst [vmem:[#allocation2] sm:$0xff] 0.0
        %250 = vst [vmem:[#allocation2 + $0x8] sm:$0xff] 0.0
        %251 = vst [vmem:[#allocation2 + $0x10] sm:$0xff] 0.0
        %252 = vst [vmem:[#allocation2 + $0x18] sm:$0xff] 0.0
        %253 = vst [vmem:[#allocation2 + $0x20] sm:$0xff] 0.0
        %254 = vst [vmem:[#allocation2 + $0x28] sm:$0xff] 0.0
        %255 = vst [vmem:[#allocation2 + $0x30] sm:$0xff] 0.0
        %256 = vst [vmem:[#allocation2 + $0x38] sm:$0xff] 0.0
        %257 = vst [vmem:[#allocation2 + $0x40] sm:$0xff] 0.0
        %258 = vst [vmem:[#allocation2 + $0x48] sm:$0xff] 0.0
        %259 = vst [vmem:[#allocation2 + $0x50] sm:$0xff] 0.0
        %260 = vst [vmem:[#allocation2 + $0x58] sm:$0xff] 0.0
        %261 = vst [vmem:[#allocation2 + $0x60] sm:$0xff] 0.0
        %262 = vst [vmem:[#allocation2 + $0x68] sm:$0xff] 0.0
        %263 = vst [vmem:[#allocation2 + $0x70] sm:$0xff] 0.0
        %264 = vst [vmem:[#allocation2 + $0x78] sm:$0xff] 0.0
        %265 = vst [vmem:[#allocation2 + $0x80] sm:$0xff] 0.0
        %266 = vst [vmem:[#allocation2 + $0x88] sm:$0xff] 0.0
        %267 = vst [vmem:[#allocation2 + $0x90] sm:$0xff] 0.0
        %268 = vst [vmem:[#allocation2 + $0x98] sm:$0xff] 0.0
        %269 = vst [vmem:[#allocation2 + $0xa0] sm:$0xff] 0.0
        %270 = vst [vmem:[#allocation2 + $0xa8] sm:$0xff] 0.0
        %271 = vst [vmem:[#allocation2 + $0xb0] sm:$0xff] 0.0
        %272 = vst [vmem:[#allocation2 + $0xb8] sm:$0xff] 0.0
        %273 = vst [vmem:[#allocation2 + $0xc0] sm:$0xff] 0.0
        %274 = vst [vmem:[#allocation2 + $0xc8] sm:$0xff] 0.0
        %275 = vst [vmem:[#allocation2 + $0xd0] sm:$0xff] 0.0
        %276 = vst [vmem:[#allocation2 + $0xd8] sm:$0xff] 0.0
        %277 = vst [vmem:[#allocation2 + $0xe0] sm:$0xff] 0.0
        %278 = vst [vmem:[#allocation2 + $0xe8] sm:$0xff] 0.0
        %279 = vst [vmem:[#allocation2 + $0xf0] sm:$0xff] 0.0
        %280 = vst [vmem:[#allocation2 + $0xf8] sm:$0xff] 0.0
        %281 = vst [vmem:[#allocation2 + $0x100] sm:$0xff] 0.0
        %282 = vst [vmem:[#allocation2 + $0x108] sm:$0xff] 0.0
        %283 = vst [vmem:[#allocation2 + $0x110] sm:$0xff] 0.0
        %284 = vst [vmem:[#allocation2 + $0x118] sm:$0xff] 0.0
        %285 = vst [vmem:[#allocation2 + $0x120] sm:$0xff] 0.0
        %286 = vst [vmem:[#allocation2 + $0x128] sm:$0xff] 0.0
        %287 = vst [vmem:[#allocation2 + $0x130] sm:$0xff] 0.0
        %288 = vst [vmem:[#allocation2 + $0x138] sm:$0xff] 0.0
        %289 = vst [vmem:[#allocation2 + $0x140] sm:$0xff] 0.0
        %290 = vst [vmem:[#allocation2 + $0x148] sm:$0xff] 0.0
        %291 = vst [vmem:[#allocation2 + $0x150] sm:$0xff] 0.0
        %292 = vst [vmem:[#allocation2 + $0x158] sm:$0xff] 0.0
        %293 = vst [vmem:[#allocation2 + $0x160] sm:$0xff] 0.0
        %294 = vst [vmem:[#allocation2 + $0x168] sm:$0xff] 0.0
        %295 = vst [vmem:[#allocation2 + $0x170] sm:$0xff] 0.0
        %296 = vst [vmem:[#allocation2 + $0x178] sm:$0xff] 0.0
      $region32: #{hist_loss.4} parent=27 // pred_fallthru
        _
      %v297 = vlaneseq
      %v298 = vshrl.u32 %v297, 7
      %v299 = vadd.s32 %v298, 8
      %v300 = vadd.s32 %v298, 16
      %v301 = vadd.s32 %v298, 24
      %v302 = vadd.s32 %v298, 32
      %v303 = vadd.s32 %v298, 40
      %v304 = vadd.s32 %v298, 48
      %v305 = vadd.s32 %v298, 56
      %v306 = vadd.s32 %v298, 64
      %v307 = vadd.s32 %v298, 72
      %v308 = vadd.s32 %v298, 80
      %v309 = vadd.s32 %v298, 88
      %v310 = vadd.s32 %v298, 96
      %v311 = vadd.s32 %v298, 104
      %v312 = vadd.s32 %v298, 112
      %v313 = vadd.s32 %v298, 120
      %v314 = vcvt.s32.f32 %v298
      %v315 = vcvt.s32.f32 %v299
      %v316 = vcvt.s32.f32 %v300
      %v317 = vcvt.s32.f32 %v301
      %v318 = vcvt.s32.f32 %v302
      %v319 = vcvt.s32.f32 %v303
      %v320 = vcvt.s32.f32 %v304
      %v321 = vcvt.s32.f32 %v305
      %v322 = vcvt.s32.f32 %v306
      %v323 = vcvt.s32.f32 %v307
      %v324 = vcvt.s32.f32 %v308
      %v325 = vcvt.s32.f32 %v309
      %v326 = vcvt.s32.f32 %v310
      %v327 = vcvt.s32.f32 %v311
      %v328 = vcvt.s32.f32 %v312
      %v329 = vcvt.s32.f32 %v313
      %v330 = vmul.f32 %v314, 2.3622048
      %v331 = vmul.f32 %v315, 2.3622048
      %v332 = vmul.f32 %v316, 2.3622048
      %v333 = vmul.f32 %v317, 2.3622048
      %v334 = vmul.f32 %v318, 2.3622048
      %v335 = vmul.f32 %v319, 2.3622048
      %v336 = vmul.f32 %v320, 2.3622048
      %v337 = vmul.f32 %v321, 2.3622048
      %v338 = vmul.f32 %v322, 2.3622048
      %v339 = vmul.f32 %v323, 2.3622048
      %v340 = vmul.f32 %v324, 2.3622048
      %v341 = vmul.f32 %v325, 2.3622048
      %v342 = vmul.f32 %v326, 2.3622048
      %v343 = vmul.f32 %v327, 2.3622048
      %v344 = vmul.f32 %v328, 2.3622048
      %v345 = vmul.f32 %v329, 2.3622048
      %v346 = vadd.f32 %v330, -150.0
      %v347 = vadd.f32 %v331, -150.0
      %v348 = vadd.f32 %v332, -150.0
      %v349 = vadd.f32 %v333, -150.0
      %v350 = vadd.f32 %v334, -150.0
      %v351 = vadd.f32 %v335, -150.0
      %v352 = vadd.f32 %v336, -150.0
      %v353 = vadd.f32 %v337, -150.0
      %v354 = vadd.f32 %v338, -150.0
      %v355 = vadd.f32 %v339, -150.0
      %v356 = vadd.f32 %v340, -150.0
      %v357 = vadd.f32 %v341, -150.0
      %v358 = vadd.f32 %v342, -150.0
      %v359 = vadd.f32 %v343, -150.0
      %v360 = vadd.f32 %v344, -150.0
      %v361 = vadd.f32 %v345, -150.0
      %v362 = vlaneseq
      %v363 = vand.u32 %v362, 127
      %v364 = vcvt.s32.f32 %v363
      %v365 = vmul.f32 %v364, 2.3622048
      %v366 = vadd.f32 %v365, -150.0
      %s367 = scalar_lea.vmem %s224, 3
      %v368 = vld [vmem:[%s367] ss:$4 sm:$0x3]
      %v369 = vld [vmem:[%s224] ss:$4 sm:$0x3]
      %v371 = vlaneseq
      %v372 = vshrl.u32 %v371, 7
      %v373 = vsub.s32 0, %v372
      %v374 = vrot.slane %v369, %v373
      %v375 = vlaneseq
      %v376 = vshrl.u32 %v375, 7
      %v377 = vsub.s32 1, %v376
      %v378 = vrot.slane %v369, %v377
      %v381 = vsub.f32 %v374, %v346
      %v382 = vsub.f32 %v378, %v346
      %v383 = vsub.f32 %v374, %v347
      %v384 = vsub.f32 %v378, %v347
      %v385 = vsub.f32 %v374, %v348
      %v386 = vsub.f32 %v378, %v348
      %v387 = vsub.f32 %v374, %v349
      %v388 = vsub.f32 %v378, %v349
      %v389 = vsub.f32 %v374, %v350
      %v390 = vsub.f32 %v378, %v350
      %v391 = vsub.f32 %v374, %v351
      %v392 = vsub.f32 %v378, %v351
      %v393 = vsub.f32 %v374, %v352
      %v394 = vsub.f32 %v378, %v352
      %v395 = vsub.f32 %v374, %v353
      %v396 = vsub.f32 %v378, %v353
      %v397 = vsub.f32 %v374, %v354
      %v398 = vsub.f32 %v378, %v354
      %v399 = vsub.f32 %v374, %v355
      %v400 = vsub.f32 %v378, %v355
      %v401 = vsub.f32 %v374, %v356
      %v402 = vsub.f32 %v378, %v356
      %v403 = vsub.f32 %v374, %v357
      %v404 = vsub.f32 %v378, %v357
      %v405 = vsub.f32 %v374, %v358
      %v406 = vsub.f32 %v378, %v358
      %v407 = vsub.f32 %v374, %v359
      %v408 = vsub.f32 %v378, %v359
      %v409 = vsub.f32 %v374, %v360
      %v410 = vsub.f32 %v378, %v360
      %v411 = vsub.f32 %v374, %v361
      %v412 = vsub.f32 %v378, %v361
      %v413 = vmul.f32 %v381, %v381
      %v414 = vmul.f32 %v382, %v382
      %v415 = vmul.f32 %v383, %v383
      %v416 = vmul.f32 %v384, %v384
      %v417 = vmul.f32 %v385, %v385
      %v418 = vmul.f32 %v386, %v386
      %v419 = vmul.f32 %v387, %v387
      %v420 = vmul.f32 %v388, %v388
      %v421 = vmul.f32 %v389, %v389
      %v422 = vmul.f32 %v390, %v390
      %v423 = vmul.f32 %v391, %v391
      %v424 = vmul.f32 %v392, %v392
      %v425 = vmul.f32 %v393, %v393
      %v426 = vmul.f32 %v394, %v394
      %v427 = vmul.f32 %v395, %v395
      %v428 = vmul.f32 %v396, %v396
      %v429 = vmul.f32 %v397, %v397
      %v430 = vmul.f32 %v398, %v398
      %v431 = vmul.f32 %v399, %v399
      %v432 = vmul.f32 %v400, %v400
      %v433 = vmul.f32 %v401, %v401
      %v434 = vmul.f32 %v402, %v402
      %v435 = vmul.f32 %v403, %v403
      %v436 = vmul.f32 %v404, %v404
      %v437 = vmul.f32 %v405, %v405
      %v438 = vmul.f32 %v406, %v406
      %v439 = vmul.f32 %v407, %v407
      %v440 = vmul.f32 %v408, %v408
      %v441 = vmul.f32 %v409, %v409
      %v442 = vmul.f32 %v410, %v410
      %v443 = vmul.f32 %v411, %v411
      %v444 = vmul.f32 %v412, %v412
      %v445 = vadd.f32 %v413, 1.0
      %v446 = vadd.f32 %v414, 1.0
      %v447 = vadd.f32 %v415, 1.0
      %v448 = vadd.f32 %v416, 1.0
      %v449 = vadd.f32 %v417, 1.0
      %v450 = vadd.f32 %v418, 1.0
      %v451 = vadd.f32 %v419, 1.0
      %v452 = vadd.f32 %v420, 1.0
      %v453 = vadd.f32 %v421, 1.0
      %v454 = vadd.f32 %v422, 1.0
      %v455 = vadd.f32 %v423, 1.0
      %v456 = vadd.f32 %v424, 1.0
      %v457 = vadd.f32 %v425, 1.0
      %v458 = vadd.f32 %v426, 1.0
      %v459 = vadd.f32 %v427, 1.0
      %v460 = vadd.f32 %v428, 1.0
      %v461 = vadd.f32 %v429, 1.0
      %v462 = vadd.f32 %v430, 1.0
      %v463 = vadd.f32 %v431, 1.0
      %v464 = vadd.f32 %v432, 1.0
      %v465 = vadd.f32 %v433, 1.0
      %v466 = vadd.f32 %v434, 1.0
      %v467 = vadd.f32 %v435, 1.0
      %v468 = vadd.f32 %v436, 1.0
      %v469 = vadd.f32 %v437, 1.0
      %v470 = vadd.f32 %v438, 1.0
      %v471 = vadd.f32 %v439, 1.0
      %v472 = vadd.f32 %v440, 1.0
      %v473 = vadd.f32 %v441, 1.0
      %v474 = vadd.f32 %v442, 1.0
      %v475 = vadd.f32 %v443, 1.0
      %v476 = vadd.f32 %v444, 1.0
      %v477 = vrcp.pop %v445
      %v478 = vrcp.pop %v446
      %v479 = vrcp.pop %v447
      %v480 = vrcp.pop %v448
      %v481 = vrcp.pop %v449
      %v482 = vrcp.pop %v450
      %v483 = vrcp.pop %v451
      %v484 = vrcp.pop %v452
      %v485 = vrcp.pop %v453
      %v486 = vrcp.pop %v454
      %v487 = vrcp.pop %v455
      %v488 = vrcp.pop %v456
      %v489 = vrcp.pop %v457
      %v490 = vrcp.pop %v458
      %v491 = vrcp.pop %v459
      %v492 = vrcp.pop %v460
      %v493 = vrcp.pop %v461
      %v494 = vrcp.pop %v462
      %v495 = vrcp.pop %v463
      %v496 = vrcp.pop %v464
      %v497 = vrcp.pop %v465
      %v498 = vrcp.pop %v466
      %v499 = vrcp.pop %v467
      %v500 = vrcp.pop %v468
      %v501 = vrcp.pop %v469
      %v502 = vrcp.pop %v470
      %v503 = vrcp.pop %v471
      %v504 = vrcp.pop %v472
      %v505 = vrcp.pop %v473
      %v506 = vrcp.pop %v474
      %v507 = vrcp.pop %v475
      %v508 = vrcp.pop %v476
      %v510 = vlaneseq
      %v511 = vshrl.u32 %v510, 7
      %v512 = vsub.s32 0, %v511
      %v513 = vrot.slane %v368, %v512
      %v514 = vlaneseq
      %v515 = vshrl.u32 %v514, 7
      %v516 = vsub.s32 1, %v515
      %v517 = vrot.slane %v368, %v516
      %v520 = vmul.f32 %v513, %v477
      %v521 = vmul.f32 %v517, %v478
      %v522 = vmul.f32 %v513, %v479
      %v523 = vmul.f32 %v517, %v480
      %v524 = vmul.f32 %v513, %v481
      %v525 = vmul.f32 %v517, %v482
      %v526 = vmul.f32 %v513, %v483
      %v527 = vmul.f32 %v517, %v484
      %v528 = vmul.f32 %v513, %v485
      %v529 = vmul.f32 %v517, %v486
      %v530 = vmul.f32 %v513, %v487
      %v531 = vmul.f32 %v517, %v488
      %v532 = vmul.f32 %v513, %v489
      %v533 = vmul.f32 %v517, %v490
      %v534 = vmul.f32 %v513, %v491
      %v535 = vmul.f32 %v517, %v492
      %v536 = vmul.f32 %v513, %v493
      %v537 = vmul.f32 %v517, %v494
      %v538 = vmul.f32 %v513, %v495
      %v539 = vmul.f32 %v517, %v496
      %v540 = vmul.f32 %v513, %v497
      %v541 = vmul.f32 %v517, %v498
      %v542 = vmul.f32 %v513, %v499
      %v543 = vmul.f32 %v517, %v500
      %v544 = vmul.f32 %v513, %v501
      %v545 = vmul.f32 %v517, %v502
      %v546 = vmul.f32 %v513, %v503
      %v547 = vmul.f32 %v517, %v504
      %v548 = vmul.f32 %v513, %v505
      %v549 = vmul.f32 %v517, %v506
      %v550 = vmul.f32 %v513, %v507
      %v551 = vmul.f32 %v517, %v508
      %v552 = vld [vmem:[%s234] sm:$0xff]
      %v553 = vld [vmem:[%s234 + $0x8] sm:$0xff]
      %v554 = vld [vmem:[%s234 + $0x10] sm:$0xff]
      %v555 = vld [vmem:[%s234 + $0x18] sm:$0xff]
      %v556 = vld [vmem:[%s234 + $0x20] sm:$0xff]
      %v557 = vld [vmem:[%s234 + $0x28] sm:$0xff]
      %v558 = vld [vmem:[%s234 + $0x30] sm:$0xff]
      %v559 = vld [vmem:[%s234 + $0x38] sm:$0xff]
      %v560 = vld [vmem:[%s234 + $0x40] sm:$0xff]
      %v561 = vld [vmem:[%s234 + $0x48] sm:$0xff]
      %v562 = vld [vmem:[%s234 + $0x50] sm:$0xff]
      %v563 = vld [vmem:[%s234 + $0x58] sm:$0xff]
      %v564 = vld [vmem:[%s234 + $0x60] sm:$0xff]
      %v565 = vld [vmem:[%s234 + $0x68] sm:$0xff]
      %v566 = vld [vmem:[%s234 + $0x70] sm:$0xff]
      %v567 = vld [vmem:[%s234 + $0x78] sm:$0xff]
      %v568 = vld [vmem:[%s234 + $0x80] sm:$0xff]
      %v569 = vld [vmem:[%s234 + $0x88] sm:$0xff]
      %v570 = vld [vmem:[%s234 + $0x90] sm:$0xff]
      %v571 = vld [vmem:[%s234 + $0x98] sm:$0xff]
      %v572 = vld [vmem:[%s234 + $0xa0] sm:$0xff]
      %v573 = vld [vmem:[%s234 + $0xa8] sm:$0xff]
      %v574 = vld [vmem:[%s234 + $0xb0] sm:$0xff]
      %v575 = vld [vmem:[%s234 + $0xb8] sm:$0xff]
      %v576 = vld [vmem:[%s234 + $0xc0] sm:$0xff]
      %v577 = vld [vmem:[%s234 + $0xc8] sm:$0xff]
      %v578 = vld [vmem:[%s234 + $0xd0] sm:$0xff]
      %v579 = vld [vmem:[%s234 + $0xd8] sm:$0xff]
      %v580 = vld [vmem:[%s234 + $0xe0] sm:$0xff]
      %v581 = vld [vmem:[%s234 + $0xe8] sm:$0xff]
      %v582 = vld [vmem:[%s234 + $0xf0] sm:$0xff]
      %v583 = vld [vmem:[%s234 + $0xf8] sm:$0xff]
      %585 = vset.pattern.permute.xlu0 0
      %586 = vperm.xlu0 %585, %v552
      %v587 = vpop.permute.xlu0 %586
      %590 = vset.pattern.permute.xlu0 0
      %591 = vperm.xlu0 %590, %v553
      %v592 = vpop.permute.xlu0 %591
      %595 = vset.pattern.permute.xlu0 0
      %596 = vperm.xlu0 %595, %v554
      %v597 = vpop.permute.xlu0 %596
      %600 = vset.pattern.permute.xlu0 0
      %601 = vperm.xlu0 %600, %v555
      %v602 = vpop.permute.xlu0 %601
      %605 = vset.pattern.permute.xlu0 0
      %606 = vperm.xlu0 %605, %v556
      %v607 = vpop.permute.xlu0 %606
      %610 = vset.pattern.permute.xlu0 0
      %611 = vperm.xlu0 %610, %v557
      %v612 = vpop.permute.xlu0 %611
      %615 = vset.pattern.permute.xlu0 0
      %616 = vperm.xlu0 %615, %v558
      %v617 = vpop.permute.xlu0 %616
      %620 = vset.pattern.permute.xlu0 0
      %621 = vperm.xlu0 %620, %v559
      %v622 = vpop.permute.xlu0 %621
      %625 = vset.pattern.permute.xlu0 0
      %626 = vperm.xlu0 %625, %v560
      %v627 = vpop.permute.xlu0 %626
      %630 = vset.pattern.permute.xlu0 0
      %631 = vperm.xlu0 %630, %v561
      %v632 = vpop.permute.xlu0 %631
      %635 = vset.pattern.permute.xlu0 0
      %636 = vperm.xlu0 %635, %v562
      %v637 = vpop.permute.xlu0 %636
      %640 = vset.pattern.permute.xlu0 0
      %641 = vperm.xlu0 %640, %v563
      %v642 = vpop.permute.xlu0 %641
      %645 = vset.pattern.permute.xlu0 0
      %646 = vperm.xlu0 %645, %v564
      %v647 = vpop.permute.xlu0 %646
      %650 = vset.pattern.permute.xlu0 0
      %651 = vperm.xlu0 %650, %v565
      %v652 = vpop.permute.xlu0 %651
      %655 = vset.pattern.permute.xlu0 0
      %656 = vperm.xlu0 %655, %v566
      %v657 = vpop.permute.xlu0 %656
      %660 = vset.pattern.permute.xlu0 0
      %661 = vperm.xlu0 %660, %v567
      %v662 = vpop.permute.xlu0 %661
      %665 = vset.pattern.permute.xlu0 0
      %666 = vperm.xlu0 %665, %v568
      %v667 = vpop.permute.xlu0 %666
      %670 = vset.pattern.permute.xlu0 0
      %671 = vperm.xlu0 %670, %v569
      %v672 = vpop.permute.xlu0 %671
      %675 = vset.pattern.permute.xlu0 0
      %676 = vperm.xlu0 %675, %v570
      %v677 = vpop.permute.xlu0 %676
      %680 = vset.pattern.permute.xlu0 0
      %681 = vperm.xlu0 %680, %v571
      %v682 = vpop.permute.xlu0 %681
      %685 = vset.pattern.permute.xlu0 0
      %686 = vperm.xlu0 %685, %v572
      %v687 = vpop.permute.xlu0 %686
      %690 = vset.pattern.permute.xlu0 0
      %691 = vperm.xlu0 %690, %v573
      %v692 = vpop.permute.xlu0 %691
      %695 = vset.pattern.permute.xlu0 0
      %696 = vperm.xlu0 %695, %v574
      %v697 = vpop.permute.xlu0 %696
      %700 = vset.pattern.permute.xlu0 0
      %701 = vperm.xlu0 %700, %v575
      %v702 = vpop.permute.xlu0 %701
      %705 = vset.pattern.permute.xlu0 0
      %706 = vperm.xlu0 %705, %v576
      %v707 = vpop.permute.xlu0 %706
      %710 = vset.pattern.permute.xlu0 0
      %711 = vperm.xlu0 %710, %v577
      %v712 = vpop.permute.xlu0 %711
      %715 = vset.pattern.permute.xlu0 0
      %716 = vperm.xlu0 %715, %v578
      %v717 = vpop.permute.xlu0 %716
      %720 = vset.pattern.permute.xlu0 0
      %721 = vperm.xlu0 %720, %v579
      %v722 = vpop.permute.xlu0 %721
      %725 = vset.pattern.permute.xlu0 0
      %726 = vperm.xlu0 %725, %v580
      %v727 = vpop.permute.xlu0 %726
      %730 = vset.pattern.permute.xlu0 0
      %731 = vperm.xlu0 %730, %v581
      %v732 = vpop.permute.xlu0 %731
      %735 = vset.pattern.permute.xlu0 0
      %736 = vperm.xlu0 %735, %v582
      %v737 = vpop.permute.xlu0 %736
      %740 = vset.pattern.permute.xlu0 0
      %741 = vperm.xlu0 %740, %v583
      %v742 = vpop.permute.xlu0 %741
      %v744 = vsub.f32 %v587, %v366
      %v745 = vsub.f32 %v592, %v366
      %v746 = vsub.f32 %v597, %v366
      %v747 = vsub.f32 %v602, %v366
      %v748 = vsub.f32 %v607, %v366
      %v749 = vsub.f32 %v612, %v366
      %v750 = vsub.f32 %v617, %v366
      %v751 = vsub.f32 %v622, %v366
      %v752 = vsub.f32 %v627, %v366
      %v753 = vsub.f32 %v632, %v366
      %v754 = vsub.f32 %v637, %v366
      %v755 = vsub.f32 %v642, %v366
      %v756 = vsub.f32 %v647, %v366
      %v757 = vsub.f32 %v652, %v366
      %v758 = vsub.f32 %v657, %v366
      %v759 = vsub.f32 %v662, %v366
      %v760 = vsub.f32 %v667, %v366
      %v761 = vsub.f32 %v672, %v366
      %v762 = vsub.f32 %v677, %v366
      %v763 = vsub.f32 %v682, %v366
      %v764 = vsub.f32 %v687, %v366
      %v765 = vsub.f32 %v692, %v366
      %v766 = vsub.f32 %v697, %v366
      %v767 = vsub.f32 %v702, %v366
      %v768 = vsub.f32 %v707, %v366
      %v769 = vsub.f32 %v712, %v366
      %v770 = vsub.f32 %v717, %v366
      %v771 = vsub.f32 %v722, %v366
      %v772 = vsub.f32 %v727, %v366
      %v773 = vsub.f32 %v732, %v366
      %v774 = vsub.f32 %v737, %v366
      %v775 = vsub.f32 %v742, %v366
      %v776 = vmul.f32 %v744, %v744
      %v777 = vmul.f32 %v745, %v745
      %v778 = vmul.f32 %v746, %v746
      %v779 = vmul.f32 %v747, %v747
      %v780 = vmul.f32 %v748, %v748
      %v781 = vmul.f32 %v749, %v749
      %v782 = vmul.f32 %v750, %v750
      %v783 = vmul.f32 %v751, %v751
      %v784 = vmul.f32 %v752, %v752
      %v785 = vmul.f32 %v753, %v753
      %v786 = vmul.f32 %v754, %v754
      %v787 = vmul.f32 %v755, %v755
      %v788 = vmul.f32 %v756, %v756
      %v789 = vmul.f32 %v757, %v757
      %v790 = vmul.f32 %v758, %v758
      %v791 = vmul.f32 %v759, %v759
      %v792 = vmul.f32 %v760, %v760
      %v793 = vmul.f32 %v761, %v761
      %v794 = vmul.f32 %v762, %v762
      %v795 = vmul.f32 %v763, %v763
      %v796 = vmul.f32 %v764, %v764
      %v797 = vmul.f32 %v765, %v765
      %v798 = vmul.f32 %v766, %v766
      %v799 = vmul.f32 %v767, %v767
      %v800 = vmul.f32 %v768, %v768
      %v801 = vmul.f32 %v769, %v769
      %v802 = vmul.f32 %v770, %v770
      %v803 = vmul.f32 %v771, %v771
      %v804 = vmul.f32 %v772, %v772
      %v805 = vmul.f32 %v773, %v773
      %v806 = vmul.f32 %v774, %v774
      %v807 = vmul.f32 %v775, %v775
      %v808 = vadd.f32 %v776, 1.0
      %v809 = vadd.f32 %v777, 1.0
      %v810 = vadd.f32 %v778, 1.0
      %v811 = vadd.f32 %v779, 1.0
      %v812 = vadd.f32 %v780, 1.0
      %v813 = vadd.f32 %v781, 1.0
      %v814 = vadd.f32 %v782, 1.0
      %v815 = vadd.f32 %v783, 1.0
      %v816 = vadd.f32 %v784, 1.0
      %v817 = vadd.f32 %v785, 1.0
      %v818 = vadd.f32 %v786, 1.0
      %v819 = vadd.f32 %v787, 1.0
      %v820 = vadd.f32 %v788, 1.0
      %v821 = vadd.f32 %v789, 1.0
      %v822 = vadd.f32 %v790, 1.0
      %v823 = vadd.f32 %v791, 1.0
      %v824 = vadd.f32 %v792, 1.0
      %v825 = vadd.f32 %v793, 1.0
      %v826 = vadd.f32 %v794, 1.0
      %v827 = vadd.f32 %v795, 1.0
      %v828 = vadd.f32 %v796, 1.0
      %v829 = vadd.f32 %v797, 1.0
      %v830 = vadd.f32 %v798, 1.0
      %v831 = vadd.f32 %v799, 1.0
      %v832 = vadd.f32 %v800, 1.0
      %v833 = vadd.f32 %v801, 1.0
      %v834 = vadd.f32 %v802, 1.0
      %v835 = vadd.f32 %v803, 1.0
      %v836 = vadd.f32 %v804, 1.0
      %v837 = vadd.f32 %v805, 1.0
      %v838 = vadd.f32 %v806, 1.0
      %v839 = vadd.f32 %v807, 1.0
      %v840 = vrcp.pop %v808
      %v841 = vrcp.pop %v809
      %v842 = vrcp.pop %v810
      %v843 = vrcp.pop %v811
      %v844 = vrcp.pop %v812
      %v845 = vrcp.pop %v813
      %v846 = vrcp.pop %v814
      %v847 = vrcp.pop %v815
      %v848 = vrcp.pop %v816
      %v849 = vrcp.pop %v817
      %v850 = vrcp.pop %v818
      %v851 = vrcp.pop %v819
      %v852 = vrcp.pop %v820
      %v853 = vrcp.pop %v821
      %v854 = vrcp.pop %v822
      %v855 = vrcp.pop %v823
      %v856 = vrcp.pop %v824
      %v857 = vrcp.pop %v825
      %v858 = vrcp.pop %v826
      %v859 = vrcp.pop %v827
      %v860 = vrcp.pop %v828
      %v861 = vrcp.pop %v829
      %v862 = vrcp.pop %v830
      %v863 = vrcp.pop %v831
      %v864 = vrcp.pop %v832
      %v865 = vrcp.pop %v833
      %v866 = vrcp.pop %v834
      %v867 = vrcp.pop %v835
      %v868 = vrcp.pop %v836
      %v869 = vrcp.pop %v837
      %v870 = vrcp.pop %v838
      %v871 = vrcp.pop %v839
      %v872 = vld [vmem:[#allocation2] sm:$0xff]
      %v873 = vld [vmem:[#allocation2 + $0x8] sm:$0xff]
      %v874 = vld [vmem:[#allocation2 + $0x10] sm:$0xff]
      %v875 = vld [vmem:[#allocation2 + $0x18] sm:$0xff]
      %v876 = vld [vmem:[#allocation2 + $0x20] sm:$0xff]
      %v877 = vld [vmem:[#allocation2 + $0x28] sm:$0xff]
      %v878 = vld [vmem:[#allocation2 + $0x30] sm:$0xff]
      %v879 = vld [vmem:[#allocation2 + $0x38] sm:$0xff]
      %v880 = vld [vmem:[#allocation2 + $0x40] sm:$0xff]
      %v881 = vld [vmem:[#allocation2 + $0x48] sm:$0xff]
      %v882 = vld [vmem:[#allocation2 + $0x50] sm:$0xff]
      %v883 = vld [vmem:[#allocation2 + $0x58] sm:$0xff]
      %v884 = vld [vmem:[#allocation2 + $0x60] sm:$0xff]
      %v885 = vld [vmem:[#allocation2 + $0x68] sm:$0xff]
      %v886 = vld [vmem:[#allocation2 + $0x70] sm:$0xff]
      %v887 = vld [vmem:[#allocation2 + $0x78] sm:$0xff]
      %v888 = vpack.c.bf16 %v522, %v520
      %v889 = vpack.c.bf16 %v523, %v521
      %v890 = vpack.c.bf16 %v526, %v524
      %v891 = vpack.c.bf16 %v527, %v525
      %v892 = vpack.c.bf16 %v530, %v528
      %v893 = vpack.c.bf16 %v531, %v529
      %v894 = vpack.c.bf16 %v534, %v532
      %v895 = vpack.c.bf16 %v535, %v533
      %v896 = vpack.c.bf16 %v538, %v536
      %v897 = vpack.c.bf16 %v539, %v537
      %v898 = vpack.c.bf16 %v542, %v540
      %v899 = vpack.c.bf16 %v543, %v541
      %v900 = vpack.c.bf16 %v546, %v544
      %v901 = vpack.c.bf16 %v547, %v545
      %v902 = vpack.c.bf16 %v550, %v548
      %v903 = vpack.c.bf16 %v551, %v549
      %v904 = vpack.c.bf16 %v841, %v840
      %v905 = vpack.c.bf16 %v843, %v842
      %v906 = vpack.c.bf16 %v845, %v844
      %v907 = vpack.c.bf16 %v847, %v846
      %v908 = vpack.c.bf16 %v849, %v848
      %v909 = vpack.c.bf16 %v851, %v850
      %v910 = vpack.c.bf16 %v853, %v852
      %v911 = vpack.c.bf16 %v855, %v854
      %v912 = vpack.c.bf16 %v857, %v856
      %v913 = vpack.c.bf16 %v859, %v858
      %v914 = vpack.c.bf16 %v861, %v860
      %v915 = vpack.c.bf16 %v863, %v862
      %v916 = vpack.c.bf16 %v865, %v864
      %v917 = vpack.c.bf16 %v867, %v866
      %v918 = vpack.c.bf16 %v869, %v868
      %v919 = vpack.c.bf16 %v871, %v870
      %920 = vmatprep.subr.bf16.mxu0 0
      %921 = vmatpush1.bf16.msra.mxu0 %v904
      %922 = vmatprep.subr.bf16.mxu0 0
      %923 = vmatpush1.bf16.msra.mxu0 %v905
      %924 = vmatprep.subr.bf16.mxu0 0
      %925 = vmatpush1.bf16.msra.mxu0 %v906
      %926 = vmatprep.subr.bf16.mxu0 0
      %927 = vmatpush1.bf16.msra.mxu0 %v907
      %928 = vmatprep.subr.bf16.mxu0 0
      %929 = vmatpush1.bf16.msra.mxu0 %v908
      %930 = vmatprep.subr.bf16.mxu0 0
      %931 = vmatpush1.bf16.msra.mxu0 %v909
      %932 = vmatprep.subr.bf16.mxu0 0
      %933 = vmatpush1.bf16.msra.mxu0 %v910
      %934 = vmatprep.subr.bf16.mxu0 0
      %935 = vmatpush1.bf16.msra.mxu0 %v911
      %936 = vmatprep.subr.bf16.mxu0 0
      %937 = vmatpush1.bf16.msra.mxu0 %v912
      %938 = vmatprep.subr.bf16.mxu0 0
      %939 = vmatpush1.bf16.msra.mxu0 %v913
      %940 = vmatprep.subr.bf16.mxu0 0
      %941 = vmatpush1.bf16.msra.mxu0 %v914
      %942 = vmatprep.subr.bf16.mxu0 0
      %943 = vmatpush1.bf16.msra.mxu0 %v915
      %944 = vmatprep.subr.bf16.mxu0 0
      %945 = vmatpush1.bf16.msra.mxu0 %v916
      %946 = vmatprep.subr.bf16.mxu0 0
      %947 = vmatpush1.bf16.msra.mxu0 %v917
      %948 = vmatprep.subr.bf16.mxu0 0
      %949 = vmatpush1.bf16.msra.mxu0 %v918
      %950 = vmatprep.subr.bf16.mxu0 0
      %951 = vmatpush1.bf16.msra.mxu0 %v919
      %952 = vmatprep.mubr.bf16.mxu0 %v889
      %953 = vmatmul.mubr.bf16.gmra.mrb[0].mxu0 %v888
      %v954 = vpop.f32.mrb[0].mxu0
      %v955 = vadd.f32 0.0, %v954
      %v956 = vpop.f32.mrb[0].mxu0
      %v957 = vpop.f32.mrb[0].mxu0
      %v958 = vadd.f32 0.0, %v957
      %v959 = vpop.f32.mrb[0].mxu0
      %960 = vmatprep.mubr.bf16.mxu0 %v891
      %961 = vmatmul.mubr.bf16.gmra.mrb[0].mxu0 %v890
      %v962 = vpop.f32.mrb[0].mxu0
      %v963 = vadd.f32 0.0, %v962
      %v964 = vpop.f32.mrb[0].mxu0
      %v965 = vpop.f32.mrb[0].mxu0
      %v966 = vadd.f32 0.0, %v965
      %v967 = vpop.f32.mrb[0].mxu0
      %968 = vmatprep.mubr.bf16.mxu0 %v893
      %969 = vmatmul.mubr.bf16.gmra.mrb[0].mxu0 %v892
      %v970 = vpop.f32.mrb[0].mxu0
      %v971 = vadd.f32 0.0, %v970
      %v972 = vpop.f32.mrb[0].mxu0
      %v973 = vpop.f32.mrb[0].mxu0
      %v974 = vadd.f32 0.0, %v973
      %v975 = vpop.f32.mrb[0].mxu0
      %976 = vmatprep.mubr.bf16.mxu0 %v895
      %977 = vmatmul.mubr.bf16.gmra.mrb[0].mxu0 %v894
      %v978 = vpop.f32.mrb[0].mxu0
      %v979 = vadd.f32 0.0, %v978
      %v980 = vpop.f32.mrb[0].mxu0
      %v981 = vpop.f32.mrb[0].mxu0
      %v982 = vadd.f32 0.0, %v981
      %v983 = vpop.f32.mrb[0].mxu0
      %984 = vmatprep.mubr.bf16.mxu0 %v897
      %985 = vmatmul.mubr.bf16.gmra.mrb[0].mxu0 %v896
      %v986 = vpop.f32.mrb[0].mxu0
      %v987 = vadd.f32 0.0, %v986
      %v988 = vpop.f32.mrb[0].mxu0
      %v989 = vpop.f32.mrb[0].mxu0
      %v990 = vadd.f32 0.0, %v989
      %v991 = vpop.f32.mrb[0].mxu0
      %992 = vmatprep.mubr.bf16.mxu0 %v899
      %993 = vmatmul.mubr.bf16.gmra.mrb[0].mxu0 %v898
      %v994 = vpop.f32.mrb[0].mxu0
      %v995 = vadd.f32 0.0, %v994
      %v996 = vpop.f32.mrb[0].mxu0
      %v997 = vpop.f32.mrb[0].mxu0
      %v998 = vadd.f32 0.0, %v997
      %v999 = vpop.f32.mrb[0].mxu0
      %1000 = vmatprep.mubr.bf16.mxu0 %v901
      %1001 = vmatmul.mubr.bf16.gmra.mrb[0].mxu0 %v900
      %v1002 = vpop.f32.mrb[0].mxu0
      %v1003 = vadd.f32 0.0, %v1002
      %v1004 = vpop.f32.mrb[0].mxu0
      %v1005 = vpop.f32.mrb[0].mxu0
      %v1006 = vadd.f32 0.0, %v1005
      %v1007 = vpop.f32.mrb[0].mxu0
      %1008 = vmatprep.mubr.bf16.mxu0 %v903
      %1009 = vmatmul.mubr.bf16.gmra.mrb[0].mxu0 %v902
      %v1010 = vpop.f32.mrb[0].mxu0
      %v1011 = vadd.f32 0.0, %v1010
      %v1012 = vpop.f32.mrb[0].mxu0
      %v1013 = vpop.f32.mrb[0].mxu0
      %v1014 = vadd.f32 0.0, %v1013
      %v1015 = vpop.f32.mrb[0].mxu0
      %1016 = vdwg.mxu0
      %v1017 = vadd.f32 %v872, %v955
      %v1018 = vadd.f32 %v873, %v958
      %v1019 = vadd.f32 %v874, %v963
      %v1020 = vadd.f32 %v875, %v966
      %v1021 = vadd.f32 %v876, %v971
      %v1022 = vadd.f32 %v877, %v974
      %v1023 = vadd.f32 %v878, %v979
      %v1024 = vadd.f32 %v879, %v982
      %v1025 = vadd.f32 %v880, %v987
      %v1026 = vadd.f32 %v881, %v990
      %v1027 = vadd.f32 %v882, %v995
      %v1028 = vadd.f32 %v883, %v998
      %v1029 = vadd.f32 %v884, %v1003
      %v1030 = vadd.f32 %v885, %v1006
      %v1031 = vadd.f32 %v886, %v1011
      %v1032 = vadd.f32 %v887, %v1014
      %1033 = vst [vmem:[#allocation2] sm:$0xff] %v1017
      %1034 = vst [vmem:[#allocation2 + $0x8] sm:$0xff] %v1018
      %1035 = vst [vmem:[#allocation2 + $0x10] sm:$0xff] %v1019
      %1036 = vst [vmem:[#allocation2 + $0x18] sm:$0xff] %v1020
      %1037 = vst [vmem:[#allocation2 + $0x20] sm:$0xff] %v1021
      %1038 = vst [vmem:[#allocation2 + $0x28] sm:$0xff] %v1022
      %1039 = vst [vmem:[#allocation2 + $0x30] sm:$0xff] %v1023
      %1040 = vst [vmem:[#allocation2 + $0x38] sm:$0xff] %v1024
      %1041 = vst [vmem:[#allocation2 + $0x40] sm:$0xff] %v1025
      %1042 = vst [vmem:[#allocation2 + $0x48] sm:$0xff] %v1026
      %1043 = vst [vmem:[#allocation2 + $0x50] sm:$0xff] %v1027
      %1044 = vst [vmem:[#allocation2 + $0x58] sm:$0xff] %v1028
      %1045 = vst [vmem:[#allocation2 + $0x60] sm:$0xff] %v1029
      %1046 = vst [vmem:[#allocation2 + $0x68] sm:$0xff] %v1030
      %1047 = vst [vmem:[#allocation2 + $0x70] sm:$0xff] %v1031
      %1048 = vst [vmem:[#allocation2 + $0x78] sm:$0xff] %v1032
      %s1049 = scalar_lea.vmem %s224, 1
      %v1050 = vld [vmem:[%s1049] ss:$4 sm:$0x3]
      %v1052 = vlaneseq
      %v1053 = vshrl.u32 %v1052, 7
      %v1054 = vsub.s32 0, %v1053
      %v1055 = vrot.slane %v1050, %v1054
      %v1056 = vlaneseq
      %v1057 = vshrl.u32 %v1056, 7
      %v1058 = vsub.s32 1, %v1057
      %v1059 = vrot.slane %v1050, %v1058
      %v1062 = vsub.f32 %v1055, %v346
      %v1063 = vsub.f32 %v1059, %v346
      %v1064 = vsub.f32 %v1055, %v347
      %v1065 = vsub.f32 %v1059, %v347
      %v1066 = vsub.f32 %v1055, %v348
      %v1067 = vsub.f32 %v1059, %v348
      %v1068 = vsub.f32 %v1055, %v349
      %v1069 = vsub.f32 %v1059, %v349
      %v1070 = vsub.f32 %v1055, %v350
      %v1071 = vsub.f32 %v1059, %v350
      %v1072 = vsub.f32 %v1055, %v351
      %v1073 = vsub.f32 %v1059, %v351
      %v1074 = vsub.f32 %v1055, %v352
      %v1075 = vsub.f32 %v1059, %v352
      %v1076 = vsub.f32 %v1055, %v353
      %v1077 = vsub.f32 %v1059, %v353
      %v1078 = vsub.f32 %v1055, %v354
      %v1079 = vsub.f32 %v1059, %v354
      %v1080 = vsub.f32 %v1055, %v355
      %v1081 = vsub.f32 %v1059, %v355
      %v1082 = vsub.f32 %v1055, %v356
      %v1083 = vsub.f32 %v1059, %v356
      %v1084 = vsub.f32 %v1055, %v357
      %v1085 = vsub.f32 %v1059, %v357
      %v1086 = vsub.f32 %v1055, %v358
      %v1087 = vsub.f32 %v1059, %v358
      %v1088 = vsub.f32 %v1055, %v359
      %v1089 = vsub.f32 %v1059, %v359
      %v1090 = vsub.f32 %v1055, %v360
      %v1091 = vsub.f32 %v1059, %v360
      %v1092 = vsub.f32 %v1055, %v361
      %v1093 = vsub.f32 %v1059, %v361
      %v1094 = vmul.f32 %v1062, %v1062
      %v1095 = vmul.f32 %v1063, %v1063
      %v1096 = vmul.f32 %v1064, %v1064
      %v1097 = vmul.f32 %v1065, %v1065
      %v1098 = vmul.f32 %v1066, %v1066
      %v1099 = vmul.f32 %v1067, %v1067
      %v1100 = vmul.f32 %v1068, %v1068
      %v1101 = vmul.f32 %v1069, %v1069
      %v1102 = vmul.f32 %v1070, %v1070
      %v1103 = vmul.f32 %v1071, %v1071
      %v1104 = vmul.f32 %v1072, %v1072
      %v1105 = vmul.f32 %v1073, %v1073
      %v1106 = vmul.f32 %v1074, %v1074
      %v1107 = vmul.f32 %v1075, %v1075
      %v1108 = vmul.f32 %v1076, %v1076
      %v1109 = vmul.f32 %v1077, %v1077
      %v1110 = vmul.f32 %v1078, %v1078
      %v1111 = vmul.f32 %v1079, %v1079
      %v1112 = vmul.f32 %v1080, %v1080
      %v1113 = vmul.f32 %v1081, %v1081
      %v1114 = vmul.f32 %v1082, %v1082
      %v1115 = vmul.f32 %v1083, %v1083
      %v1116 = vmul.f32 %v1084, %v1084
      %v1117 = vmul.f32 %v1085, %v1085
      %v1118 = vmul.f32 %v1086, %v1086
      %v1119 = vmul.f32 %v1087, %v1087
      %v1120 = vmul.f32 %v1088, %v1088
      %v1121 = vmul.f32 %v1089, %v1089
      %v1122 = vmul.f32 %v1090, %v1090
      %v1123 = vmul.f32 %v1091, %v1091
      %v1124 = vmul.f32 %v1092, %v1092
      %v1125 = vmul.f32 %v1093, %v1093
      %v1126 = vadd.f32 %v1094, 1.0
      %v1127 = vadd.f32 %v1095, 1.0
      %v1128 = vadd.f32 %v1096, 1.0
      %v1129 = vadd.f32 %v1097, 1.0
      %v1130 = vadd.f32 %v1098, 1.0
      %v1131 = vadd.f32 %v1099, 1.0
      %v1132 = vadd.f32 %v1100, 1.0
      %v1133 = vadd.f32 %v1101, 1.0
      %v1134 = vadd.f32 %v1102, 1.0
      %v1135 = vadd.f32 %v1103, 1.0
      %v1136 = vadd.f32 %v1104, 1.0
      %v1137 = vadd.f32 %v1105, 1.0
      %v1138 = vadd.f32 %v1106, 1.0
      %v1139 = vadd.f32 %v1107, 1.0
      %v1140 = vadd.f32 %v1108, 1.0
      %v1141 = vadd.f32 %v1109, 1.0
      %v1142 = vadd.f32 %v1110, 1.0
      %v1143 = vadd.f32 %v1111, 1.0
      %v1144 = vadd.f32 %v1112, 1.0
      %v1145 = vadd.f32 %v1113, 1.0
      %v1146 = vadd.f32 %v1114, 1.0
      %v1147 = vadd.f32 %v1115, 1.0
      %v1148 = vadd.f32 %v1116, 1.0
      %v1149 = vadd.f32 %v1117, 1.0
      %v1150 = vadd.f32 %v1118, 1.0
      %v1151 = vadd.f32 %v1119, 1.0
      %v1152 = vadd.f32 %v1120, 1.0
      %v1153 = vadd.f32 %v1121, 1.0
      %v1154 = vadd.f32 %v1122, 1.0
      %v1155 = vadd.f32 %v1123, 1.0
      %v1156 = vadd.f32 %v1124, 1.0
      %v1157 = vadd.f32 %v1125, 1.0
      %v1158 = vrcp.pop %v1126
      %v1159 = vrcp.pop %v1127
      %v1160 = vrcp.pop %v1128
      %v1161 = vrcp.pop %v1129
      %v1162 = vrcp.pop %v1130
      %v1163 = vrcp.pop %v1131
      %v1164 = vrcp.pop %v1132
      %v1165 = vrcp.pop %v1133
      %v1166 = vrcp.pop %v1134
      %v1167 = vrcp.pop %v1135
      %v1168 = vrcp.pop %v1136
      %v1169 = vrcp.pop %v1137
      %v1170 = vrcp.pop %v1138
      %v1171 = vrcp.pop %v1139
      %v1172 = vrcp.pop %v1140
      %v1173 = vrcp.pop %v1141
      %v1174 = vrcp.pop %v1142
      %v1175 = vrcp.pop %v1143
      %v1176 = vrcp.pop %v1144
      %v1177 = vrcp.pop %v1145
      %v1178 = vrcp.pop %v1146
      %v1179 = vrcp.pop %v1147
      %v1180 = vrcp.pop %v1148
      %v1181 = vrcp.pop %v1149
      %v1182 = vrcp.pop %v1150
      %v1183 = vrcp.pop %v1151
      %v1184 = vrcp.pop %v1152
      %v1185 = vrcp.pop %v1153
      %v1186 = vrcp.pop %v1154
      %v1187 = vrcp.pop %v1155
      %v1188 = vrcp.pop %v1156
      %v1189 = vrcp.pop %v1157
      %v1190 = vmul.f32 %v513, %v1158
      %v1191 = vmul.f32 %v517, %v1159
      %v1192 = vmul.f32 %v513, %v1160
      %v1193 = vmul.f32 %v517, %v1161
      %v1194 = vmul.f32 %v513, %v1162
      %v1195 = vmul.f32 %v517, %v1163
      %v1196 = vmul.f32 %v513, %v1164
      %v1197 = vmul.f32 %v517, %v1165
      %v1198 = vmul.f32 %v513, %v1166
      %v1199 = vmul.f32 %v517, %v1167
      %v1200 = vmul.f32 %v513, %v1168
      %v1201 = vmul.f32 %v517, %v1169
      %v1202 = vmul.f32 %v513, %v1170
      %v1203 = vmul.f32 %v517, %v1171
      %v1204 = vmul.f32 %v513, %v1172
      %v1205 = vmul.f32 %v517, %v1173
      %v1206 = vmul.f32 %v513, %v1174
      %v1207 = vmul.f32 %v517, %v1175
      %v1208 = vmul.f32 %v513, %v1176
      %v1209 = vmul.f32 %v517, %v1177
      %v1210 = vmul.f32 %v513, %v1178
      %v1211 = vmul.f32 %v517, %v1179
      %v1212 = vmul.f32 %v513, %v1180
      %v1213 = vmul.f32 %v517, %v1181
      %v1214 = vmul.f32 %v513, %v1182
      %v1215 = vmul.f32 %v517, %v1183
      %v1216 = vmul.f32 %v513, %v1184
      %v1217 = vmul.f32 %v517, %v1185
      %v1218 = vmul.f32 %v513, %v1186
      %v1219 = vmul.f32 %v517, %v1187
      %v1220 = vmul.f32 %v513, %v1188
      %v1221 = vmul.f32 %v517, %v1189
      %v1222 = vld [vmem:[%s234] sm:$0xff]
      %v1223 = vld [vmem:[%s234 + $0x8] sm:$0xff]
      %v1224 = vld [vmem:[%s234 + $0x10] sm:$0xff]
      %v1225 = vld [vmem:[%s234 + $0x18] sm:$0xff]
      %v1226 = vld [vmem:[%s234 + $0x20] sm:$0xff]
      %v1227 = vld [vmem:[%s234 + $0x28] sm:$0xff]
      %v1228 = vld [vmem:[%s234 + $0x30] sm:$0xff]
      %v1229 = vld [vmem:[%s234 + $0x38] sm:$0xff]
      %v1230 = vld [vmem:[%s234 + $0x40] sm:$0xff]
      %v1231 = vld [vmem:[%s234 + $0x48] sm:$0xff]
      %v1232 = vld [vmem:[%s234 + $0x50] sm:$0xff]
      %v1233 = vld [vmem:[%s234 + $0x58] sm:$0xff]
      %v1234 = vld [vmem:[%s234 + $0x60] sm:$0xff]
      %v1235 = vld [vmem:[%s234 + $0x68] sm:$0xff]
      %v1236 = vld [vmem:[%s234 + $0x70] sm:$0xff]
      %v1237 = vld [vmem:[%s234 + $0x78] sm:$0xff]
      %v1238 = vld [vmem:[%s234 + $0x80] sm:$0xff]
      %v1239 = vld [vmem:[%s234 + $0x88] sm:$0xff]
      %v1240 = vld [vmem:[%s234 + $0x90] sm:$0xff]
      %v1241 = vld [vmem:[%s234 + $0x98] sm:$0xff]
      %v1242 = vld [vmem:[%s234 + $0xa0] sm:$0xff]
      %v1243 = vld [vmem:[%s234 + $0xa8] sm:$0xff]
      %v1244 = vld [vmem:[%s234 + $0xb0] sm:$0xff]
      %v1245 = vld [vmem:[%s234 + $0xb8] sm:$0xff]
      %v1246 = vld [vmem:[%s234 + $0xc0] sm:$0xff]
      %v1247 = vld [vmem:[%s234 + $0xc8] sm:$0xff]
      %v1248 = vld [vmem:[%s234 + $0xd0] sm:$0xff]
      %v1249 = vld [vmem:[%s234 + $0xd8] sm:$0xff]
      %v1250 = vld [vmem:[%s234 + $0xe0] sm:$0xff]
      %v1251 = vld [vmem:[%s234 + $0xe8] sm:$0xff]
      %v1252 = vld [vmem:[%s234 + $0xf0] sm:$0xff]
      %v1253 = vld [vmem:[%s234 + $0xf8] sm:$0xff]
      %1255 = vset.pattern.permute.xlu0 1
      %1256 = vperm.xlu0 %1255, %v1222
      %v1257 = vpop.permute.xlu0 %1256
      %1260 = vset.pattern.permute.xlu0 1
      %1261 = vperm.xlu0 %1260, %v1223
      %v1262 = vpop.permute.xlu0 %1261
      %1265 = vset.pattern.permute.xlu0 1
      %1266 = vperm.xlu0 %1265, %v1224
      %v1267 = vpop.permute.xlu0 %1266
      %1270 = vset.pattern.permute.xlu0 1
      %1271 = vperm.xlu0 %1270, %v1225
      %v1272 = vpop.permute.xlu0 %1271
      %1275 = vset.pattern.permute.xlu0 1
      %1276 = vperm.xlu0 %1275, %v1226
      %v1277 = vpop.permute.xlu0 %1276
      %1280 = vset.pattern.permute.xlu0 1
      %1281 = vperm.xlu0 %1280, %v1227
      %v1282 = vpop.permute.xlu0 %1281
      %1285 = vset.pattern.permute.xlu0 1
      %1286 = vperm.xlu0 %1285, %v1228
      %v1287 = vpop.permute.xlu0 %1286
      %1290 = vset.pattern.permute.xlu0 1
      %1291 = vperm.xlu0 %1290, %v1229
      %v1292 = vpop.permute.xlu0 %1291
      %1295 = vset.pattern.permute.xlu0 1
      %1296 = vperm.xlu0 %1295, %v1230
      %v1297 = vpop.permute.xlu0 %1296
      %1300 = vset.pattern.permute.xlu0 1
      %1301 = vperm.xlu0 %1300, %v1231
      %v1302 = vpop.permute.xlu0 %1301
      %1305 = vset.pattern.permute.xlu0 1
      %1306 = vperm.xlu0 %1305, %v1232
      %v1307 = vpop.permute.xlu0 %1306
      %1310 = vset.pattern.permute.xlu0 1
      %1311 = vperm.xlu0 %1310, %v1233
      %v1312 = vpop.permute.xlu0 %1311
      %1315 = vset.pattern.permute.xlu0 1
      %1316 = vperm.xlu0 %1315, %v1234
      %v1317 = vpop.permute.xlu0 %1316
      %1320 = vset.pattern.permute.xlu0 1
      %1321 = vperm.xlu0 %1320, %v1235
      %v1322 = vpop.permute.xlu0 %1321
      %1325 = vset.pattern.permute.xlu0 1
      %1326 = vperm.xlu0 %1325, %v1236
      %v1327 = vpop.permute.xlu0 %1326
      %1330 = vset.pattern.permute.xlu0 1
      %1331 = vperm.xlu0 %1330, %v1237
      %v1332 = vpop.permute.xlu0 %1331
      %1335 = vset.pattern.permute.xlu0 1
      %1336 = vperm.xlu0 %1335, %v1238
      %v1337 = vpop.permute.xlu0 %1336
      %1340 = vset.pattern.permute.xlu0 1
      %1341 = vperm.xlu0 %1340, %v1239
      %v1342 = vpop.permute.xlu0 %1341
      %1345 = vset.pattern.permute.xlu0 1
      %1346 = vperm.xlu0 %1345, %v1240
      %v1347 = vpop.permute.xlu0 %1346
      %1350 = vset.pattern.permute.xlu0 1
      %1351 = vperm.xlu0 %1350, %v1241
      %v1352 = vpop.permute.xlu0 %1351
      %1355 = vset.pattern.permute.xlu0 1
      %1356 = vperm.xlu0 %1355, %v1242
      %v1357 = vpop.permute.xlu0 %1356
      %1360 = vset.pattern.permute.xlu0 1
      %1361 = vperm.xlu0 %1360, %v1243
      %v1362 = vpop.permute.xlu0 %1361
      %1365 = vset.pattern.permute.xlu0 1
      %1366 = vperm.xlu0 %1365, %v1244
      %v1367 = vpop.permute.xlu0 %1366
      %1370 = vset.pattern.permute.xlu0 1
      %1371 = vperm.xlu0 %1370, %v1245
      %v1372 = vpop.permute.xlu0 %1371
      %1375 = vset.pattern.permute.xlu0 1
      %1376 = vperm.xlu0 %1375, %v1246
      %v1377 = vpop.permute.xlu0 %1376
      %1380 = vset.pattern.permute.xlu0 1
      %1381 = vperm.xlu0 %1380, %v1247
      %v1382 = vpop.permute.xlu0 %1381
      %1385 = vset.pattern.permute.xlu0 1
      %1386 = vperm.xlu0 %1385, %v1248
      %v1387 = vpop.permute.xlu0 %1386
      %1390 = vset.pattern.permute.xlu0 1
      %1391 = vperm.xlu0 %1390, %v1249
      %v1392 = vpop.permute.xlu0 %1391
      %1395 = vset.pattern.permute.xlu0 1
      %1396 = vperm.xlu0 %1395, %v1250
      %v1397 = vpop.permute.xlu0 %1396
      %1400 = vset.pattern.permute.xlu0 1
      %1401 = vperm.xlu0 %1400, %v1251
      %v1402 = vpop.permute.xlu0 %1401
      %1405 = vset.pattern.permute.xlu0 1
      %1406 = vperm.xlu0 %1405, %v1252
      %v1407 = vpop.permute.xlu0 %1406
      %1410 = vset.pattern.permute.xlu0 1
      %1411 = vperm.xlu0 %1410, %v1253
      %v1412 = vpop.permute.xlu0 %1411
      %v1414 = vsub.f32 %v1257, %v366
      %v1415 = vsub.f32 %v1262, %v366
      %v1416 = vsub.f32 %v1267, %v366
      %v1417 = vsub.f32 %v1272, %v366
      %v1418 = vsub.f32 %v1277, %v366
      %v1419 = vsub.f32 %v1282, %v366
      %v1420 = vsub.f32 %v1287, %v366
      %v1421 = vsub.f32 %v1292, %v366
      %v1422 = vsub.f32 %v1297, %v366
      %v1423 = vsub.f32 %v1302, %v366
      %v1424 = vsub.f32 %v1307, %v366
      %v1425 = vsub.f32 %v1312, %v366
      %v1426 = vsub.f32 %v1317, %v366
      %v1427 = vsub.f32 %v1322, %v366
      %v1428 = vsub.f32 %v1327, %v366
      %v1429 = vsub.f32 %v1332, %v366
      %v1430 = vsub.f32 %v1337, %v366
      %v1431 = vsub.f32 %v1342, %v366
      %v1432 = vsub.f32 %v1347, %v366
      %v1433 = vsub.f32 %v1352, %v366
      %v1434 = vsub.f32 %v1357, %v366
      %v1435 = vsub.f32 %v1362, %v366
      %v1436 = vsub.f32 %v1367, %v366
      %v1437 = vsub.f32 %v1372, %v366
      %v1438 = vsub.f32 %v1377, %v366
      %v1439 = vsub.f32 %v1382, %v366
      %v1440 = vsub.f32 %v1387, %v366
      %v1441 = vsub.f32 %v1392, %v366
      %v1442 = vsub.f32 %v1397, %v366
      %v1443 = vsub.f32 %v1402, %v366
      %v1444 = vsub.f32 %v1407, %v366
      %v1445 = vsub.f32 %v1412, %v366
      %v1446 = vmul.f32 %v1414, %v1414
      %v1447 = vmul.f32 %v1415, %v1415
      %v1448 = vmul.f32 %v1416, %v1416
      %v1449 = vmul.f32 %v1417, %v1417
      %v1450 = vmul.f32 %v1418, %v1418
      %v1451 = vmul.f32 %v1419, %v1419
      %v1452 = vmul.f32 %v1420, %v1420
      %v1453 = vmul.f32 %v1421, %v1421
      %v1454 = vmul.f32 %v1422, %v1422
      %v1455 = vmul.f32 %v1423, %v1423
      %v1456 = vmul.f32 %v1424, %v1424
      %v1457 = vmul.f32 %v1425, %v1425
      %v1458 = vmul.f32 %v1426, %v1426
      %v1459 = vmul.f32 %v1427, %v1427
      %v1460 = vmul.f32 %v1428, %v1428
      %v1461 = vmul.f32 %v1429, %v1429
      %v1462 = vmul.f32 %v1430, %v1430
      %v1463 = vmul.f32 %v1431, %v1431
      %v1464 = vmul.f32 %v1432, %v1432
      %v1465 = vmul.f32 %v1433, %v1433
      %v1466 = vmul.f32 %v1434, %v1434
      %v1467 = vmul.f32 %v1435, %v1435
      %v1468 = vmul.f32 %v1436, %v1436
      %v1469 = vmul.f32 %v1437, %v1437
      %v1470 = vmul.f32 %v1438, %v1438
      %v1471 = vmul.f32 %v1439, %v1439
      %v1472 = vmul.f32 %v1440, %v1440
      %v1473 = vmul.f32 %v1441, %v1441
      %v1474 = vmul.f32 %v1442, %v1442
      %v1475 = vmul.f32 %v1443, %v1443
      %v1476 = vmul.f32 %v1444, %v1444
      %v1477 = vmul.f32 %v1445, %v1445
      %v1478 = vadd.f32 %v1446, 1.0
      %v1479 = vadd.f32 %v1447, 1.0
      %v1480 = vadd.f32 %v1448, 1.0
      %v1481 = vadd.f32 %v1449, 1.0
      %v1482 = vadd.f32 %v1450, 1.0
      %v1483 = vadd.f32 %v1451, 1.0
      %v1484 = vadd.f32 %v1452, 1.0
      %v1485 = vadd.f32 %v1453, 1.0
      %v1486 = vadd.f32 %v1454, 1.0
      %v1487 = vadd.f32 %v1455, 1.0
      %v1488 = vadd.f32 %v1456, 1.0
      %v1489 = vadd.f32 %v1457, 1.0
      %v1490 = vadd.f32 %v1458, 1.0
      %v1491 = vadd.f32 %v1459, 1.0
      %v1492 = vadd.f32 %v1460, 1.0
      %v1493 = vadd.f32 %v1461, 1.0
      %v1494 = vadd.f32 %v1462, 1.0
      %v1495 = vadd.f32 %v1463, 1.0
      %v1496 = vadd.f32 %v1464, 1.0
      %v1497 = vadd.f32 %v1465, 1.0
      %v1498 = vadd.f32 %v1466, 1.0
      %v1499 = vadd.f32 %v1467, 1.0
      %v1500 = vadd.f32 %v1468, 1.0
      %v1501 = vadd.f32 %v1469, 1.0
      %v1502 = vadd.f32 %v1470, 1.0
      %v1503 = vadd.f32 %v1471, 1.0
      %v1504 = vadd.f32 %v1472, 1.0
      %v1505 = vadd.f32 %v1473, 1.0
      %v1506 = vadd.f32 %v1474, 1.0
      %v1507 = vadd.f32 %v1475, 1.0
      %v1508 = vadd.f32 %v1476, 1.0
      %v1509 = vadd.f32 %v1477, 1.0
      %v1510 = vrcp.pop %v1478
      %v1511 = vrcp.pop %v1479
      %v1512 = vrcp.pop %v1480
      %v1513 = vrcp.pop %v1481
      %v1514 = vrcp.pop %v1482
      %v1515 = vrcp.pop %v1483
      %v1516 = vrcp.pop %v1484
      %v1517 = vrcp.pop %v1485
      %v1518 = vrcp.pop %v1486
      %v1519 = vrcp.pop %v1487
      %v1520 = vrcp.pop %v1488
      %v1521 = vrcp.pop %v1489
      %v1522 = vrcp.pop %v1490
      %v1523 = vrcp.pop %v1491
      %v1524 = vrcp.pop %v1492
      %v1525 = vrcp.pop %v1493
      %v1526 = vrcp.pop %v1494
      %v1527 = vrcp.pop %v1495
      %v1528 = vrcp.pop %v1496
      %v1529 = vrcp.pop %v1497
      %v1530 = vrcp.pop %v1498
      %v1531 = vrcp.pop %v1499
      %v1532 = vrcp.pop %v1500
      %v1533 = vrcp.pop %v1501
      %v1534 = vrcp.pop %v1502
      %v1535 = vrcp.pop %v1503
      %v1536 = vrcp.pop %v1504
      %v1537 = vrcp.pop %v1505
      %v1538 = vrcp.pop %v1506
      %v1539 = vrcp.pop %v1507
      %v1540 = vrcp.pop %v1508
      %v1541 = vrcp.pop %v1509
      %s1542 = scalar_lea.vmem [#allocation2], 128
      %v1543 = vld [vmem:[%s1542] sm:$0xff]
      %v1544 = vld [vmem:[%s1542 + $0x8] sm:$0xff]
      %v1545 = vld [vmem:[%s1542 + $0x10] sm:$0xff]
      %v1546 = vld [vmem:[%s1542 + $0x18] sm:$0xff]
      %v1547 = vld [vmem:[%s1542 + $0x20] sm:$0xff]
      %v1548 = vld [vmem:[%s1542 + $0x28] sm:$0xff]
      %v1549 = vld [vmem:[%s1542 + $0x30] sm:$0xff]
      %v1550 = vld [vmem:[%s1542 + $0x38] sm:$0xff]
      %v1551 = vld [vmem:[%s1542 + $0x40] sm:$0xff]
      %v1552 = vld [vmem:[%s1542 + $0x48] sm:$0xff]
      %v1553 = vld [vmem:[%s1542 + $0x50] sm:$0xff]
      %v1554 = vld [vmem:[%s1542 + $0x58] sm:$0xff]
      %v1555 = vld [vmem:[%s1542 + $0x60] sm:$0xff]
      %v1556 = vld [vmem:[%s1542 + $0x68] sm:$0xff]
      %v1557 = vld [vmem:[%s1542 + $0x70] sm:$0xff]
      %v1558 = vld [vmem:[%s1542 + $0x78] sm:$0xff]
      %v1559 = vpack.c.bf16 %v1192, %v1190
      %v1560 = vpack.c.bf16 %v1193, %v1191
      %v1561 = vpack.c.bf16 %v1196, %v1194
      %v1562 = vpack.c.bf16 %v1197, %v1195
      %v1563 = vpack.c.bf16 %v1200, %v1198
      %v1564 = vpack.c.bf16 %v1201, %v1199
      %v1565 = vpack.c.bf16 %v1204, %v1202
      %v1566 = vpack.c.bf16 %v1205, %v1203
      %v1567 = vpack.c.bf16 %v1208, %v1206
      %v1568 = vpack.c.bf16 %v1209, %v1207
      %v1569 = vpack.c.bf16 %v1212, %v1210
      %v1570 = vpack.c.bf16 %v1213, %v1211
      %v1571 = vpack.c.bf16 %v1216, %v1214
      %v1572 = vpack.c.bf16 %v1217, %v1215
      %v1573 = vpack.c.bf16 %v1220, %v1218
      %v1574 = vpack.c.bf16 %v1221, %v1219
      %v1575 = vpack.c.bf16 %v1511, %v1510
      %v1576 = vpack.c.bf16 %v1513, %v1512
      %v1577 = vpack.c.bf16 %v1515, %v1514
      %v1578 = vpack.c.bf16 %v1517, %v1516
      %v1579 = vpack.c.bf16 %v1519, %v1518
      %v1580 = vpack.c.bf16 %v1521, %v1520
      %v1581 = vpack.c.bf16 %v1523, %v1522
      %v1582 = vpack.c.bf16 %v1525, %v1524
      %v1583 = vpack.c.bf16 %v1527, %v1526
      %v1584 = vpack.c.bf16 %v1529, %v1528
      %v1585 = vpack.c.bf16 %v1531, %v1530
      %v1586 = vpack.c.bf16 %v1533, %v1532
      %v1587 = vpack.c.bf16 %v1535, %v1534
      %v1588 = vpack.c.bf16 %v1537, %v1536
      %v1589 = vpack.c.bf16 %v1539, %v1538
      %v1590 = vpack.c.bf16 %v1541, %v1540
      %1591 = vmatprep.subr.bf16.mxu0 0
      %1592 = vmatpush1.bf16.msra.mxu0 %v1575
      %1593 = vmatprep.subr.bf16.mxu0 0
      %1594 = vmatpush1.bf16.msra.mxu0 %v1576
      %1595 = vmatprep.subr.bf16.mxu0 0
      %1596 = vmatpush1.bf16.msra.mxu0 %v1577
      %1597 = vmatprep.subr.bf16.mxu0 0
      %1598 = vmatpush1.bf16.msra.mxu0 %v1578
      %1599 = vmatprep.subr.bf16.mxu0 0
      %1600 = vmatpush1.bf16.msra.mxu0 %v1579
      %1601 = vmatprep.subr.bf16.mxu0 0
      %1602 = vmatpush1.bf16.msra.mxu0 %v1580
      %1603 = vmatprep.subr.bf16.mxu0 0
      %1604 = vmatpush1.bf16.msra.mxu0 %v1581
      %1605 = vmatprep.subr.bf16.mxu0 0
      %1606 = vmatpush1.bf16.msra.mxu0 %v1582
      %1607 = vmatprep.subr.bf16.mxu0 0
      %1608 = vmatpush1.bf16.msra.mxu0 %v1583
      %1609 = vmatprep.subr.bf16.mxu0 0
      %1610 = vmatpush1.bf16.msra.mxu0 %v1584
      %1611 = vmatprep.subr.bf16.mxu0 0
      %1612 = vmatpush1.bf16.msra.mxu0 %v1585
      %1613 = vmatprep.subr.bf16.mxu0 0
      %1614 = vmatpush1.bf16.msra.mxu0 %v1586
      %1615 = vmatprep.subr.bf16.mxu0 0
      %1616 = vmatpush1.bf16.msra.mxu0 %v1587
      %1617 = vmatprep.subr.bf16.mxu0 0
      %1618 = vmatpush1.bf16.msra.mxu0 %v1588
      %1619 = vmatprep.subr.bf16.mxu0 0
      %1620 = vmatpush1.bf16.msra.mxu0 %v1589
      %1621 = vmatprep.subr.bf16.mxu0 0
      %1622 = vmatpush1.bf16.msra.mxu0 %v1590
      %1623 = vmatprep.mubr.bf16.mxu0 %v1560
      %1624 = vmatmul.mubr.bf16.gmra.mrb[0].mxu0 %v1559
      %v1625 = vpop.f32.mrb[0].mxu0
      %v1626 = vadd.f32 0.0, %v1625
      %v1627 = vpop.f32.mrb[0].mxu0
      %v1628 = vpop.f32.mrb[0].mxu0
      %v1629 = vadd.f32 0.0, %v1628
      %v1630 = vpop.f32.mrb[0].mxu0
      %1631 = vmatprep.mubr.bf16.mxu0 %v1562
      %1632 = vmatmul.mubr.bf16.gmra.mrb[0].mxu0 %v1561
      %v1633 = vpop.f32.mrb[0].mxu0
      %v1634 = vadd.f32 0.0, %v1633
      %v1635 = vpop.f32.mrb[0].mxu0
      %v1636 = vpop.f32.mrb[0].mxu0
      %v1637 = vadd.f32 0.0, %v1636
      %v1638 = vpop.f32.mrb[0].mxu0
      %1639 = vmatprep.mubr.bf16.mxu0 %v1564
      %1640 = vmatmul.mubr.bf16.gmra.mrb[0].mxu0 %v1563
      %v1641 = vpop.f32.mrb[0].mxu0
      %v1642 = vadd.f32 0.0, %v1641
      %v1643 = vpop.f32.mrb[0].mxu0
      %v1644 = vpop.f32.mrb[0].mxu0
      %v1645 = vadd.f32 0.0, %v1644
      %v1646 = vpop.f32.mrb[0].mxu0
      %1647 = vmatprep.mubr.bf16.mxu0 %v1566
      %1648 = vmatmul.mubr.bf16.gmra.mrb[0].mxu0 %v1565
      %v1649 = vpop.f32.mrb[0].mxu0
      %v1650 = vadd.f32 0.0, %v1649
      %v1651 = vpop.f32.mrb[0].mxu0
      %v1652 = vpop.f32.mrb[0].mxu0
      %v1653 = vadd.f32 0.0, %v1652
      %v1654 = vpop.f32.mrb[0].mxu0
      %1655 = vmatprep.mubr.bf16.mxu0 %v1568
      %1656 = vmatmul.mubr.bf16.gmra.mrb[0].mxu0 %v1567
      %v1657 = vpop.f32.mrb[0].mxu0
      %v1658 = vadd.f32 0.0, %v1657
      %v1659 = vpop.f32.mrb[0].mxu0
      %v1660 = vpop.f32.mrb[0].mxu0
      %v1661 = vadd.f32 0.0, %v1660
      %v1662 = vpop.f32.mrb[0].mxu0
      %1663 = vmatprep.mubr.bf16.mxu0 %v1570
      %1664 = vmatmul.mubr.bf16.gmra.mrb[0].mxu0 %v1569
      %v1665 = vpop.f32.mrb[0].mxu0
      %v1666 = vadd.f32 0.0, %v1665
      %v1667 = vpop.f32.mrb[0].mxu0
      %v1668 = vpop.f32.mrb[0].mxu0
      %v1669 = vadd.f32 0.0, %v1668
      %v1670 = vpop.f32.mrb[0].mxu0
      %1671 = vmatprep.mubr.bf16.mxu0 %v1572
      %1672 = vmatmul.mubr.bf16.gmra.mrb[0].mxu0 %v1571
      %v1673 = vpop.f32.mrb[0].mxu0
      %v1674 = vadd.f32 0.0, %v1673
      %v1675 = vpop.f32.mrb[0].mxu0
      %v1676 = vpop.f32.mrb[0].mxu0
      %v1677 = vadd.f32 0.0, %v1676
      %v1678 = vpop.f32.mrb[0].mxu0
      %1679 = vmatprep.mubr.bf16.mxu0 %v1574
      %1680 = vmatmul.mubr.bf16.gmra.mrb[0].mxu0 %v1573
      %v1681 = vpop.f32.mrb[0].mxu0
      %v1682 = vadd.f32 0.0, %v1681
      %v1683 = vpop.f32.mrb[0].mxu0
      %v1684 = vpop.f32.mrb[0].mxu0
      %v1685 = vadd.f32 0.0, %v1684
      %v1686 = vpop.f32.mrb[0].mxu0
      %1687 = vdwg.mxu0
      %v1688 = vadd.f32 %v1543, %v1626
      %v1689 = vadd.f32 %v1544, %v1629
      %v1690 = vadd.f32 %v1545, %v1634
      %v1691 = vadd.f32 %v1546, %v1637
      %v1692 = vadd.f32 %v1547, %v1642
      %v1693 = vadd.f32 %v1548, %v1645
      %v1694 = vadd.f32 %v1549, %v1650
      %v1695 = vadd.f32 %v1550, %v1653
      %v1696 = vadd.f32 %v1551, %v1658
      %v1697 = vadd.f32 %v1552, %v1661
      %v1698 = vadd.f32 %v1553, %v1666
      %v1699 = vadd.f32 %v1554, %v1669
      %v1700 = vadd.f32 %v1555, %v1674
      %v1701 = vadd.f32 %v1556, %v1677
      %v1702 = vadd.f32 %v1557, %v1682
      %v1703 = vadd.f32 %v1558, %v1685
      %1704 = vst [vmem:[%s1542] sm:$0xff] %v1688
      %1705 = vst [vmem:[%s1542 + $0x8] sm:$0xff] %v1689
      %1706 = vst [vmem:[%s1542 + $0x10] sm:$0xff] %v1690
      %1707 = vst [vmem:[%s1542 + $0x18] sm:$0xff] %v1691
      %1708 = vst [vmem:[%s1542 + $0x20] sm:$0xff] %v1692
      %1709 = vst [vmem:[%s1542 + $0x28] sm:$0xff] %v1693
      %1710 = vst [vmem:[%s1542 + $0x30] sm:$0xff] %v1694
      %1711 = vst [vmem:[%s1542 + $0x38] sm:$0xff] %v1695
      %1712 = vst [vmem:[%s1542 + $0x40] sm:$0xff] %v1696
      %1713 = vst [vmem:[%s1542 + $0x48] sm:$0xff] %v1697
      %1714 = vst [vmem:[%s1542 + $0x50] sm:$0xff] %v1698
      %1715 = vst [vmem:[%s1542 + $0x58] sm:$0xff] %v1699
      %1716 = vst [vmem:[%s1542 + $0x60] sm:$0xff] %v1700
      %1717 = vst [vmem:[%s1542 + $0x68] sm:$0xff] %v1701
      %1718 = vst [vmem:[%s1542 + $0x70] sm:$0xff] %v1702
      %1719 = vst [vmem:[%s1542 + $0x78] sm:$0xff] %v1703
      %s1720 = scalar_lea.vmem %s224, 2
      %v1721 = vld [vmem:[%s1720] ss:$4 sm:$0x3]
      %v1723 = vlaneseq
      %v1724 = vshrl.u32 %v1723, 7
      %v1725 = vsub.s32 0, %v1724
      %v1726 = vrot.slane %v1721, %v1725
      %v1727 = vlaneseq
      %v1728 = vshrl.u32 %v1727, 7
      %v1729 = vsub.s32 1, %v1728
      %v1730 = vrot.slane %v1721, %v1729
      %v1733 = vsub.f32 %v1726, %v346
      %v1734 = vsub.f32 %v1730, %v346
      %v1735 = vsub.f32 %v1726, %v347
      %v1736 = vsub.f32 %v1730, %v347
      %v1737 = vsub.f32 %v1726, %v348
      %v1738 = vsub.f32 %v1730, %v348
      %v1739 = vsub.f32 %v1726, %v349
      %v1740 = vsub.f32 %v1730, %v349
      %v1741 = vsub.f32 %v1726, %v350
      %v1742 = vsub.f32 %v1730, %v350
      %v1743 = vsub.f32 %v1726, %v351
      %v1744 = vsub.f32 %v1730, %v351
      %v1745 = vsub.f32 %v1726, %v352
      %v1746 = vsub.f32 %v1730, %v352
      %v1747 = vsub.f32 %v1726, %v353
      %v1748 = vsub.f32 %v1730, %v353
      %v1749 = vsub.f32 %v1726, %v354
      %v1750 = vsub.f32 %v1730, %v354
      %v1751 = vsub.f32 %v1726, %v355
      %v1752 = vsub.f32 %v1730, %v355
      %v1753 = vsub.f32 %v1726, %v356
      %v1754 = vsub.f32 %v1730, %v356
      %v1755 = vsub.f32 %v1726, %v357
      %v1756 = vsub.f32 %v1730, %v357
      %v1757 = vsub.f32 %v1726, %v358
      %v1758 = vsub.f32 %v1730, %v358
      %v1759 = vsub.f32 %v1726, %v359
      %v1760 = vsub.f32 %v1730, %v359
      %v1761 = vsub.f32 %v1726, %v360
      %v1762 = vsub.f32 %v1730, %v360
      %v1763 = vsub.f32 %v1726, %v361
      %v1764 = vsub.f32 %v1730, %v361
      %v1765 = vmul.f32 %v1733, %v1733
      %v1766 = vmul.f32 %v1734, %v1734
      %v1767 = vmul.f32 %v1735, %v1735
      %v1768 = vmul.f32 %v1736, %v1736
      %v1769 = vmul.f32 %v1737, %v1737
      %v1770 = vmul.f32 %v1738, %v1738
      %v1771 = vmul.f32 %v1739, %v1739
      %v1772 = vmul.f32 %v1740, %v1740
      %v1773 = vmul.f32 %v1741, %v1741
      %v1774 = vmul.f32 %v1742, %v1742
      %v1775 = vmul.f32 %v1743, %v1743
      %v1776 = vmul.f32 %v1744, %v1744
      %v1777 = vmul.f32 %v1745, %v1745
      %v1778 = vmul.f32 %v1746, %v1746
      %v1779 = vmul.f32 %v1747, %v1747
      %v1780 = vmul.f32 %v1748, %v1748
      %v1781 = vmul.f32 %v1749, %v1749
      %v1782 = vmul.f32 %v1750, %v1750
      %v1783 = vmul.f32 %v1751, %v1751
      %v1784 = vmul.f32 %v1752, %v1752
      %v1785 = vmul.f32 %v1753, %v1753
      %v1786 = vmul.f32 %v1754, %v1754
      %v1787 = vmul.f32 %v1755, %v1755
      %v1788 = vmul.f32 %v1756, %v1756
      %v1789 = vmul.f32 %v1757, %v1757
      %v1790 = vmul.f32 %v1758, %v1758
      %v1791 = vmul.f32 %v1759, %v1759
      %v1792 = vmul.f32 %v1760, %v1760
      %v1793 = vmul.f32 %v1761, %v1761
      %v1794 = vmul.f32 %v1762, %v1762
      %v1795 = vmul.f32 %v1763, %v1763
      %v1796 = vmul.f32 %v1764, %v1764
      %v1797 = vadd.f32 %v1765, 1.0
      %v1798 = vadd.f32 %v1766, 1.0
      %v1799 = vadd.f32 %v1767, 1.0
      %v1800 = vadd.f32 %v1768, 1.0
      %v1801 = vadd.f32 %v1769, 1.0
      %v1802 = vadd.f32 %v1770, 1.0
      %v1803 = vadd.f32 %v1771, 1.0
      %v1804 = vadd.f32 %v1772, 1.0
      %v1805 = vadd.f32 %v1773, 1.0
      %v1806 = vadd.f32 %v1774, 1.0
      %v1807 = vadd.f32 %v1775, 1.0
      %v1808 = vadd.f32 %v1776, 1.0
      %v1809 = vadd.f32 %v1777, 1.0
      %v1810 = vadd.f32 %v1778, 1.0
      %v1811 = vadd.f32 %v1779, 1.0
      %v1812 = vadd.f32 %v1780, 1.0
      %v1813 = vadd.f32 %v1781, 1.0
      %v1814 = vadd.f32 %v1782, 1.0
      %v1815 = vadd.f32 %v1783, 1.0
      %v1816 = vadd.f32 %v1784, 1.0
      %v1817 = vadd.f32 %v1785, 1.0
      %v1818 = vadd.f32 %v1786, 1.0
      %v1819 = vadd.f32 %v1787, 1.0
      %v1820 = vadd.f32 %v1788, 1.0
      %v1821 = vadd.f32 %v1789, 1.0
      %v1822 = vadd.f32 %v1790, 1.0
      %v1823 = vadd.f32 %v1791, 1.0
      %v1824 = vadd.f32 %v1792, 1.0
      %v1825 = vadd.f32 %v1793, 1.0
      %v1826 = vadd.f32 %v1794, 1.0
      %v1827 = vadd.f32 %v1795, 1.0
      %v1828 = vadd.f32 %v1796, 1.0
      %v1829 = vrcp.pop %v1797
      %v1830 = vrcp.pop %v1798
      %v1831 = vrcp.pop %v1799
      %v1832 = vrcp.pop %v1800
      %v1833 = vrcp.pop %v1801
      %v1834 = vrcp.pop %v1802
      %v1835 = vrcp.pop %v1803
      %v1836 = vrcp.pop %v1804
      %v1837 = vrcp.pop %v1805
      %v1838 = vrcp.pop %v1806
      %v1839 = vrcp.pop %v1807
      %v1840 = vrcp.pop %v1808
      %v1841 = vrcp.pop %v1809
      %v1842 = vrcp.pop %v1810
      %v1843 = vrcp.pop %v1811
      %v1844 = vrcp.pop %v1812
      %v1845 = vrcp.pop %v1813
      %v1846 = vrcp.pop %v1814
      %v1847 = vrcp.pop %v1815
      %v1848 = vrcp.pop %v1816
      %v1849 = vrcp.pop %v1817
      %v1850 = vrcp.pop %v1818
      %v1851 = vrcp.pop %v1819
      %v1852 = vrcp.pop %v1820
      %v1853 = vrcp.pop %v1821
      %v1854 = vrcp.pop %v1822
      %v1855 = vrcp.pop %v1823
      %v1856 = vrcp.pop %v1824
      %v1857 = vrcp.pop %v1825
      %v1858 = vrcp.pop %v1826
      %v1859 = vrcp.pop %v1827
      %v1860 = vrcp.pop %v1828
      %v1861 = vmul.f32 %v513, %v1829
      %v1862 = vmul.f32 %v517, %v1830
      %v1863 = vmul.f32 %v513, %v1831
      %v1864 = vmul.f32 %v517, %v1832
      %v1865 = vmul.f32 %v513, %v1833
      %v1866 = vmul.f32 %v517, %v1834
      %v1867 = vmul.f32 %v513, %v1835
      %v1868 = vmul.f32 %v517, %v1836
      %v1869 = vmul.f32 %v513, %v1837
      %v1870 = vmul.f32 %v517, %v1838
      %v1871 = vmul.f32 %v513, %v1839
      %v1872 = vmul.f32 %v517, %v1840
      %v1873 = vmul.f32 %v513, %v1841
      %v1874 = vmul.f32 %v517, %v1842
      %v1875 = vmul.f32 %v513, %v1843
      %v1876 = vmul.f32 %v517, %v1844
      %v1877 = vmul.f32 %v513, %v1845
      %v1878 = vmul.f32 %v517, %v1846
      %v1879 = vmul.f32 %v513, %v1847
      %v1880 = vmul.f32 %v517, %v1848
      %v1881 = vmul.f32 %v513, %v1849
      %v1882 = vmul.f32 %v517, %v1850
      %v1883 = vmul.f32 %v513, %v1851
      %v1884 = vmul.f32 %v517, %v1852
      %v1885 = vmul.f32 %v513, %v1853
      %v1886 = vmul.f32 %v517, %v1854
      %v1887 = vmul.f32 %v513, %v1855
      %v1888 = vmul.f32 %v517, %v1856
      %v1889 = vmul.f32 %v513, %v1857
      %v1890 = vmul.f32 %v517, %v1858
      %v1891 = vmul.f32 %v513, %v1859
      %v1892 = vmul.f32 %v517, %v1860
      %v1893 = vld [vmem:[%s234] sm:$0xff]
      %v1894 = vld [vmem:[%s234 + $0x8] sm:$0xff]
      %v1895 = vld [vmem:[%s234 + $0x10] sm:$0xff]
      %v1896 = vld [vmem:[%s234 + $0x18] sm:$0xff]
      %v1897 = vld [vmem:[%s234 + $0x20] sm:$0xff]
      %v1898 = vld [vmem:[%s234 + $0x28] sm:$0xff]
      %v1899 = vld [vmem:[%s234 + $0x30] sm:$0xff]
      %v1900 = vld [vmem:[%s234 + $0x38] sm:$0xff]
      %v1901 = vld [vmem:[%s234 + $0x40] sm:$0xff]
      %v1902 = vld [vmem:[%s234 + $0x48] sm:$0xff]
      %v1903 = vld [vmem:[%s234 + $0x50] sm:$0xff]
      %v1904 = vld [vmem:[%s234 + $0x58] sm:$0xff]
      %v1905 = vld [vmem:[%s234 + $0x60] sm:$0xff]
      %v1906 = vld [vmem:[%s234 + $0x68] sm:$0xff]
      %v1907 = vld [vmem:[%s234 + $0x70] sm:$0xff]
      %v1908 = vld [vmem:[%s234 + $0x78] sm:$0xff]
      %v1909 = vld [vmem:[%s234 + $0x80] sm:$0xff]
      %v1910 = vld [vmem:[%s234 + $0x88] sm:$0xff]
      %v1911 = vld [vmem:[%s234 + $0x90] sm:$0xff]
      %v1912 = vld [vmem:[%s234 + $0x98] sm:$0xff]
      %v1913 = vld [vmem:[%s234 + $0xa0] sm:$0xff]
      %v1914 = vld [vmem:[%s234 + $0xa8] sm:$0xff]
      %v1915 = vld [vmem:[%s234 + $0xb0] sm:$0xff]
      %v1916 = vld [vmem:[%s234 + $0xb8] sm:$0xff]
      %v1917 = vld [vmem:[%s234 + $0xc0] sm:$0xff]
      %v1918 = vld [vmem:[%s234 + $0xc8] sm:$0xff]
      %v1919 = vld [vmem:[%s234 + $0xd0] sm:$0xff]
      %v1920 = vld [vmem:[%s234 + $0xd8] sm:$0xff]
      %v1921 = vld [vmem:[%s234 + $0xe0] sm:$0xff]
      %v1922 = vld [vmem:[%s234 + $0xe8] sm:$0xff]
      %v1923 = vld [vmem:[%s234 + $0xf0] sm:$0xff]
      %v1924 = vld [vmem:[%s234 + $0xf8] sm:$0xff]
      %1926 = vset.pattern.permute.xlu0 2
      %1927 = vperm.xlu0 %1926, %v1893
      %v1928 = vpop.permute.xlu0 %1927
      %1931 = vset.pattern.permute.xlu0 2
      %1932 = vperm.xlu0 %1931, %v1894
      %v1933 = vpop.permute.xlu0 %1932
      %1936 = vset.pattern.permute.xlu0 2
      %1937 = vperm.xlu0 %1936, %v1895
      %v1938 = vpop.permute.xlu0 %1937
      %1941 = vset.pattern.permute.xlu0 2
      %1942 = vperm.xlu0 %1941, %v1896
      %v1943 = vpop.permute.xlu0 %1942
      %1946 = vset.pattern.permute.xlu0 2
      %1947 = vperm.xlu0 %1946, %v1897
      %v1948 = vpop.permute.xlu0 %1947
      %1951 = vset.pattern.permute.xlu0 2
      %1952 = vperm.xlu0 %1951, %v1898
      %v1953 = vpop.permute.xlu0 %1952
      %1956 = vset.pattern.permute.xlu0 2
      %1957 = vperm.xlu0 %1956, %v1899
      %v1958 = vpop.permute.xlu0 %1957
      %1961 = vset.pattern.permute.xlu0 2
      %1962 = vperm.xlu0 %1961, %v1900
      %v1963 = vpop.permute.xlu0 %1962
      %1966 = vset.pattern.permute.xlu0 2
      %1967 = vperm.xlu0 %1966, %v1901
      %v1968 = vpop.permute.xlu0 %1967
      %1971 = vset.pattern.permute.xlu0 2
      %1972 = vperm.xlu0 %1971, %v1902
      %v1973 = vpop.permute.xlu0 %1972
      %1976 = vset.pattern.permute.xlu0 2
      %1977 = vperm.xlu0 %1976, %v1903
      %v1978 = vpop.permute.xlu0 %1977
      %1981 = vset.pattern.permute.xlu0 2
      %1982 = vperm.xlu0 %1981, %v1904
      %v1983 = vpop.permute.xlu0 %1982
      %1986 = vset.pattern.permute.xlu0 2
      %1987 = vperm.xlu0 %1986, %v1905
      %v1988 = vpop.permute.xlu0 %1987
      %1991 = vset.pattern.permute.xlu0 2
      %1992 = vperm.xlu0 %1991, %v1906
      %v1993 = vpop.permute.xlu0 %1992
      %1996 = vset.pattern.permute.xlu0 2
      %1997 = vperm.xlu0 %1996, %v1907
      %v1998 = vpop.permute.xlu0 %1997
      %2001 = vset.pattern.permute.xlu0 2
      %2002 = vperm.xlu0 %2001, %v1908
      %v2003 = vpop.permute.xlu0 %2002
      %2006 = vset.pattern.permute.xlu0 2
      %2007 = vperm.xlu0 %2006, %v1909
      %v2008 = vpop.permute.xlu0 %2007
      %2011 = vset.pattern.permute.xlu0 2
      %2012 = vperm.xlu0 %2011, %v1910
      %v2013 = vpop.permute.xlu0 %2012
      %2016 = vset.pattern.permute.xlu0 2
      %2017 = vperm.xlu0 %2016, %v1911
      %v2018 = vpop.permute.xlu0 %2017
      %2021 = vset.pattern.permute.xlu0 2
      %2022 = vperm.xlu0 %2021, %v1912
      %v2023 = vpop.permute.xlu0 %2022
      %2026 = vset.pattern.permute.xlu0 2
      %2027 = vperm.xlu0 %2026, %v1913
      %v2028 = vpop.permute.xlu0 %2027
      %2031 = vset.pattern.permute.xlu0 2
      %2032 = vperm.xlu0 %2031, %v1914
      %v2033 = vpop.permute.xlu0 %2032
      %2036 = vset.pattern.permute.xlu0 2
      %2037 = vperm.xlu0 %2036, %v1915
      %v2038 = vpop.permute.xlu0 %2037
      %2041 = vset.pattern.permute.xlu0 2
      %2042 = vperm.xlu0 %2041, %v1916
      %v2043 = vpop.permute.xlu0 %2042
      %2046 = vset.pattern.permute.xlu0 2
      %2047 = vperm.xlu0 %2046, %v1917
      %v2048 = vpop.permute.xlu0 %2047
      %2051 = vset.pattern.permute.xlu0 2
      %2052 = vperm.xlu0 %2051, %v1918
      %v2053 = vpop.permute.xlu0 %2052
      %2056 = vset.pattern.permute.xlu0 2
      %2057 = vperm.xlu0 %2056, %v1919
      %v2058 = vpop.permute.xlu0 %2057
      %2061 = vset.pattern.permute.xlu0 2
      %2062 = vperm.xlu0 %2061, %v1920
      %v2063 = vpop.permute.xlu0 %2062
      %2066 = vset.pattern.permute.xlu0 2
      %2067 = vperm.xlu0 %2066, %v1921
      %v2068 = vpop.permute.xlu0 %2067
      %2071 = vset.pattern.permute.xlu0 2
      %2072 = vperm.xlu0 %2071, %v1922
      %v2073 = vpop.permute.xlu0 %2072
      %2076 = vset.pattern.permute.xlu0 2
      %2077 = vperm.xlu0 %2076, %v1923
      %v2078 = vpop.permute.xlu0 %2077
      %2081 = vset.pattern.permute.xlu0 2
      %2082 = vperm.xlu0 %2081, %v1924
      %v2083 = vpop.permute.xlu0 %2082
      %v2085 = vsub.f32 %v1928, %v366
      %v2086 = vsub.f32 %v1933, %v366
      %v2087 = vsub.f32 %v1938, %v366
      %v2088 = vsub.f32 %v1943, %v366
      %v2089 = vsub.f32 %v1948, %v366
      %v2090 = vsub.f32 %v1953, %v366
      %v2091 = vsub.f32 %v1958, %v366
      %v2092 = vsub.f32 %v1963, %v366
      %v2093 = vsub.f32 %v1968, %v366
      %v2094 = vsub.f32 %v1973, %v366
      %v2095 = vsub.f32 %v1978, %v366
      %v2096 = vsub.f32 %v1983, %v366
      %v2097 = vsub.f32 %v1988, %v366
      %v2098 = vsub.f32 %v1993, %v366
      %v2099 = vsub.f32 %v1998, %v366
      %v2100 = vsub.f32 %v2003, %v366
      %v2101 = vsub.f32 %v2008, %v366
      %v2102 = vsub.f32 %v2013, %v366
      %v2103 = vsub.f32 %v2018, %v366
      %v2104 = vsub.f32 %v2023, %v366
      %v2105 = vsub.f32 %v2028, %v366
      %v2106 = vsub.f32 %v2033, %v366
      %v2107 = vsub.f32 %v2038, %v366
      %v2108 = vsub.f32 %v2043, %v366
      %v2109 = vsub.f32 %v2048, %v366
      %v2110 = vsub.f32 %v2053, %v366
      %v2111 = vsub.f32 %v2058, %v366
      %v2112 = vsub.f32 %v2063, %v366
      %v2113 = vsub.f32 %v2068, %v366
      %v2114 = vsub.f32 %v2073, %v366
      %v2115 = vsub.f32 %v2078, %v366
      %v2116 = vsub.f32 %v2083, %v366
      %v2117 = vmul.f32 %v2085, %v2085
      %v2118 = vmul.f32 %v2086, %v2086
      %v2119 = vmul.f32 %v2087, %v2087
      %v2120 = vmul.f32 %v2088, %v2088
      %v2121 = vmul.f32 %v2089, %v2089
      %v2122 = vmul.f32 %v2090, %v2090
      %v2123 = vmul.f32 %v2091, %v2091
      %v2124 = vmul.f32 %v2092, %v2092
      %v2125 = vmul.f32 %v2093, %v2093
      %v2126 = vmul.f32 %v2094, %v2094
      %v2127 = vmul.f32 %v2095, %v2095
      %v2128 = vmul.f32 %v2096, %v2096
      %v2129 = vmul.f32 %v2097, %v2097
      %v2130 = vmul.f32 %v2098, %v2098
      %v2131 = vmul.f32 %v2099, %v2099
      %v2132 = vmul.f32 %v2100, %v2100
      %v2133 = vmul.f32 %v2101, %v2101
      %v2134 = vmul.f32 %v2102, %v2102
      %v2135 = vmul.f32 %v2103, %v2103
      %v2136 = vmul.f32 %v2104, %v2104
      %v2137 = vmul.f32 %v2105, %v2105
      %v2138 = vmul.f32 %v2106, %v2106
      %v2139 = vmul.f32 %v2107, %v2107
      %v2140 = vmul.f32 %v2108, %v2108
      %v2141 = vmul.f32 %v2109, %v2109
      %v2142 = vmul.f32 %v2110, %v2110
      %v2143 = vmul.f32 %v2111, %v2111
      %v2144 = vmul.f32 %v2112, %v2112
      %v2145 = vmul.f32 %v2113, %v2113
      %v2146 = vmul.f32 %v2114, %v2114
      %v2147 = vmul.f32 %v2115, %v2115
      %v2148 = vmul.f32 %v2116, %v2116
      %v2149 = vadd.f32 %v2117, 1.0
      %v2150 = vadd.f32 %v2118, 1.0
      %v2151 = vadd.f32 %v2119, 1.0
      %v2152 = vadd.f32 %v2120, 1.0
      %v2153 = vadd.f32 %v2121, 1.0
      %v2154 = vadd.f32 %v2122, 1.0
      %v2155 = vadd.f32 %v2123, 1.0
      %v2156 = vadd.f32 %v2124, 1.0
      %v2157 = vadd.f32 %v2125, 1.0
      %v2158 = vadd.f32 %v2126, 1.0
      %v2159 = vadd.f32 %v2127, 1.0
      %v2160 = vadd.f32 %v2128, 1.0
      %v2161 = vadd.f32 %v2129, 1.0
      %v2162 = vadd.f32 %v2130, 1.0
      %v2163 = vadd.f32 %v2131, 1.0
      %v2164 = vadd.f32 %v2132, 1.0
      %v2165 = vadd.f32 %v2133, 1.0
      %v2166 = vadd.f32 %v2134, 1.0
      %v2167 = vadd.f32 %v2135, 1.0
      %v2168 = vadd.f32 %v2136, 1.0
      %v2169 = vadd.f32 %v2137, 1.0
      %v2170 = vadd.f32 %v2138, 1.0
      %v2171 = vadd.f32 %v2139, 1.0
      %v2172 = vadd.f32 %v2140, 1.0
      %v2173 = vadd.f32 %v2141, 1.0
      %v2174 = vadd.f32 %v2142, 1.0
      %v2175 = vadd.f32 %v2143, 1.0
      %v2176 = vadd.f32 %v2144, 1.0
      %v2177 = vadd.f32 %v2145, 1.0
      %v2178 = vadd.f32 %v2146, 1.0
      %v2179 = vadd.f32 %v2147, 1.0
      %v2180 = vadd.f32 %v2148, 1.0
      %v2181 = vrcp.pop %v2149
      %v2182 = vrcp.pop %v2150
      %v2183 = vrcp.pop %v2151
      %v2184 = vrcp.pop %v2152
      %v2185 = vrcp.pop %v2153
      %v2186 = vrcp.pop %v2154
      %v2187 = vrcp.pop %v2155
      %v2188 = vrcp.pop %v2156
      %v2189 = vrcp.pop %v2157
      %v2190 = vrcp.pop %v2158
      %v2191 = vrcp.pop %v2159
      %v2192 = vrcp.pop %v2160
      %v2193 = vrcp.pop %v2161
      %v2194 = vrcp.pop %v2162
      %v2195 = vrcp.pop %v2163
      %v2196 = vrcp.pop %v2164
      %v2197 = vrcp.pop %v2165
      %v2198 = vrcp.pop %v2166
      %v2199 = vrcp.pop %v2167
      %v2200 = vrcp.pop %v2168
      %v2201 = vrcp.pop %v2169
      %v2202 = vrcp.pop %v2170
      %v2203 = vrcp.pop %v2171
      %v2204 = vrcp.pop %v2172
      %v2205 = vrcp.pop %v2173
      %v2206 = vrcp.pop %v2174
      %v2207 = vrcp.pop %v2175
      %v2208 = vrcp.pop %v2176
      %v2209 = vrcp.pop %v2177
      %v2210 = vrcp.pop %v2178
      %v2211 = vrcp.pop %v2179
      %v2212 = vrcp.pop %v2180
      %s2213 = scalar_lea.vmem [#allocation2], 256
      %v2214 = vld [vmem:[%s2213] sm:$0xff]
      %v2215 = vld [vmem:[%s2213 + $0x8] sm:$0xff]
      %v2216 = vld [vmem:[%s2213 + $0x10] sm:$0xff]
      %v2217 = vld [vmem:[%s2213 + $0x18] sm:$0xff]
      %v2218 = vld [vmem:[%s2213 + $0x20] sm:$0xff]
      %v2219 = vld [vmem:[%s2213 + $0x28] sm:$0xff]
      %v2220 = vld [vmem:[%s2213 + $0x30] sm:$0xff]
      %v2221 = vld [vmem:[%s2213 + $0x38] sm:$0xff]
      %v2222 = vld [vmem:[%s2213 + $0x40] sm:$0xff]
      %v2223 = vld [vmem:[%s2213 + $0x48] sm:$0xff]
      %v2224 = vld [vmem:[%s2213 + $0x50] sm:$0xff]
      %v2225 = vld [vmem:[%s2213 + $0x58] sm:$0xff]
      %v2226 = vld [vmem:[%s2213 + $0x60] sm:$0xff]
      %v2227 = vld [vmem:[%s2213 + $0x68] sm:$0xff]
      %v2228 = vld [vmem:[%s2213 + $0x70] sm:$0xff]
      %v2229 = vld [vmem:[%s2213 + $0x78] sm:$0xff]
      %v2230 = vpack.c.bf16 %v1863, %v1861
      %v2231 = vpack.c.bf16 %v1864, %v1862
      %v2232 = vpack.c.bf16 %v1867, %v1865
      %v2233 = vpack.c.bf16 %v1868, %v1866
      %v2234 = vpack.c.bf16 %v1871, %v1869
      %v2235 = vpack.c.bf16 %v1872, %v1870
      %v2236 = vpack.c.bf16 %v1875, %v1873
      %v2237 = vpack.c.bf16 %v1876, %v1874
      %v2238 = vpack.c.bf16 %v1879, %v1877
      %v2239 = vpack.c.bf16 %v1880, %v1878
      %v2240 = vpack.c.bf16 %v1883, %v1881
      %v2241 = vpack.c.bf16 %v1884, %v1882
      %v2242 = vpack.c.bf16 %v1887, %v1885
      %v2243 = vpack.c.bf16 %v1888, %v1886
      %v2244 = vpack.c.bf16 %v1891, %v1889
      %v2245 = vpack.c.bf16 %v1892, %v1890
      %v2246 = vpack.c.bf16 %v2182, %v2181
      %v2247 = vpack.c.bf16 %v2184, %v2183
      %v2248 = vpack.c.bf16 %v2186, %v2185
      %v2249 = vpack.c.bf16 %v2188, %v2187
      %v2250 = vpack.c.bf16 %v2190, %v2189
      %v2251 = vpack.c.bf16 %v2192, %v2191
      %v2252 = vpack.c.bf16 %v2194, %v2193
      %v2253 = vpack.c.bf16 %v2196, %v2195
      %v2254 = vpack.c.bf16 %v2198, %v2197
      %v2255 = vpack.c.bf16 %v2200, %v2199
      %v2256 = vpack.c.bf16 %v2202, %v2201
      %v2257 = vpack.c.bf16 %v2204, %v2203
      %v2258 = vpack.c.bf16 %v2206, %v2205
      %v2259 = vpack.c.bf16 %v2208, %v2207
      %v2260 = vpack.c.bf16 %v2210, %v2209
      %v2261 = vpack.c.bf16 %v2212, %v2211
      %2262 = vmatprep.subr.bf16.mxu0 0
      %2263 = vmatpush1.bf16.msra.mxu0 %v2246
      %2264 = vmatprep.subr.bf16.mxu0 0
      %2265 = vmatpush1.bf16.msra.mxu0 %v2247
      %2266 = vmatprep.subr.bf16.mxu0 0
      %2267 = vmatpush1.bf16.msra.mxu0 %v2248
      %2268 = vmatprep.subr.bf16.mxu0 0
      %2269 = vmatpush1.bf16.msra.mxu0 %v2249
      %2270 = vmatprep.subr.bf16.mxu0 0
      %2271 = vmatpush1.bf16.msra.mxu0 %v2250
      %2272 = vmatprep.subr.bf16.mxu0 0
      %2273 = vmatpush1.bf16.msra.mxu0 %v2251
      %2274 = vmatprep.subr.bf16.mxu0 0
      %2275 = vmatpush1.bf16.msra.mxu0 %v2252
      %2276 = vmatprep.subr.bf16.mxu0 0
      %2277 = vmatpush1.bf16.msra.mxu0 %v2253
      %2278 = vmatprep.subr.bf16.mxu0 0
      %2279 = vmatpush1.bf16.msra.mxu0 %v2254
      %2280 = vmatprep.subr.bf16.mxu0 0
      %2281 = vmatpush1.bf16.msra.mxu0 %v2255
      %2282 = vmatprep.subr.bf16.mxu0 0
      %2283 = vmatpush1.bf16.msra.mxu0 %v2256
      %2284 = vmatprep.subr.bf16.mxu0 0
      %2285 = vmatpush1.bf16.msra.mxu0 %v2257
      %2286 = vmatprep.subr.bf16.mxu0 0
      %2287 = vmatpush1.bf16.msra.mxu0 %v2258
      %2288 = vmatprep.subr.bf16.mxu0 0
      %2289 = vmatpush1.bf16.msra.mxu0 %v2259
      %2290 = vmatprep.subr.bf16.mxu0 0
      %2291 = vmatpush1.bf16.msra.mxu0 %v2260
      %2292 = vmatprep.subr.bf16.mxu0 0
      %2293 = vmatpush1.bf16.msra.mxu0 %v2261
      %2294 = vmatprep.mubr.bf16.mxu0 %v2231
      %2295 = vmatmul.mubr.bf16.gmra.mrb[0].mxu0 %v2230
      %v2296 = vpop.f32.mrb[0].mxu0
      %v2297 = vadd.f32 0.0, %v2296
      %v2298 = vpop.f32.mrb[0].mxu0
      %v2299 = vpop.f32.mrb[0].mxu0
      %v2300 = vadd.f32 0.0, %v2299
      %v2301 = vpop.f32.mrb[0].mxu0
      %2302 = vmatprep.mubr.bf16.mxu0 %v2233
      %2303 = vmatmul.mubr.bf16.gmra.mrb[0].mxu0 %v2232
      %v2304 = vpop.f32.mrb[0].mxu0
      %v2305 = vadd.f32 0.0, %v2304
      %v2306 = vpop.f32.mrb[0].mxu0
      %v2307 = vpop.f32.mrb[0].mxu0
      %v2308 = vadd.f32 0.0, %v2307
      %v2309 = vpop.f32.mrb[0].mxu0
      %2310 = vmatprep.mubr.bf16.mxu0 %v2235
      %2311 = vmatmul.mubr.bf16.gmra.mrb[0].mxu0 %v2234
      %v2312 = vpop.f32.mrb[0].mxu0
      %v2313 = vadd.f32 0.0, %v2312
      %v2314 = vpop.f32.mrb[0].mxu0
      %v2315 = vpop.f32.mrb[0].mxu0
      %v2316 = vadd.f32 0.0, %v2315
      %v2317 = vpop.f32.mrb[0].mxu0
      %2318 = vmatprep.mubr.bf16.mxu0 %v2237
      %2319 = vmatmul.mubr.bf16.gmra.mrb[0].mxu0 %v2236
      %v2320 = vpop.f32.mrb[0].mxu0
      %v2321 = vadd.f32 0.0, %v2320
      %v2322 = vpop.f32.mrb[0].mxu0
      %v2323 = vpop.f32.mrb[0].mxu0
      %v2324 = vadd.f32 0.0, %v2323
      %v2325 = vpop.f32.mrb[0].mxu0
      %2326 = vmatprep.mubr.bf16.mxu0 %v2239
      %2327 = vmatmul.mubr.bf16.gmra.mrb[0].mxu0 %v2238
      %v2328 = vpop.f32.mrb[0].mxu0
      %v2329 = vadd.f32 0.0, %v2328
      %v2330 = vpop.f32.mrb[0].mxu0
      %v2331 = vpop.f32.mrb[0].mxu0
      %v2332 = vadd.f32 0.0, %v2331
      %v2333 = vpop.f32.mrb[0].mxu0
      %2334 = vmatprep.mubr.bf16.mxu0 %v2241
      %2335 = vmatmul.mubr.bf16.gmra.mrb[0].mxu0 %v2240
      %v2336 = vpop.f32.mrb[0].mxu0
      %v2337 = vadd.f32 0.0, %v2336
      %v2338 = vpop.f32.mrb[0].mxu0
      %v2339 = vpop.f32.mrb[0].mxu0
      %v2340 = vadd.f32 0.0, %v2339
      %v2341 = vpop.f32.mrb[0].mxu0
      %2342 = vmatprep.mubr.bf16.mxu0 %v2243
      %2343 = vmatmul.mubr.bf16.gmra.mrb[0].mxu0 %v2242
      %v2344 = vpop.f32.mrb[0].mxu0
      %v2345 = vadd.f32 0.0, %v2344
      %v2346 = vpop.f32.mrb[0].mxu0
      %v2347 = vpop.f32.mrb[0].mxu0
      %v2348 = vadd.f32 0.0, %v2347
      %v2349 = vpop.f32.mrb[0].mxu0
      %2350 = vmatprep.mubr.bf16.mxu0 %v2245
      %2351 = vmatmul.mubr.bf16.gmra.mrb[0].mxu0 %v2244
      %v2352 = vpop.f32.mrb[0].mxu0
      %v2353 = vadd.f32 0.0, %v2352
      %v2354 = vpop.f32.mrb[0].mxu0
      %v2355 = vpop.f32.mrb[0].mxu0
      %v2356 = vadd.f32 0.0, %v2355
      %v2357 = vpop.f32.mrb[0].mxu0
      %2358 = vdwg.mxu0
      %v2359 = vadd.f32 %v2214, %v2297
      %v2360 = vadd.f32 %v2215, %v2300
      %v2361 = vadd.f32 %v2216, %v2305
      %v2362 = vadd.f32 %v2217, %v2308
      %v2363 = vadd.f32 %v2218, %v2313
      %v2364 = vadd.f32 %v2219, %v2316
      %v2365 = vadd.f32 %v2220, %v2321
      %v2366 = vadd.f32 %v2221, %v2324
      %v2367 = vadd.f32 %v2222, %v2329
      %v2368 = vadd.f32 %v2223, %v2332
      %v2369 = vadd.f32 %v2224, %v2337
      %v2370 = vadd.f32 %v2225, %v2340
      %v2371 = vadd.f32 %v2226, %v2345
      %v2372 = vadd.f32 %v2227, %v2348
      %v2373 = vadd.f32 %v2228, %v2353
      %v2374 = vadd.f32 %v2229, %v2356
      %2375 = vst [vmem:[%s2213] sm:$0xff] %v2359
      %2376 = vst [vmem:[%s2213 + $0x8] sm:$0xff] %v2360
      %2377 = vst [vmem:[%s2213 + $0x10] sm:$0xff] %v2361
      %2378 = vst [vmem:[%s2213 + $0x18] sm:$0xff] %v2362
      %2379 = vst [vmem:[%s2213 + $0x20] sm:$0xff] %v2363
      %2380 = vst [vmem:[%s2213 + $0x28] sm:$0xff] %v2364
      %2381 = vst [vmem:[%s2213 + $0x30] sm:$0xff] %v2365
      %2382 = vst [vmem:[%s2213 + $0x38] sm:$0xff] %v2366
      %2383 = vst [vmem:[%s2213 + $0x40] sm:$0xff] %v2367
      %2384 = vst [vmem:[%s2213 + $0x48] sm:$0xff] %v2368
      %2385 = vst [vmem:[%s2213 + $0x50] sm:$0xff] %v2369
      %2386 = vst [vmem:[%s2213 + $0x58] sm:$0xff] %v2370
      %2387 = vst [vmem:[%s2213 + $0x60] sm:$0xff] %v2371
      %2388 = vst [vmem:[%s2213 + $0x68] sm:$0xff] %v2372
      %2389 = vst [vmem:[%s2213 + $0x70] sm:$0xff] %v2373
      %2390 = vst [vmem:[%s2213 + $0x78] sm:$0xff] %v2374
      // Predicated region
      $region33: #{hist_loss.4} parent=27 // pred_check
        %p2391 = pneg %p245
      $region34: #{hist_loss.4} parent=27 // pred_check_branch
        %2393 = sbr.rel (%p2391) target = $region36
      $region35: #{hist_loss.4} parent=27 // pred_region
        %v2394 = vld [vmem:[#allocation2] sm:$0xff]
        %v2395 = vld [vmem:[#allocation2 + $0x8] sm:$0xff]
        %v2396 = vld [vmem:[#allocation2 + $0x10] sm:$0xff]
        %v2397 = vld [vmem:[#allocation2 + $0x18] sm:$0xff]
        %v2398 = vld [vmem:[#allocation2 + $0x20] sm:$0xff]
        %v2399 = vld [vmem:[#allocation2 + $0x28] sm:$0xff]
        %v2400 = vld [vmem:[#allocation2 + $0x30] sm:$0xff]
        %v2401 = vld [vmem:[#allocation2 + $0x38] sm:$0xff]
        %v2402 = vld [vmem:[#allocation2 + $0x40] sm:$0xff]
        %v2403 = vld [vmem:[#allocation2 + $0x48] sm:$0xff]
        %v2404 = vld [vmem:[#allocation2 + $0x50] sm:$0xff]
        %v2405 = vld [vmem:[#allocation2 + $0x58] sm:$0xff]
        %v2406 = vld [vmem:[#allocation2 + $0x60] sm:$0xff]
        %v2407 = vld [vmem:[#allocation2 + $0x68] sm:$0xff]
        %v2408 = vld [vmem:[#allocation2 + $0x70] sm:$0xff]
        %v2409 = vld [vmem:[#allocation2 + $0x78] sm:$0xff]
        %v2410 = vld [vmem:[#allocation2 + $0x80] sm:$0xff]
        %v2411 = vld [vmem:[#allocation2 + $0x88] sm:$0xff]
        %v2412 = vld [vmem:[#allocation2 + $0x90] sm:$0xff]
        %v2413 = vld [vmem:[#allocation2 + $0x98] sm:$0xff]
        %v2414 = vld [vmem:[#allocation2 + $0xa0] sm:$0xff]
        %v2415 = vld [vmem:[#allocation2 + $0xa8] sm:$0xff]
        %v2416 = vld [vmem:[#allocation2 + $0xb0] sm:$0xff]
        %v2417 = vld [vmem:[#allocation2 + $0xb8] sm:$0xff]
        %v2418 = vld [vmem:[#allocation2 + $0xc0] sm:$0xff]
        %v2419 = vld [vmem:[#allocation2 + $0xc8] sm:$0xff]
        %v2420 = vld [vmem:[#allocation2 + $0xd0] sm:$0xff]
        %v2421 = vld [vmem:[#allocation2 + $0xd8] sm:$0xff]
        %v2422 = vld [vmem:[#allocation2 + $0xe0] sm:$0xff]
        %v2423 = vld [vmem:[#allocation2 + $0xe8] sm:$0xff]
        %v2424 = vld [vmem:[#allocation2 + $0xf0] sm:$0xff]
        %v2425 = vld [vmem:[#allocation2 + $0xf8] sm:$0xff]
        %v2426 = vld [vmem:[#allocation2 + $0x100] sm:$0xff]
        %v2427 = vld [vmem:[#allocation2 + $0x108] sm:$0xff]
        %v2428 = vld [vmem:[#allocation2 + $0x110] sm:$0xff]
        %v2429 = vld [vmem:[#allocation2 + $0x118] sm:$0xff]
        %v2430 = vld [vmem:[#allocation2 + $0x120] sm:$0xff]
        %v2431 = vld [vmem:[#allocation2 + $0x128] sm:$0xff]
        %v2432 = vld [vmem:[#allocation2 + $0x130] sm:$0xff]
        %v2433 = vld [vmem:[#allocation2 + $0x138] sm:$0xff]
        %v2434 = vld [vmem:[#allocation2 + $0x140] sm:$0xff]
        %v2435 = vld [vmem:[#allocation2 + $0x148] sm:$0xff]
        %v2436 = vld [vmem:[#allocation2 + $0x150] sm:$0xff]
        %v2437 = vld [vmem:[#allocation2 + $0x158] sm:$0xff]
        %v2438 = vld [vmem:[#allocation2 + $0x160] sm:$0xff]
        %v2439 = vld [vmem:[#allocation2 + $0x168] sm:$0xff]
        %v2440 = vld [vmem:[#allocation2 + $0x170] sm:$0xff]
        %v2441 = vld [vmem:[#allocation2 + $0x178] sm:$0xff]
        %2442 = vst [vmem:[%s240] sm:$0xff] %v2394
        %2443 = vst [vmem:[%s240 + $0x8] sm:$0xff] %v2395
        %2444 = vst [vmem:[%s240 + $0x10] sm:$0xff] %v2396
        %2445 = vst [vmem:[%s240 + $0x18] sm:$0xff] %v2397
        %2446 = vst [vmem:[%s240 + $0x20] sm:$0xff] %v2398
        %2447 = vst [vmem:[%s240 + $0x28] sm:$0xff] %v2399
        %2448 = vst [vmem:[%s240 + $0x30] sm:$0xff] %v2400
        %2449 = vst [vmem:[%s240 + $0x38] sm:$0xff] %v2401
        %2450 = vst [vmem:[%s240 + $0x40] sm:$0xff] %v2402
        %2451 = vst [vmem:[%s240 + $0x48] sm:$0xff] %v2403
        %2452 = vst [vmem:[%s240 + $0x50] sm:$0xff] %v2404
        %2453 = vst [vmem:[%s240 + $0x58] sm:$0xff] %v2405
        %2454 = vst [vmem:[%s240 + $0x60] sm:$0xff] %v2406
        %2455 = vst [vmem:[%s240 + $0x68] sm:$0xff] %v2407
        %2456 = vst [vmem:[%s240 + $0x70] sm:$0xff] %v2408
        %2457 = vst [vmem:[%s240 + $0x78] sm:$0xff] %v2409
        %2458 = vst [vmem:[%s240 + $0x80] sm:$0xff] %v2410
        %2459 = vst [vmem:[%s240 + $0x88] sm:$0xff] %v2411
        %2460 = vst [vmem:[%s240 + $0x90] sm:$0xff] %v2412
        %2461 = vst [vmem:[%s240 + $0x98] sm:$0xff] %v2413
        %2462 = vst [vmem:[%s240 + $0xa0] sm:$0xff] %v2414
        %2463 = vst [vmem:[%s240 + $0xa8] sm:$0xff] %v2415
        %2464 = vst [vmem:[%s240 + $0xb0] sm:$0xff] %v2416
        %2465 = vst [vmem:[%s240 + $0xb8] sm:$0xff] %v2417
        %2466 = vst [vmem:[%s240 + $0xc0] sm:$0xff] %v2418
        %2467 = vst [vmem:[%s240 + $0xc8] sm:$0xff] %v2419
        %2468 = vst [vmem:[%s240 + $0xd0] sm:$0xff] %v2420
        %2469 = vst [vmem:[%s240 + $0xd8] sm:$0xff] %v2421
        %2470 = vst [vmem:[%s240 + $0xe0] sm:$0xff] %v2422
        %2471 = vst [vmem:[%s240 + $0xe8] sm:$0xff] %v2423
        %2472 = vst [vmem:[%s240 + $0xf0] sm:$0xff] %v2424
        %2473 = vst [vmem:[%s240 + $0xf8] sm:$0xff] %v2425
        %2474 = vst [vmem:[%s240 + $0x100] sm:$0xff] %v2426
        %2475 = vst [vmem:[%s240 + $0x108] sm:$0xff] %v2427
        %2476 = vst [vmem:[%s240 + $0x110] sm:$0xff] %v2428
        %2477 = vst [vmem:[%s240 + $0x118] sm:$0xff] %v2429
        %2478 = vst [vmem:[%s240 + $0x120] sm:$0xff] %v2430
        %2479 = vst [vmem:[%s240 + $0x128] sm:$0xff] %v2431
        %2480 = vst [vmem:[%s240 + $0x130] sm:$0xff] %v2432
        %2481 = vst [vmem:[%s240 + $0x138] sm:$0xff] %v2433
        %2482 = vst [vmem:[%s240 + $0x140] sm:$0xff] %v2434
        %2483 = vst [vmem:[%s240 + $0x148] sm:$0xff] %v2435
        %2484 = vst [vmem:[%s240 + $0x150] sm:$0xff] %v2436
        %2485 = vst [vmem:[%s240 + $0x158] sm:$0xff] %v2437
        %2486 = vst [vmem:[%s240 + $0x160] sm:$0xff] %v2438
        %2487 = vst [vmem:[%s240 + $0x168] sm:$0xff] %v2439
        %2488 = vst [vmem:[%s240 + $0x170] sm:$0xff] %v2440
        %2489 = vst [vmem:[%s240 + $0x178] sm:$0xff] %v2441
        %v2490 = vld [vmem:[#allocation2] sm:$0xff]
        %v2491 = vld [vmem:[#allocation2 + $0x8] sm:$0xff]
        %v2492 = vld [vmem:[#allocation2 + $0x10] sm:$0xff]
        %v2493 = vld [vmem:[#allocation2 + $0x18] sm:$0xff]
        %v2494 = vld [vmem:[#allocation2 + $0x20] sm:$0xff]
        %v2495 = vld [vmem:[#allocation2 + $0x28] sm:$0xff]
        %v2496 = vld [vmem:[#allocation2 + $0x30] sm:$0xff]
        %v2497 = vld [vmem:[#allocation2 + $0x38] sm:$0xff]
        %v2498 = vld [vmem:[#allocation2 + $0x40] sm:$0xff]
        %v2499 = vld [vmem:[#allocation2 + $0x48] sm:$0xff]
        %v2500 = vld [vmem:[#allocation2 + $0x50] sm:$0xff]
        %v2501 = vld [vmem:[#allocation2 + $0x58] sm:$0xff]
        %v2502 = vld [vmem:[#allocation2 + $0x60] sm:$0xff]
        %v2503 = vld [vmem:[#allocation2 + $0x68] sm:$0xff]
        %v2504 = vld [vmem:[#allocation2 + $0x70] sm:$0xff]
        %v2505 = vld [vmem:[#allocation2 + $0x78] sm:$0xff]
        %v2506 = vld [vmem:[#allocation2 + $0x80] sm:$0xff]
        %v2507 = vld [vmem:[#allocation2 + $0x88] sm:$0xff]
        %v2508 = vld [vmem:[#allocation2 + $0x90] sm:$0xff]
        %v2509 = vld [vmem:[#allocation2 + $0x98] sm:$0xff]
        %v2510 = vld [vmem:[#allocation2 + $0xa0] sm:$0xff]
        %v2511 = vld [vmem:[#allocation2 + $0xa8] sm:$0xff]
        %v2512 = vld [vmem:[#allocation2 + $0xb0] sm:$0xff]
        %v2513 = vld [vmem:[#allocation2 + $0xb8] sm:$0xff]
        %v2514 = vld [vmem:[#allocation2 + $0xc0] sm:$0xff]
        %v2515 = vld [vmem:[#allocation2 + $0xc8] sm:$0xff]
        %v2516 = vld [vmem:[#allocation2 + $0xd0] sm:$0xff]
        %v2517 = vld [vmem:[#allocation2 + $0xd8] sm:$0xff]
        %v2518 = vld [vmem:[#allocation2 + $0xe0] sm:$0xff]
        %v2519 = vld [vmem:[#allocation2 + $0xe8] sm:$0xff]
        %v2520 = vld [vmem:[#allocation2 + $0xf0] sm:$0xff]
        %v2521 = vld [vmem:[#allocation2 + $0xf8] sm:$0xff]
        %v2522 = vld [vmem:[#allocation2 + $0x100] sm:$0xff]
        %v2523 = vld [vmem:[#allocation2 + $0x108] sm:$0xff]
        %v2524 = vld [vmem:[#allocation2 + $0x110] sm:$0xff]
        %v2525 = vld [vmem:[#allocation2 + $0x118] sm:$0xff]
        %v2526 = vld [vmem:[#allocation2 + $0x120] sm:$0xff]
        %v2527 = vld [vmem:[#allocation2 + $0x128] sm:$0xff]
        %v2528 = vld [vmem:[#allocation2 + $0x130] sm:$0xff]
        %v2529 = vld [vmem:[#allocation2 + $0x138] sm:$0xff]
        %v2530 = vld [vmem:[#allocation2 + $0x140] sm:$0xff]
        %v2531 = vld [vmem:[#allocation2 + $0x148] sm:$0xff]
        %v2532 = vld [vmem:[#allocation2 + $0x150] sm:$0xff]
        %v2533 = vld [vmem:[#allocation2 + $0x158] sm:$0xff]
        %v2534 = vld [vmem:[#allocation2 + $0x160] sm:$0xff]
        %v2535 = vld [vmem:[#allocation2 + $0x168] sm:$0xff]
        %v2536 = vld [vmem:[#allocation2 + $0x170] sm:$0xff]
        %v2537 = vld [vmem:[#allocation2 + $0x178] sm:$0xff]
        %v2538 = vadd.f32 %v2490, %v2491
        %v2539 = vadd.f32 %v2538, %v2492
        %v2540 = vadd.f32 %v2539, %v2493
        %v2541 = vadd.f32 %v2540, %v2494
        %v2542 = vadd.f32 %v2541, %v2495
        %v2543 = vadd.f32 %v2542, %v2496
        %v2544 = vadd.f32 %v2543, %v2497
        %v2545 = vadd.f32 %v2544, %v2498
        %v2546 = vadd.f32 %v2545, %v2499
        %v2547 = vadd.f32 %v2546, %v2500
        %v2548 = vadd.f32 %v2547, %v2501
        %v2549 = vadd.f32 %v2548, %v2502
        %v2550 = vadd.f32 %v2549, %v2503
        %v2551 = vadd.f32 %v2550, %v2504
        %v2552 = vadd.f32 %v2551, %v2505
        %v2553 = vadd.f32 %v2552, %v2506
        %v2554 = vadd.f32 %v2553, %v2507
        %v2555 = vadd.f32 %v2554, %v2508
        %v2556 = vadd.f32 %v2555, %v2509
        %v2557 = vadd.f32 %v2556, %v2510
        %v2558 = vadd.f32 %v2557, %v2511
        %v2559 = vadd.f32 %v2558, %v2512
        %v2560 = vadd.f32 %v2559, %v2513
        %v2561 = vadd.f32 %v2560, %v2514
        %v2562 = vadd.f32 %v2561, %v2515
        %v2563 = vadd.f32 %v2562, %v2516
        %v2564 = vadd.f32 %v2563, %v2517
        %v2565 = vadd.f32 %v2564, %v2518
        %v2566 = vadd.f32 %v2565, %v2519
        %v2567 = vadd.f32 %v2566, %v2520
        %v2568 = vadd.f32 %v2567, %v2521
        %v2569 = vadd.f32 %v2568, %v2522
        %v2570 = vadd.f32 %v2569, %v2523
        %v2571 = vadd.f32 %v2570, %v2524
        %v2572 = vadd.f32 %v2571, %v2525
        %v2573 = vadd.f32 %v2572, %v2526
        %v2574 = vadd.f32 %v2573, %v2527
        %v2575 = vadd.f32 %v2574, %v2528
        %v2576 = vadd.f32 %v2575, %v2529
        %v2577 = vadd.f32 %v2576, %v2530
        %v2578 = vadd.f32 %v2577, %v2531
        %v2579 = vadd.f32 %v2578, %v2532
        %v2580 = vadd.f32 %v2579, %v2533
        %v2581 = vadd.f32 %v2580, %v2534
        %v2582 = vadd.f32 %v2581, %v2535
        %v2583 = vadd.f32 %v2582, %v2536
        %v2584 = vadd.f32 %v2583, %v2537
        %2585 = vadd.xlane.f32.xlu0 %v2584
        %v2586 = vpop.xlane.xlu0 %2585
        %v2587 = vrot.slane %v2586, 4
        %v2588 = vadd.f32 %v2586, %v2587
        %v2589 = vrot.slane %v2588, 2
        %v2590 = vadd.f32 %v2588, %v2589
        %v2591 = vrot.slane %v2590, 1
        %v2592 = vadd.f32 %v2590, %v2591
        %s2593 = vtos %v2592
        %v2594 = vstv %s2593
        %v2595 = vadd.f32 %v2594, 1e-06
        %vm2596 = vcmask 0
        %2597 = vst.msk [vmem:[%s243] sm:$0x1] %vm2596, %v2595
      $region36: #{hist_loss.4} parent=27 // pred_fallthru
        _
      %p2598 = scmp.lt.s32.totalorder %s19, 1
      %s2599 = scalar_select %p2598, %s19, 1
      %s2600 = smul.addr %s2599, 48
      %s2601 = smul.addr %s2600, 8
      %s2602 = scalar_lea.vmem %s2, %s2601
      %p2603 = scmp.lt.s32.totalorder %s19, 1
      %s2604 = scalar_select %p2603, %s19, 1
      %s2605 = scalar_lea.vmem %s3, %s2604
      // Predicated region
      $region37: #{hist_loss.4} parent=27 // pred_check
        %p2606 = pneg %p101
      $region38: #{hist_loss.4} parent=27 // pred_check_branch
        %2608 = sbr.rel (%p2606) target = $region40
      $region39: #{hist_loss.4} parent=27 // pred_region
        _
      $region40: #{hist_loss.4} parent=27 // pred_fallthru
        _
      // Predicated region
      $region41: #{hist_loss.4} parent=27 // pred_check
        %p2609 = pneg %p127
      $region42: #{hist_loss.4} parent=27 // pred_check_branch
        %2611 = sbr.rel (%p2609) target = $region44
      $region43: #{hist_loss.4} parent=27 // pred_region
        _
      $region44: #{hist_loss.4} parent=27 // pred_fallthru
        _
    $region28: #{hist_loss.4} parent=5 // pred_fallthru
      _
    %p2612 = scmp.le.s32.totalorder 2, %s10
    // Predicated region
    $region45: #{hist_loss.4} parent=5 // pred_check
      %p2613 = pneg %p2612
    $region46: #{hist_loss.4} parent=5 // pred_check_branch
      %2615 = sbr.rel (%p2613) target = $region48
    $region47: #{hist_loss.4} parent=5 // pred_region
      %s2616 = ssub.s32 %s10, 2
      // Predicated region
      $region49: #{hist_loss.4} parent=47 // pred_check
        %p2617 = pneg %p107
      $region50: #{hist_loss.4} parent=47 // pred_check_branch
        %2619 = sbr.rel (%p2617) target = $region52
      $region51: #{hist_loss.4} parent=47 // pred_region
        %p2620 = scmp.lt.s32.totalorder %s21, 1
        %s2621 = scalar_select %p2620, %s21, 1
        %s2622 = smul.addr %s2621, 48
        %s2623 = smul.addr %s2622, 8
        %s2624 = scalar_lea.vmem %s2, %s2623
      $region52: #{hist_loss.4} parent=47 // pred_fallthru
        _
      // Predicated region
      $region53: #{hist_loss.4} parent=47 // pred_check
        %p2625 = pneg %p133
      $region54: #{hist_loss.4} parent=47 // pred_check_branch
        %2627 = sbr.rel (%p2625) target = $region56
      $region55: #{hist_loss.4} parent=47 // pred_region
        %p2628 = scmp.lt.s32.totalorder %s21, 1
        %s2629 = scalar_select %p2628, %s21, 1
        %s2630 = scalar_lea.vmem %s3, %s2629
      $region56: #{hist_loss.4} parent=47 // pred_fallthru
        _
    $region48: #{hist_loss.4} parent=5 // pred_fallthru
      _
  $region6: #{hist_loss.4} parent=0 // loop_footer
    %s14 = sadd.s32 1, %s10
  $region7: #{hist_loss.4} parent=0 // loop_footer_branch
    %9 = sbr.rel target = $region3
  $region8: #{hist_loss.4} parent=0 // loop_exit
    _

</llo_original>
